<compile_context>
chip_gen: v6e
topology: v6e:2x2x1
jax: 0.10.0
libtpu: 0.0.40
codegen_flags: <defaults>
</compile_context>

<pallas_src>
import jax
import jax.numpy as jnp
from jax.experimental import pallas as pl
from jax.experimental.pallas import tpu as pltpu


def _round_up(v, m):
    return (v + m - 1) // m * m


# ------------------------------- kernel body ---------------------------------

def _make_kernel(H, W, Ci, Cp, stride, Ho, Wo, has_projection):
    """Kernel for one batch element. Ci/Cp are the lane-padded channel counts."""
    f32 = jnp.float32
    bf16 = jnp.bfloat16

    def im2col_3x3(src, s, ho, wo, c):
        # src: (1, h_pad, w_pad, c) padded input; returns (ho*wo, 9*c)
        taps = []
        for kh in range(3):
            for kw in range(3):
                if s == 1:
                    t = jax.lax.slice(src, (0, kh, kw, 0),
                                      (1, kh + ho, kw + wo, c))
                else:
                    t = jax.lax.slice(src, (0, kh, kw, 0),
                                      (1, kh + s * (ho - 1) + 1,
                                       kw + s * (wo - 1) + 1, c),
                                      (1, s, s, 1))
                taps.append(t.reshape(ho * wo, c))
        # Concatenation order (kh, kw, c) matches the (3,3,C,Cout) -> (9C,Cout)
        # reshape of the weights done in the wrapper.
        return jnp.concatenate(taps, axis=-1)

    def kernel(x_ref, w1_ref, s1_ref, b1_ref, w2_ref, s2_ref, b2_ref,
               wsc_ref, ssc_ref, bsc_ref, out_ref, xpad_s, p1_s):
        # ---- stage padded input in VMEM: zero only the 1-wide halo ----------
        xpad_s[:, 0:1, :, :] = jnp.zeros((1, 1, W + 2, Ci), bf16)
        xpad_s[:, H + 1:H + 2, :, :] = jnp.zeros((1, 1, W + 2, Ci), bf16)
        xpad_s[:, 1:H + 1, 0:1, :] = jnp.zeros((1, H, 1, Ci), bf16)
        xpad_s[:, 1:H + 1, W + 1:W + 2, :] = jnp.zeros((1, H, 1, Ci), bf16)
        xpad_s[:, 1:H + 1, 1:W + 1, :] = x_ref[...]
        xpad = xpad_s[...]                                  # (1, H+2, W+2, Ci)

        # ---- conv1 (3x3, stride, pad=1) as a single im2col matmul -----------
        patches1 = im2col_3x3(xpad, stride, Ho, Wo, Ci)     # (Ho*Wo, 9*Ci)
        acc1 = jnp.dot(patches1, w1_ref[...], preferred_element_type=f32)
        out1 = jnp.maximum(acc1 * s1_ref[...] + b1_ref[...], 0.0)   # bn1 + relu

        # ---- stage padded out1 for conv2 (halo-only zeroing) -----------------
        p1_s[:, 0:1, :, :] = jnp.zeros((1, 1, Wo + 2, Cp), bf16)
        p1_s[:, Ho + 1:Ho + 2, :, :] = jnp.zeros((1, 1, Wo + 2, Cp), bf16)
        p1_s[:, 1:Ho + 1, 0:1, :] = jnp.zeros((1, Ho, 1, Cp), bf16)
        p1_s[:, 1:Ho + 1, Wo + 1:Wo + 2, :] = jnp.zeros((1, Ho, 1, Cp), bf16)
        p1_s[:, 1:Ho + 1, 1:Wo + 1, :] = out1.astype(bf16).reshape(1, Ho, Wo, Cp)
        p1 = p1_s[...]                                      # (1, Ho+2, Wo+2, Cp)

        # ---- conv2 (3x3, stride=1, pad=1) as a single im2col matmul ----------
        patches2 = im2col_3x3(p1, 1, Ho, Wo, Cp)            # (Ho*Wo, 9*Cp)
        acc2 = jnp.dot(patches2, w2_ref[...], preferred_element_type=f32)
        out2 = acc2 * s2_ref[...] + b2_ref[...]             # bn2

        # ---- shortcut --------------------------------------------------------
        if has_projection:
            if stride == 1:
                xs = x_ref[...]
            else:
                xs = jax.lax.slice(x_ref[...], (0, 0, 0, 0),
                                   (1, stride * (Ho - 1) + 1,
                                    stride * (Wo - 1) + 1, Ci),
                                   (1, stride, stride, 1))
            sc = jnp.dot(xs.reshape(Ho * Wo, Ci), wsc_ref[...],
                         preferred_element_type=f32)
            sc = sc * ssc_ref[...] + bsc_ref[...]
        else:
            sc = x_ref[...].reshape(Ho * Wo, Ci).astype(f32)

        out_ref[...] = jnp.maximum(out2 + sc, 0.0).reshape(1, Ho, Wo, Cp)

    return kernel


# ------------------------------- wrappers ------------------------------------

def basic_block_forward_nhwc(x_nhwc, params, stride, *, lane_align=128):
    """BasicBlock forward; NHWC in / NHWC out (preferred between blocks)."""
    N, H, W, Cin = x_nhwc.shape
    Cp = params["w1"].shape[-1]
    has_projection = (stride != 1) or (Cin != Cp)
    Ho = (H + 2 - 3) // stride + 1
    Wo = (W + 2 - 3) // stride + 1

    # Lane-dense channels: pad Cin/Cout up to a multiple of 128 (zero padding
    # is mathematically a no-op; padded output channels are sliced off below).
    Ci_p = _round_up(Cin, lane_align)
    Cp_p = _round_up(Cp, lane_align)

    # bf16 operands for the MXU (f32 accumulation happens inside the kernel).
    x = jnp.pad(x_nhwc.astype(jnp.bfloat16),
                ((0, 0), (0, 0), (0, 0), (0, Ci_p - Cin)))

    w1 = jnp.pad(params["w1"].astype(jnp.bfloat16),
                 ((0, 0), (0, 0), (0, Ci_p - Cin), (0, Cp_p - Cp)))
    w1 = w1.reshape(9 * Ci_p, Cp_p)
    w2 = jnp.pad(params["w2"].astype(jnp.bfloat16),
                 ((0, 0), (0, 0), (0, Cp_p - Cp), (0, Cp_p - Cp)))
    w2 = w2.reshape(9 * Cp_p, Cp_p)
    wsc = jnp.pad(params["wsc"].astype(jnp.bfloat16),
                  ((0, Ci_p - Cin), (0, Cp_p - Cp)))

    pad_c = lambda v: jnp.pad(v.astype(jnp.float32), ((0, 0), (0, Cp_p - Cp)))
    s1, b1 = pad_c(params["s1"]), pad_c(params["b1"])
    s2, b2 = pad_c(params["s2"]), pad_c(params["b2"])
    ssc, bsc = pad_c(params["ssc"]), pad_c(params["bsc"])

    kernel = _make_kernel(H, W, Ci_p, Cp_p, stride, Ho, Wo, has_projection)

    batched = lambda shape: pl.BlockSpec(shape, lambda n: (n, 0, 0, 0))
    resident = lambda shape: pl.BlockSpec(shape, lambda n: (0, 0))

    out = pl.pallas_call(
        kernel,
        grid=(N,),
        out_shape=jax.ShapeDtypeStruct((N, Ho, Wo, Cp_p), jnp.float32),
        in_specs=[
            batched((1, H, W, Ci_p)),                 # x
            resident((9 * Ci_p, Cp_p)),               # w1 (im2col layout)
            resident((1, Cp_p)), resident((1, Cp_p)),  # bn1 scale / bias
            resident((9 * Cp_p, Cp_p)),               # w2 (im2col layout)
            resident((1, Cp_p)), resident((1, Cp_p)),  # bn2 scale / bias
            resident((Ci_p, Cp_p)),                   # shortcut 1x1 conv
            resident((1, Cp_p)), resident((1, Cp_p)),  # shortcut bn scale / bias
        ],
        out_specs=batched((1, Ho, Wo, Cp_p)),
        scratch_shapes=[
            pltpu.VMEM((1, H + 2, W + 2, Ci_p), jnp.bfloat16),   # padded x
            pltpu.VMEM((1, Ho + 2, Wo + 2, Cp_p), jnp.bfloat16),  # padded out1
        ],
        compiler_params=pltpu.CompilerParams(
            dimension_semantics=("parallel",),
            vmem_limit_bytes=32 * 1024 * 1024,
        ),
    )(x, w1, s1, b1, w2, s2, b2, wsc, ssc, bsc)

    return out[:, :, :, :Cp]


def basic_block_forward(x_nchw, params, stride):
    """PyTorch-compatible NCHW wrapper (transposes belong at model boundaries)."""
    x_nhwc = jnp.transpose(x_nchw, (0, 2, 3, 1))
    out_nhwc = basic_block_forward_nhwc(x_nhwc, params, stride)
    return jnp.transpose(out_nhwc, (0, 3, 1, 2))


# ----------------------------- parameter setup -------------------------------

def _fold_bn(gamma, beta, mean, var, eps=1e-5):
    scale = gamma / jnp.sqrt(var + eps)
    bias = beta - mean * scale
    return (scale.reshape(1, -1).astype(jnp.float32),
            bias.reshape(1, -1).astype(jnp.float32))


def init_params(key, in_planes, planes, stride):
    ks = jax.random.split(key, 16)

    def bn_params(k0, k1, k2, k3, c):
        gamma = 1.0 + 0.1 * jax.random.normal(k0, (c,), jnp.float32)
        beta = 0.1 * jax.random.normal(k1, (c,), jnp.float32)
        mean = 0.1 * jax.random.normal(k2, (c,), jnp.float32)
        var = 1.0 + 0.5 * jax.random.uniform(k3, (c,), jnp.float32)
        return _fold_bn(gamma, beta, mean, var)

    w1 = 0.1 * jax.random.normal(ks[0], (3, 3, in_planes, planes), jnp.float32)
    s1, b1 = bn_params(ks[1], ks[2], ks[3], ks[4], planes)

    w2 = 0.1 * jax.random.normal(ks[5], (3, 3, planes, planes), jnp.float32)
    s2, b2 = bn_params(ks[6], ks[7], ks[8], ks[9], planes)

    has_projection = (stride != 1) or (in_planes != planes)
    if has_projection:
        wsc = 0.1 * jax.random.normal(ks[10], (in_planes, planes), jnp.float32)
        ssc, bsc = bn_params(ks[11], ks[12], ks[13], ks[14], planes)
    else:
        # Dummy (unused) projection params to keep the kernel signature stable.
        wsc = jnp.zeros((in_planes, planes), jnp.float32)
        ssc = jnp.ones((1, planes), jnp.float32)
        bsc = jnp.zeros((1, planes), jnp.float32)

    return dict(w1=w1, s1=s1, b1=b1, w2=w2, s2=s2, b2=b2,
                wsc=wsc, ssc=ssc, bsc=bsc)


# --------------------------- pure-JAX reference ------------------------------

def reference_forward(x_nchw, params, stride):
    """Reference with the same bf16-operand / f32-accumulation numerics."""
    N, Cin, H, W = x_nchw.shape
    Cp = params["w1"].shape[-1]
    has_projection = (stride != 1) or (Cin != Cp)

    x = jnp.transpose(x_nchw, (0, 2, 3, 1)).astype(jnp.bfloat16)
    dn = ('NHWC', 'HWIO', 'NHWC')

    o = jax.lax.conv_general_dilated(
        x, params["w1"].astype(jnp.bfloat16), (stride, stride),
        [(1, 1), (1, 1)], dimension_numbers=dn,
        preferred_element_type=jnp.float32)
    o = jnp.maximum(o * params["s1"].reshape(1, 1, 1, -1)
                    + params["b1"].reshape(1, 1, 1, -1), 0.0)
    o = jax.lax.conv_general_dilated(
        o.astype(jnp.bfloat16), params["w2"].astype(jnp.bfloat16), (1, 1),
        [(1, 1), (1, 1)], dimension_numbers=dn,
        preferred_element_type=jnp.float32)
    o = o * params["s2"].reshape(1, 1, 1, -1) + params["b2"].reshape(1, 1, 1, -1)

    if has_projection:
        wsc = params["wsc"].astype(jnp.bfloat16).reshape(1, 1, Cin, Cp)
        sc = jax.lax.conv_general_dilated(
            x, wsc, (stride, stride), [(0, 0), (0, 0)], dimension_numbers=dn,
            preferred_element_type=jnp.float32)
        sc = sc * params["ssc"].reshape(1, 1, 1, -1) \
            + params["bsc"].reshape(1, 1, 1, -1)
    else:
        sc = x.astype(jnp.float32)

    out = jnp.maximum(o + sc, 0.0)
    return jnp.transpose(out, (0, 3, 1, 2))


# ---------------------------------- main --------------------------------------

if __name__ == "__main__":
    key = jax.random.PRNGKey(0)

    configs = [
        # (N, in_planes, planes, H, W, stride)
        (2, 4, 8, 16, 16, 1),   # projection shortcut (channel change)
        (2, 8, 8, 16, 16, 1),   # identity shortcut
    ]

    for idx, (N, in_planes, planes, H, W, stride) in enumerate(configs):
        k_x, k_p = jax.random.split(jax.random.fold_in(key, idx))
        x = jax.random.normal(k_x, (N, in_planes, H, W), jnp.float32)   # NCHW
        params = init_params(k_p, in_planes, planes, stride)

        out = jax.block_until_ready(basic_block_forward(x, params, stride))
        ref = jax.block_until_ready(reference_forward(x, params, stride))

        assert out.shape == ref.shape, (out.shape, ref.shape)
        max_err = float(jnp.max(jnp.abs(out - ref)))
        assert max_err < 2e-3, max_err

    print("KERNEL_OK")
</pallas_src>

<mosaic_0001>
module attributes {stable_mosaic.version = 11 : i64} {
  func.func @kernel(%arg0: i32, %arg1: memref<1x16x16x128xbf16, #tpu.memory_space<vmem>>, %arg2: memref<1152x128xbf16, #tpu.memory_space<vmem>>, %arg3: memref<1x128xf32, #tpu.memory_space<vmem>>, %arg4: memref<1x128xf32, #tpu.memory_space<vmem>>, %arg5: memref<1152x128xbf16, #tpu.memory_space<vmem>>, %arg6: memref<1x128xf32, #tpu.memory_space<vmem>>, %arg7: memref<1x128xf32, #tpu.memory_space<vmem>>, %arg8: memref<128x128xbf16, #tpu.memory_space<vmem>>, %arg9: memref<1x128xf32, #tpu.memory_space<vmem>>, %arg10: memref<1x128xf32, #tpu.memory_space<vmem>>, %arg11: memref<1x16x16x128xf32, #tpu.memory_space<vmem>>, %arg12: memref<1x18x18x128xbf16, #tpu.memory_space<vmem>>, %arg13: memref<1x18x18x128xbf16, #tpu.memory_space<vmem>>) attributes {dimension_semantics = [#tpu.dimension_semantics<parallel>], iteration_bounds = array<i64: 2>, scalar_prefetch = 0 : i64, scratch_operands = 2 : i64, tpu.core_type = #tpu.core_type<tc>, window_params = [{transform_indices = @transform_0, window_bounds = array<i64: 1, 16, 16, 128>}, {pipeline_mode = #tpu.pipeline_mode<synchronous>, transform_indices = @transform_1, window_bounds = array<i64: 1152, 128>}, {pipeline_mode = #tpu.pipeline_mode<synchronous>, transform_indices = @transform_2, window_bounds = array<i64: 1, 128>}, {pipeline_mode = #tpu.pipeline_mode<synchronous>, transform_indices = @transform_3, window_bounds = array<i64: 1, 128>}, {pipeline_mode = #tpu.pipeline_mode<synchronous>, transform_indices = @transform_4, window_bounds = array<i64: 1152, 128>}, {pipeline_mode = #tpu.pipeline_mode<synchronous>, transform_indices = @transform_5, window_bounds = array<i64: 1, 128>}, {pipeline_mode = #tpu.pipeline_mode<synchronous>, transform_indices = @transform_6, window_bounds = array<i64: 1, 128>}, {pipeline_mode = #tpu.pipeline_mode<synchronous>, transform_indices = @transform_7, window_bounds = array<i64: 128, 128>}, {pipeline_mode = #tpu.pipeline_mode<synchronous>, transform_indices = @transform_8, window_bounds = array<i64: 1, 128>}, {pipeline_mode = #tpu.pipeline_mode<synchronous>, transform_indices = @transform_9, window_bounds = array<i64: 1, 128>}, {transform_indices = @transform_10, window_bounds = array<i64: 1, 16, 16, 128>}]} {
    %cst = arith.constant 0.000000e+00 : bf16
    %0 = vector.broadcast %cst : bf16 to vector<1x1x18x128xbf16>
    %c0 = arith.constant 0 : index
    %c0_0 = arith.constant 0 : index
    %c0_1 = arith.constant 0 : index
    %c0_2 = arith.constant 0 : index
    %1 = vector.load %arg12[%c0, %c0_0, %c0_1, %c0_2] : memref<1x18x18x128xbf16, #tpu.memory_space<vmem>>, vector<1x1x18x128xbf16>
    tpu.vector_store %arg12[%c0, %c0_0, %c0_1, %c0_2], %0 {strides = array<i32>} : memref<1x18x18x128xbf16, #tpu.memory_space<vmem>>, vector<1x1x18x128xbf16>,
    %cst_3 = arith.constant 0.000000e+00 : bf16
    %2 = vector.broadcast %cst_3 : bf16 to vector<1x1x18x128xbf16>
    %c0_4 = arith.constant 0 : index
    %c17 = arith.constant 17 : index
    %c0_5 = arith.constant 0 : index
    %c0_6 = arith.constant 0 : index
    %3 = vector.load %arg12[%c0_4, %c17, %c0_5, %c0_6] : memref<1x18x18x128xbf16, #tpu.memory_space<vmem>>, vector<1x1x18x128xbf16>
    tpu.vector_store %arg12[%c0_4, %c17, %c0_5, %c0_6], %2 {strides = array<i32>} : memref<1x18x18x128xbf16, #tpu.memory_space<vmem>>, vector<1x1x18x128xbf16>,
    %cst_7 = arith.constant 0.000000e+00 : bf16
    %4 = vector.broadcast %cst_7 : bf16 to vector<1x16x1x128xbf16>
    %c0_8 = arith.constant 0 : index
    %c1 = arith.constant 1 : index
    %c0_9 = arith.constant 0 : index
    %c0_10 = arith.constant 0 : index
    %5 = vector.load %arg12[%c0_8, %c1, %c0_9, %c0_10] : memref<1x18x18x128xbf16, #tpu.memory_space<vmem>>, vector<1x16x1x128xbf16>
    tpu.vector_store %arg12[%c0_8, %c1, %c0_9, %c0_10], %4 {strides = array<i32>} : memref<1x18x18x128xbf16, #tpu.memory_space<vmem>>, vector<1x16x1x128xbf16>,
    %cst_11 = arith.constant 0.000000e+00 : bf16
    %6 = vector.broadcast %cst_11 : bf16 to vector<1x16x1x128xbf16>
    %c0_12 = arith.constant 0 : index
    %c1_13 = arith.constant 1 : index
    %c17_14 = arith.constant 17 : index
    %c0_15 = arith.constant 0 : index
    %7 = vector.load %arg12[%c0_12, %c1_13, %c17_14, %c0_15] : memref<1x18x18x128xbf16, #tpu.memory_space<vmem>>, vector<1x16x1x128xbf16>
    tpu.vector_store %arg12[%c0_12, %c1_13, %c17_14, %c0_15], %6 {strides = array<i32>} : memref<1x18x18x128xbf16, #tpu.memory_space<vmem>>, vector<1x16x1x128xbf16>,
    %c0_16 = arith.constant 0 : index
    %c0_17 = arith.constant 0 : index
    %c0_18 = arith.constant 0 : index
    %c0_19 = arith.constant 0 : index
    %8 = vector.load %arg1[%c0_16, %c0_17, %c0_18, %c0_19] : memref<1x16x16x128xbf16, #tpu.memory_space<vmem>>, vector<1x16x16x128xbf16>
    %c0_20 = arith.constant 0 : index
    %c1_21 = arith.constant 1 : index
    %c1_22 = arith.constant 1 : index
    %c0_23 = arith.constant 0 : index
    %9 = vector.load %arg12[%c0_20, %c1_21, %c1_22, %c0_23] : memref<1x18x18x128xbf16, #tpu.memory_space<vmem>>, vector<1x16x16x128xbf16>
    tpu.vector_store %arg12[%c0_20, %c1_21, %c1_22, %c0_23], %8 {strides = array<i32>} : memref<1x18x18x128xbf16, #tpu.memory_space<vmem>>, vector<1x16x16x128xbf16>,
    %c0_24 = arith.constant 0 : index
    %c0_25 = arith.constant 0 : index
    %c0_26 = arith.constant 0 : index
    %c0_27 = arith.constant 0 : index
    %10 = vector.load %arg12[%c0_24, %c0_25, %c0_26, %c0_27] : memref<1x18x18x128xbf16, #tpu.memory_space<vmem>>, vector<1x18x18x128xbf16>
    %11 = vector.extract_strided_slice %10 {offsets = [0, 0, 0, 0], sizes = [1, 16, 16, 128], strides = [1, 1, 1, 1]} : vector<1x18x18x128xbf16> to vector<1x16x16x128xbf16>
    %12 = vector.shape_cast %11 : vector<1x16x16x128xbf16> to vector<256x128xbf16>
    %13 = vector.extract_strided_slice %10 {offsets = [0, 0, 1, 0], sizes = [1, 16, 16, 128], strides = [1, 1, 1, 1]} : vector<1x18x18x128xbf16> to vector<1x16x16x128xbf16>
    %14 = vector.shape_cast %13 : vector<1x16x16x128xbf16> to vector<256x128xbf16>
    %15 = vector.extract_strided_slice %10 {offsets = [0, 0, 2, 0], sizes = [1, 16, 16, 128], strides = [1, 1, 1, 1]} : vector<1x18x18x128xbf16> to vector<1x16x16x128xbf16>
    %16 = vector.shape_cast %15 : vector<1x16x16x128xbf16> to vector<256x128xbf16>
    %17 = vector.extract_strided_slice %10 {offsets = [0, 1, 0, 0], sizes = [1, 16, 16, 128], strides = [1, 1, 1, 1]} : vector<1x18x18x128xbf16> to vector<1x16x16x128xbf16>
    %18 = vector.shape_cast %17 : vector<1x16x16x128xbf16> to vector<256x128xbf16>
    %19 = vector.extract_strided_slice %10 {offsets = [0, 1, 1, 0], sizes = [1, 16, 16, 128], strides = [1, 1, 1, 1]} : vector<1x18x18x128xbf16> to vector<1x16x16x128xbf16>
    %20 = vector.shape_cast %19 : vector<1x16x16x128xbf16> to vector<256x128xbf16>
    %21 = vector.extract_strided_slice %10 {offsets = [0, 1, 2, 0], sizes = [1, 16, 16, 128], strides = [1, 1, 1, 1]} : vector<1x18x18x128xbf16> to vector<1x16x16x128xbf16>
    %22 = vector.shape_cast %21 : vector<1x16x16x128xbf16> to vector<256x128xbf16>
    %23 = vector.extract_strided_slice %10 {offsets = [0, 2, 0, 0], sizes = [1, 16, 16, 128], strides = [1, 1, 1, 1]} : vector<1x18x18x128xbf16> to vector<1x16x16x128xbf16>
    %24 = vector.shape_cast %23 : vector<1x16x16x128xbf16> to vector<256x128xbf16>
    %25 = vector.extract_strided_slice %10 {offsets = [0, 2, 1, 0], sizes = [1, 16, 16, 128], strides = [1, 1, 1, 1]} : vector<1x18x18x128xbf16> to vector<1x16x16x128xbf16>
    %26 = vector.shape_cast %25 : vector<1x16x16x128xbf16> to vector<256x128xbf16>
    %27 = vector.extract_strided_slice %10 {offsets = [0, 2, 2, 0], sizes = [1, 16, 16, 128], strides = [1, 1, 1, 1]} : vector<1x18x18x128xbf16> to vector<1x16x16x128xbf16>
    %28 = vector.shape_cast %27 : vector<1x16x16x128xbf16> to vector<256x128xbf16>
    %29 = tpu.concatenate %12, %14, %16, %18, %20, %22, %24, %26, %28 in 1 : vector<256x128xbf16>, vector<256x128xbf16>, vector<256x128xbf16>, vector<256x128xbf16>, vector<256x128xbf16>, vector<256x128xbf16>, vector<256x128xbf16>, vector<256x128xbf16>, vector<256x128xbf16> -> vector<256x1152xbf16>
    %c0_28 = arith.constant 0 : index
    %c0_29 = arith.constant 0 : index
    %30 = vector.load %arg2[%c0_28, %c0_29] : memref<1152x128xbf16, #tpu.memory_space<vmem>>, vector<1152x128xbf16>
    %cst_30 = arith.constant dense<0.000000e+00> : vector<256x128xf32>
    %31 = tpu.matmul %29, %30, %cst_30 {dimension_numbers = #tpu.dot_dimension_numbers<[1], [0], [0], [1], [0, 0, 1, 1], [], []>} : vector<256x1152xbf16>, vector<1152x128xbf16>, vector<256x128xf32> -> vector<256x128xf32>
    %c0_31 = arith.constant 0 : index
    %c0_32 = arith.constant 0 : index
    %32 = vector.load %arg3[%c0_31, %c0_32] : memref<1x128xf32, #tpu.memory_space<vmem>>, vector<1x128xf32>
    %33 = vector.broadcast %32 : vector<1x128xf32> to vector<256x128xf32>
    %34 = arith.mulf %31, %33 : vector<256x128xf32>
    %c0_33 = arith.constant 0 : index
    %c0_34 = arith.constant 0 : index
    %35 = vector.load %arg4[%c0_33, %c0_34] : memref<1x128xf32, #tpu.memory_space<vmem>>, vector<1x128xf32>
    %36 = vector.broadcast %35 : vector<1x128xf32> to vector<256x128xf32>
    %37 = arith.addf %34, %36 : vector<256x128xf32>
    %cst_35 = arith.constant 0.000000e+00 : f32
    %38 = vector.broadcast %cst_35 : f32 to vector<256x128xf32>
    %39 = arith.maximumf %37, %38 : vector<256x128xf32>
    %cst_36 = arith.constant 0.000000e+00 : bf16
    %40 = vector.broadcast %cst_36 : bf16 to vector<1x1x18x128xbf16>
    %c0_37 = arith.constant 0 : index
    %c0_38 = arith.constant 0 : index
    %c0_39 = arith.constant 0 : index
    %c0_40 = arith.constant 0 : index
    %41 = vector.load %arg13[%c0_37, %c0_38, %c0_39, %c0_40] : memref<1x18x18x128xbf16, #tpu.memory_space<vmem>>, vector<1x1x18x128xbf16>
    tpu.vector_store %arg13[%c0_37, %c0_38, %c0_39, %c0_40], %40 {strides = array<i32>} : memref<1x18x18x128xbf16, #tpu.memory_space<vmem>>, vector<1x1x18x128xbf16>,
    %cst_41 = arith.constant 0.000000e+00 : bf16
    %42 = vector.broadcast %cst_41 : bf16 to vector<1x1x18x128xbf16>
    %c0_42 = arith.constant 0 : index
    %c17_43 = arith.constant 17 : index
    %c0_44 = arith.constant 0 : index
    %c0_45 = arith.constant 0 : index
    %43 = vector.load %arg13[%c0_42, %c17_43, %c0_44, %c0_45] : memref<1x18x18x128xbf16, #tpu.memory_space<vmem>>, vector<1x1x18x128xbf16>
    tpu.vector_store %arg13[%c0_42, %c17_43, %c0_44, %c0_45], %42 {strides = array<i32>} : memref<1x18x18x128xbf16, #tpu.memory_space<vmem>>, vector<1x1x18x128xbf16>,
    %cst_46 = arith.constant 0.000000e+00 : bf16
    %44 = vector.broadcast %cst_46 : bf16 to vector<1x16x1x128xbf16>
    %c0_47 = arith.constant 0 : index
    %c1_48 = arith.constant 1 : index
    %c0_49 = arith.constant 0 : index
    %c0_50 = arith.constant 0 : index
    %45 = vector.load %arg13[%c0_47, %c1_48, %c0_49, %c0_50] : memref<1x18x18x128xbf16, #tpu.memory_space<vmem>>, vector<1x16x1x128xbf16>
    tpu.vector_store %arg13[%c0_47, %c1_48, %c0_49, %c0_50], %44 {strides = array<i32>} : memref<1x18x18x128xbf16, #tpu.memory_space<vmem>>, vector<1x16x1x128xbf16>,
    %cst_51 = arith.constant 0.000000e+00 : bf16
    %46 = vector.broadcast %cst_51 : bf16 to vector<1x16x1x128xbf16>
    %c0_52 = arith.constant 0 : index
    %c1_53 = arith.constant 1 : index
    %c17_54 = arith.constant 17 : index
    %c0_55 = arith.constant 0 : index
    %47 = vector.load %arg13[%c0_52, %c1_53, %c17_54, %c0_55] : memref<1x18x18x128xbf16, #tpu.memory_space<vmem>>, vector<1x16x1x128xbf16>
    tpu.vector_store %arg13[%c0_52, %c1_53, %c17_54, %c0_55], %46 {strides = array<i32>} : memref<1x18x18x128xbf16, #tpu.memory_space<vmem>>, vector<1x16x1x128xbf16>,
    %48 = arith.truncf %39 : vector<256x128xf32> to vector<256x128xbf16>
    %49 = vector.shape_cast %48 : vector<256x128xbf16> to vector<1x16x16x128xbf16>
    %c0_56 = arith.constant 0 : index
    %c1_57 = arith.constant 1 : index
    %c1_58 = arith.constant 1 : index
    %c0_59 = arith.constant 0 : index
    %50 = vector.load %arg13[%c0_56, %c1_57, %c1_58, %c0_59] : memref<1x18x18x128xbf16, #tpu.memory_space<vmem>>, vector<1x16x16x128xbf16>
    tpu.vector_store %arg13[%c0_56, %c1_57, %c1_58, %c0_59], %49 {strides = array<i32>} : memref<1x18x18x128xbf16, #tpu.memory_space<vmem>>, vector<1x16x16x128xbf16>,
    %c0_60 = arith.constant 0 : index
    %c0_61 = arith.constant 0 : index
    %c0_62 = arith.constant 0 : index
    %c0_63 = arith.constant 0 : index
    %51 = vector.load %arg13[%c0_60, %c0_61, %c0_62, %c0_63] : memref<1x18x18x128xbf16, #tpu.memory_space<vmem>>, vector<1x18x18x128xbf16>
    %52 = vector.extract_strided_slice %51 {offsets = [0, 0, 0, 0], sizes = [1, 16, 16, 128], strides = [1, 1, 1, 1]} : vector<1x18x18x128xbf16> to vector<1x16x16x128xbf16>
    %53 = vector.shape_cast %52 : vector<1x16x16x128xbf16> to vector<256x128xbf16>
    %54 = vector.extract_strided_slice %51 {offsets = [0, 0, 1, 0], sizes = [1, 16, 16, 128], strides = [1, 1, 1, 1]} : vector<1x18x18x128xbf16> to vector<1x16x16x128xbf16>
    %55 = vector.shape_cast %54 : vector<1x16x16x128xbf16> to vector<256x128xbf16>
    %56 = vector.extract_strided_slice %51 {offsets = [0, 0, 2, 0], sizes = [1, 16, 16, 128], strides = [1, 1, 1, 1]} : vector<1x18x18x128xbf16> to vector<1x16x16x128xbf16>
    %57 = vector.shape_cast %56 : vector<1x16x16x128xbf16> to vector<256x128xbf16>
    %58 = vector.extract_strided_slice %51 {offsets = [0, 1, 0, 0], sizes = [1, 16, 16, 128], strides = [1, 1, 1, 1]} : vector<1x18x18x128xbf16> to vector<1x16x16x128xbf16>
    %59 = vector.shape_cast %58 : vector<1x16x16x128xbf16> to vector<256x128xbf16>
    %60 = vector.extract_strided_slice %51 {offsets = [0, 1, 1, 0], sizes = [1, 16, 16, 128], strides = [1, 1, 1, 1]} : vector<1x18x18x128xbf16> to vector<1x16x16x128xbf16>
    %61 = vector.shape_cast %60 : vector<1x16x16x128xbf16> to vector<256x128xbf16>
    %62 = vector.extract_strided_slice %51 {offsets = [0, 1, 2, 0], sizes = [1, 16, 16, 128], strides = [1, 1, 1, 1]} : vector<1x18x18x128xbf16> to vector<1x16x16x128xbf16>
    %63 = vector.shape_cast %62 : vector<1x16x16x128xbf16> to vector<256x128xbf16>
    %64 = vector.extract_strided_slice %51 {offsets = [0, 2, 0, 0], sizes = [1, 16, 16, 128], strides = [1, 1, 1, 1]} : vector<1x18x18x128xbf16> to vector<1x16x16x128xbf16>
    %65 = vector.shape_cast %64 : vector<1x16x16x128xbf16> to vector<256x128xbf16>
    %66 = vector.extract_strided_slice %51 {offsets = [0, 2, 1, 0], sizes = [1, 16, 16, 128], strides = [1, 1, 1, 1]} : vector<1x18x18x128xbf16> to vector<1x16x16x128xbf16>
    %67 = vector.shape_cast %66 : vector<1x16x16x128xbf16> to vector<256x128xbf16>
    %68 = vector.extract_strided_slice %51 {offsets = [0, 2, 2, 0], sizes = [1, 16, 16, 128], strides = [1, 1, 1, 1]} : vector<1x18x18x128xbf16> to vector<1x16x16x128xbf16>
    %69 = vector.shape_cast %68 : vector<1x16x16x128xbf16> to vector<256x128xbf16>
    %70 = tpu.concatenate %53, %55, %57, %59, %61, %63, %65, %67, %69 in 1 : vector<256x128xbf16>, vector<256x128xbf16>, vector<256x128xbf16>, vector<256x128xbf16>, vector<256x128xbf16>, vector<256x128xbf16>, vector<256x128xbf16>, vector<256x128xbf16>, vector<256x128xbf16> -> vector<256x1152xbf16>
    %c0_64 = arith.constant 0 : index
    %c0_65 = arith.constant 0 : index
    %71 = vector.load %arg5[%c0_64, %c0_65] : memref<1152x128xbf16, #tpu.memory_space<vmem>>, vector<1152x128xbf16>
    %cst_66 = arith.constant dense<0.000000e+00> : vector<256x128xf32>
    %72 = tpu.matmul %70, %71, %cst_66 {dimension_numbers = #tpu.dot_dimension_numbers<[1], [0], [0], [1], [0, 0, 1, 1], [], []>} : vector<256x1152xbf16>, vector<1152x128xbf16>, vector<256x128xf32> -> vector<256x128xf32>
    %c0_67 = arith.constant 0 : index
    %c0_68 = arith.constant 0 : index
    %73 = vector.load %arg6[%c0_67, %c0_68] : memref<1x128xf32, #tpu.memory_space<vmem>>, vector<1x128xf32>
    %74 = vector.broadcast %73 : vector<1x128xf32> to vector<256x128xf32>
    %75 = arith.mulf %72, %74 : vector<256x128xf32>
    %c0_69 = arith.constant 0 : index
    %c0_70 = arith.constant 0 : index
    %76 = vector.load %arg7[%c0_69, %c0_70] : memref<1x128xf32, #tpu.memory_space<vmem>>, vector<1x128xf32>
    %77 = vector.broadcast %76 : vector<1x128xf32> to vector<256x128xf32>
    %78 = arith.addf %75, %77 : vector<256x128xf32>
    %c0_71 = arith.constant 0 : index
    %c0_72 = arith.constant 0 : index
    %c0_73 = arith.constant 0 : index
    %c0_74 = arith.constant 0 : index
    %79 = vector.load %arg1[%c0_71, %c0_72, %c0_73, %c0_74] : memref<1x16x16x128xbf16, #tpu.memory_space<vmem>>, vector<1x16x16x128xbf16>
    %80 = vector.shape_cast %79 : vector<1x16x16x128xbf16> to vector<256x128xbf16>
    %c0_75 = arith.constant 0 : index
    %c0_76 = arith.constant 0 : index
    %81 = vector.load %arg8[%c0_75, %c0_76] : memref<128x128xbf16, #tpu.memory_space<vmem>>, vector<128x128xbf16>
    %cst_77 = arith.constant dense<0.000000e+00> : vector<256x128xf32>
    %82 = tpu.matmul %80, %81, %cst_77 {dimension_numbers = #tpu.dot_dimension_numbers<[1], [0], [0], [1], [0, 0, 1, 1], [], []>} : vector<256x128xbf16>, vector<128x128xbf16>, vector<256x128xf32> -> vector<256x128xf32>
    %c0_78 = arith.constant 0 : index
    %c0_79 = arith.constant 0 : index
    %83 = vector.load %arg9[%c0_78, %c0_79] : memref<1x128xf32, #tpu.memory_space<vmem>>, vector<1x128xf32>
    %84 = vector.broadcast %83 : vector<1x128xf32> to vector<256x128xf32>
    %85 = arith.mulf %82, %84 : vector<256x128xf32>
    %c0_80 = arith.constant 0 : index
    %c0_81 = arith.constant 0 : index
    %86 = vector.load %arg10[%c0_80, %c0_81] : memref<1x128xf32, #tpu.memory_space<vmem>>, vector<1x128xf32>
    %87 = vector.broadcast %86 : vector<1x128xf32> to vector<256x128xf32>
    %88 = arith.addf %85, %87 : vector<256x128xf32>
    %89 = arith.addf %78, %88 : vector<256x128xf32>
    %cst_82 = arith.constant 0.000000e+00 : f32
    %90 = vector.broadcast %cst_82 : f32 to vector<256x128xf32>
    %91 = arith.maximumf %89, %90 : vector<256x128xf32>
    %92 = vector.shape_cast %91 : vector<256x128xf32> to vector<1x16x16x128xf32>
    %c0_83 = arith.constant 0 : index
    %c0_84 = arith.constant 0 : index
    %c0_85 = arith.constant 0 : index
    %c0_86 = arith.constant 0 : index
    %93 = vector.load %arg11[%c0_83, %c0_84, %c0_85, %c0_86] : memref<1x16x16x128xf32, #tpu.memory_space<vmem>>, vector<1x16x16x128xf32>
    tpu.vector_store %arg11[%c0_83, %c0_84, %c0_85, %c0_86], %92 {strides = array<i32>} : memref<1x16x16x128xf32, #tpu.memory_space<vmem>>, vector<1x16x16x128xf32>,
    return
  }
  func.func @transform_0(%arg0: i32) -> (i32, i32, i32, i32) {
    %c0_i32 = arith.constant 0 : i32
    %c0_i32_0 = arith.constant 0 : i32
    %c0_i32_1 = arith.constant 0 : i32
    %c0_i32_2 = arith.constant 0 : i32
    return %arg0, %c0_i32, %c0_i32_0, %c0_i32_1 : i32, i32, i32, i32
  }
  func.func @transform_1(%arg0: i32) -> (i32, i32) {
    %c0_i32 = arith.constant 0 : i32
    %c0_i32_0 = arith.constant 0 : i32
    %c0_i32_1 = arith.constant 0 : i32
    return %c0_i32, %c0_i32_0 : i32, i32
  }
  func.func @transform_2(%arg0: i32) -> (i32, i32) {
    %c0_i32 = arith.constant 0 : i32
    %c0_i32_0 = arith.constant 0 : i32
    %c0_i32_1 = arith.constant 0 : i32
    return %c0_i32, %c0_i32_0 : i32, i32
  }
  func.func @transform_3(%arg0: i32) -> (i32, i32) {
    %c0_i32 = arith.constant 0 : i32
    %c0_i32_0 = arith.constant 0 : i32
    %c0_i32_1 = arith.constant 0 : i32
    return %c0_i32, %c0_i32_0 : i32, i32
  }
  func.func @transform_4(%arg0: i32) -> (i32, i32) {
    %c0_i32 = arith.constant 0 : i32
    %c0_i32_0 = arith.constant 0 : i32
    %c0_i32_1 = arith.constant 0 : i32
    return %c0_i32, %c0_i32_0 : i32, i32
  }
  func.func @transform_5(%arg0: i32) -> (i32, i32) {
    %c0_i32 = arith.constant 0 : i32
    %c0_i32_0 = arith.constant 0 : i32
    %c0_i32_1 = arith.constant 0 : i32
    return %c0_i32, %c0_i32_0 : i32, i32
  }
  func.func @transform_6(%arg0: i32) -> (i32, i32) {
    %c0_i32 = arith.constant 0 : i32
    %c0_i32_0 = arith.constant 0 : i32
    %c0_i32_1 = arith.constant 0 : i32
    return %c0_i32, %c0_i32_0 : i32, i32
  }
  func.func @transform_7(%arg0: i32) -> (i32, i32) {
    %c0_i32 = arith.constant 0 : i32
    %c0_i32_0 = arith.constant 0 : i32
    %c0_i32_1 = arith.constant 0 : i32
    return %c0_i32, %c0_i32_0 : i32, i32
  }
  func.func @transform_8(%arg0: i32) -> (i32, i32) {
    %c0_i32 = arith.constant 0 : i32
    %c0_i32_0 = arith.constant 0 : i32
    %c0_i32_1 = arith.constant 0 : i32
    return %c0_i32, %c0_i32_0 : i32, i32
  }
  func.func @transform_9(%arg0: i32) -> (i32, i32) {
    %c0_i32 = arith.constant 0 : i32
    %c0_i32_0 = arith.constant 0 : i32
    %c0_i32_1 = arith.constant 0 : i32
    return %c0_i32, %c0_i32_0 : i32, i32
  }
  func.func @transform_10(%arg0: i32) -> (i32, i32, i32, i32) {
    %c0_i32 = arith.constant 0 : i32
    %c0_i32_0 = arith.constant 0 : i32
    %c0_i32_1 = arith.constant 0 : i32
    %c0_i32_2 = arith.constant 0 : i32
    return %arg0, %c0_i32, %c0_i32_0, %c0_i32_1 : i32, i32, i32, i32
  }
}

</mosaic_0001>

<llo_original>
// kernel: tpu_custom_call.1
$region0: #{tpu_custom_call.1}
  #allocation0 [shape = 'u32[]', space=smem, size = 0x4, offset = 0x4, fixed_abs, tag = 'smem constant byte address 0x4 - core index']
  #allocation1 [shape = 'u32[144,128]{1,0:T(1,128)}', space=vmem, size = 0x12000, scoped, tag = 'internal scratch']
  #allocation2 [shape = 'bf16[1,18,18,128]{3,2,1,0:T(8,128)(2,1)}', space=vmem, size = 0x1b000, scoped, tag = 'scratch operand']
  #allocation3 [shape = 'bf16[1,18,18,128]{3,2,1,0:T(8,128)(2,1)}', space=vmem, size = 0x1b000, scoped, tag = 'scratch operand']
  %s0 = inlined_call_operand.hbm [shape: bf16[2,16,16,128], index: 0, kind: input, shape index: {}]
  %s1 = inlined_call_operand.hbm [shape: bf16[1152,128], index: 1, kind: input, shape index: {}]
  %s2 = inlined_call_operand.vmem [shape: f32[1,128], index: 2, kind: input, shape index: {}]
  %s3 = inlined_call_operand.vmem [shape: f32[1,128], index: 3, kind: input, shape index: {}]
  %s4 = inlined_call_operand.hbm [shape: bf16[1152,128], index: 4, kind: input, shape index: {}]
  %s5 = inlined_call_operand.vmem [shape: f32[1,128], index: 5, kind: input, shape index: {}]
  %s6 = inlined_call_operand.vmem [shape: f32[1,128], index: 6, kind: input, shape index: {}]
  %s7 = inlined_call_operand.hbm [shape: bf16[128,128], index: 7, kind: input, shape index: {}]
  %s8 = inlined_call_operand.vmem [shape: f32[1,128], index: 8, kind: input, shape index: {}]
  %s9 = inlined_call_operand.vmem [shape: f32[1,128], index: 9, kind: input, shape index: {}]
  %s10 = inlined_call_operand.hbm [shape: f32[2,16,16,128], index: 10, kind: output, shape index: {}]
  %s11 = sld [smem:[#allocation0]]
  $region89: #{tpu_custom_call.1} parent=0
    _
  %s13 = ssub.s32 1, %s11
  %s14 = scalar_select 0, %s13, %s11
  $region1: #{tpu_custom_call.1} parent=0
    #allocation4 [shape = 'u8[131072]{0}', space=vmem, size = 0x20000, scoped, tag = 'input window, operand 0']
    #allocation5 [shape = 's32[2]{0}', space=sflag, size = 0x8, scoped, tag = 'scoped memory for tpu_custom_call.1']
    #allocation6 [shape = 's32[2]{0}', space=sflag, size = 0x8, scoped, tag = 'scoped memory for tpu_custom_call.1']
    #allocation7 [shape = 'u8[294912]{0}', space=vmem, size = 0x48000, scoped, tag = 'input window, operand 1, single buffered']
    #allocation8 [shape = 's32[1]{0}', space=sflag, size = 0x4, scoped, tag = 'scoped memory for tpu_custom_call.1']
    #allocation9 [shape = 'u8[294912]{0}', space=vmem, size = 0x48000, scoped, tag = 'input window, operand 4, single buffered']
    #allocation10 [shape = 'u8[32768]{0}', space=vmem, size = 0x8000, scoped, tag = 'input window, operand 7, single buffered']
    #allocation11 [shape = 's32[1]{0}', space=sflag, size = 0x4, scoped, tag = 'scoped memory for tpu_custom_call.1']
    #allocation12 [shape = 'u8[262144]{0}', space=vmem, size = 0x40000, scoped, tag = 'output window, operand 0']
    %15 = vsyncpa [#allocation5], 0
    %s16 = scalar_lea.sflag [#allocation5], 1
    %17 = vsyncpa %s16, 0
    %18 = vsyncpa [#allocation8], 0
    %19 = vsyncpa [#allocation11], 0
    %20 = vsyncpa [#allocation6], 0
    %s21 = scalar_lea.sflag [#allocation6], 1
    %22 = vsyncpa %s21, 0
    loop: start=0, step=1, limit=4
    $region2: #{tpu_custom_call.1} parent=1 // loop_pre_header
      _
    $region3: #{tpu_custom_call.1} parent=1 // loop_header
      %s24 = sphi 0, %s28
      %p25 = scmp.ge.s32.totalorder %s24, 4
      %s34 = sphi 0, %s36
      %s37 = sphi 0, %s34
      %s38 = sphi 0, %s37
      %s54 = sphi 0, %s38
      %s58 = sphi 0, %s58
      %s60 = sphi 0, %s58
      %s61 = sphi 0, %s60
      %s75 = sphi 0, %s61
      %s79 = sphi 0, %s79
      %s81 = sphi 0, %s79
      %s82 = sphi 0, %s81
      %s96 = sphi 0, %s82
      %s100 = sphi 0, %s100
      %s102 = sphi 0, %s100
      %s103 = sphi 0, %s102
      %s117 = sphi 0, %s103
      %s121 = sphi 0, %s121
      %s123 = sphi 0, %s121
      %s124 = sphi 0, %s123
      %s138 = sphi 0, %s124
      %s142 = sphi 0, %s142
      %s144 = sphi 0, %s142
      %s145 = sphi 0, %s144
      %s159 = sphi 0, %s145
      %s163 = sphi 0, %s163
      %s165 = sphi 0, %s163
      %s166 = sphi 0, %s165
      %s180 = sphi 0, %s166
      %s184 = sphi 0, %s184
      %s186 = sphi 0, %s184
      %s187 = sphi 0, %s186
      %s201 = sphi 0, %s187
      %s205 = sphi 0, %s205
      %s207 = sphi 0, %s205
      %s208 = sphi 0, %s207
      %s222 = sphi 0, %s208
      %s226 = sphi 0, %s226
      %s228 = sphi 0, %s226
      %s229 = sphi 0, %s228
      %s243 = sphi 0, %s229
      %s249 = sphi 0, %s251
      %s252 = sphi 0, %s249
      %s253 = sphi 0, %s252
      %s269 = sphi 0, %s253
    $region4: #{tpu_custom_call.1} parent=1 // loop_header_branch
      %27 = sbr.rel (%p25) target = $region8
    $region5: #{tpu_custom_call.1} parent=1 // loop_body
      %s29 = ssub.s32 %s24, 1
      %s30 = ssub.s32 %s24, 2
      %s31 = sadd.s32 %s24, 1
      %s32 = ssub.s32 %s24, %s31
      %p33 = scmp.eq.s32.totalorder %s32, 0
      %s35 = sadd.s32 %s34, 1
      %s36 = scalar_select %p33, %s34, %s35
      %p39 = pneg %p33
      %p40 = scmp.eq.s32.totalorder %s24, 1
      %p41 = por %p39, %p40
      %p42 = scmp.ne.s32.totalorder %s34, %s37
      %p43 = scmp.eq.s32.totalorder %s24, 0
      %p44 = por %p42, %p43
      %p45 = scmp.ne.s32.totalorder %s34, %s37
      %p46 = scmp.eq.s32.totalorder %s29, 1
      %p47 = por %p45, %p46
      %p48 = scmp.ne.s32.totalorder %s37, %s38
      %p49 = scmp.eq.s32.totalorder %s29, 0
      %p50 = por %p48, %p49
      %p51 = scmp.ne.s32.totalorder %s37, %s38
      %p52 = scmp.eq.s32.totalorder %s30, 1
      %p53 = por %p51, %p52
      %p55 = scmp.ne.s32.totalorder %s38, %s54
      %p56 = scmp.eq.s32.totalorder %s30, 0
      %p57 = por %p55, %p56
      %s59 = sadd.s32 %s58, 1
      %p62 = scmp.eq.s32.totalorder %s24, 1
      %p63 = scmp.ne.s32.totalorder %s58, %s60
      %p64 = scmp.eq.s32.totalorder %s24, 0
      %p65 = por %p63, %p64
      %p66 = scmp.ne.s32.totalorder %s58, %s60
      %p67 = scmp.eq.s32.totalorder %s29, 1
      %p68 = por %p66, %p67
      %p69 = scmp.ne.s32.totalorder %s60, %s61
      %p70 = scmp.eq.s32.totalorder %s29, 0
      %p71 = por %p69, %p70
      %p72 = scmp.ne.s32.totalorder %s60, %s61
      %p73 = scmp.eq.s32.totalorder %s30, 1
      %p74 = por %p72, %p73
      %p76 = scmp.ne.s32.totalorder %s61, %s75
      %p77 = scmp.eq.s32.totalorder %s30, 0
      %p78 = por %p76, %p77
      %s80 = sadd.s32 %s79, 1
      %p83 = scmp.eq.s32.totalorder %s24, 1
      %p84 = scmp.ne.s32.totalorder %s79, %s81
      %p85 = scmp.eq.s32.totalorder %s24, 0
      %p86 = por %p84, %p85
      %p87 = scmp.ne.s32.totalorder %s79, %s81
      %p88 = scmp.eq.s32.totalorder %s29, 1
      %p89 = por %p87, %p88
      %p90 = scmp.ne.s32.totalorder %s81, %s82
      %p91 = scmp.eq.s32.totalorder %s29, 0
      %p92 = por %p90, %p91
      %p93 = scmp.ne.s32.totalorder %s81, %s82
      %p94 = scmp.eq.s32.totalorder %s30, 1
      %p95 = por %p93, %p94
      %p97 = scmp.ne.s32.totalorder %s82, %s96
      %p98 = scmp.eq.s32.totalorder %s30, 0
      %p99 = por %p97, %p98
      %s101 = sadd.s32 %s100, 1
      %p104 = scmp.eq.s32.totalorder %s24, 1
      %p105 = scmp.ne.s32.totalorder %s100, %s102
      %p106 = scmp.eq.s32.totalorder %s24, 0
      %p107 = por %p105, %p106
      %p108 = scmp.ne.s32.totalorder %s100, %s102
      %p109 = scmp.eq.s32.totalorder %s29, 1
      %p110 = por %p108, %p109
      %p111 = scmp.ne.s32.totalorder %s102, %s103
      %p112 = scmp.eq.s32.totalorder %s29, 0
      %p113 = por %p111, %p112
      %p114 = scmp.ne.s32.totalorder %s102, %s103
      %p115 = scmp.eq.s32.totalorder %s30, 1
      %p116 = por %p114, %p115
      %p118 = scmp.ne.s32.totalorder %s103, %s117
      %p119 = scmp.eq.s32.totalorder %s30, 0
      %p120 = por %p118, %p119
      %s122 = sadd.s32 %s121, 1
      %p125 = scmp.eq.s32.totalorder %s24, 1
      %p126 = scmp.ne.s32.totalorder %s121, %s123
      %p127 = scmp.eq.s32.totalorder %s24, 0
      %p128 = por %p126, %p127
      %p129 = scmp.ne.s32.totalorder %s121, %s123
      %p130 = scmp.eq.s32.totalorder %s29, 1
      %p131 = por %p129, %p130
      %p132 = scmp.ne.s32.totalorder %s123, %s124
      %p133 = scmp.eq.s32.totalorder %s29, 0
      %p134 = por %p132, %p133
      %p135 = scmp.ne.s32.totalorder %s123, %s124
      %p136 = scmp.eq.s32.totalorder %s30, 1
      %p137 = por %p135, %p136
      %p139 = scmp.ne.s32.totalorder %s124, %s138
      %p140 = scmp.eq.s32.totalorder %s30, 0
      %p141 = por %p139, %p140
      %s143 = sadd.s32 %s142, 1
      %p146 = scmp.eq.s32.totalorder %s24, 1
      %p147 = scmp.ne.s32.totalorder %s142, %s144
      %p148 = scmp.eq.s32.totalorder %s24, 0
      %p149 = por %p147, %p148
      %p150 = scmp.ne.s32.totalorder %s142, %s144
      %p151 = scmp.eq.s32.totalorder %s29, 1
      %p152 = por %p150, %p151
      %p153 = scmp.ne.s32.totalorder %s144, %s145
      %p154 = scmp.eq.s32.totalorder %s29, 0
      %p155 = por %p153, %p154
      %p156 = scmp.ne.s32.totalorder %s144, %s145
      %p157 = scmp.eq.s32.totalorder %s30, 1
      %p158 = por %p156, %p157
      %p160 = scmp.ne.s32.totalorder %s145, %s159
      %p161 = scmp.eq.s32.totalorder %s30, 0
      %p162 = por %p160, %p161
      %s164 = sadd.s32 %s163, 1
      %p167 = scmp.eq.s32.totalorder %s24, 1
      %p168 = scmp.ne.s32.totalorder %s163, %s165
      %p169 = scmp.eq.s32.totalorder %s24, 0
      %p170 = por %p168, %p169
      %p171 = scmp.ne.s32.totalorder %s163, %s165
      %p172 = scmp.eq.s32.totalorder %s29, 1
      %p173 = por %p171, %p172
      %p174 = scmp.ne.s32.totalorder %s165, %s166
      %p175 = scmp.eq.s32.totalorder %s29, 0
      %p176 = por %p174, %p175
      %p177 = scmp.ne.s32.totalorder %s165, %s166
      %p178 = scmp.eq.s32.totalorder %s30, 1
      %p179 = por %p177, %p178
      %p181 = scmp.ne.s32.totalorder %s166, %s180
      %p182 = scmp.eq.s32.totalorder %s30, 0
      %p183 = por %p181, %p182
      %s185 = sadd.s32 %s184, 1
      %p188 = scmp.eq.s32.totalorder %s24, 1
      %p189 = scmp.ne.s32.totalorder %s184, %s186
      %p190 = scmp.eq.s32.totalorder %s24, 0
      %p191 = por %p189, %p190
      %p192 = scmp.ne.s32.totalorder %s184, %s186
      %p193 = scmp.eq.s32.totalorder %s29, 1
      %p194 = por %p192, %p193
      %p195 = scmp.ne.s32.totalorder %s186, %s187
      %p196 = scmp.eq.s32.totalorder %s29, 0
      %p197 = por %p195, %p196
      %p198 = scmp.ne.s32.totalorder %s186, %s187
      %p199 = scmp.eq.s32.totalorder %s30, 1
      %p200 = por %p198, %p199
      %p202 = scmp.ne.s32.totalorder %s187, %s201
      %p203 = scmp.eq.s32.totalorder %s30, 0
      %p204 = por %p202, %p203
      %s206 = sadd.s32 %s205, 1
      %p209 = scmp.eq.s32.totalorder %s24, 1
      %p210 = scmp.ne.s32.totalorder %s205, %s207
      %p211 = scmp.eq.s32.totalorder %s24, 0
      %p212 = por %p210, %p211
      %p213 = scmp.ne.s32.totalorder %s205, %s207
      %p214 = scmp.eq.s32.totalorder %s29, 1
      %p215 = por %p213, %p214
      %p216 = scmp.ne.s32.totalorder %s207, %s208
      %p217 = scmp.eq.s32.totalorder %s29, 0
      %p218 = por %p216, %p217
      %p219 = scmp.ne.s32.totalorder %s207, %s208
      %p220 = scmp.eq.s32.totalorder %s30, 1
      %p221 = por %p219, %p220
      %p223 = scmp.ne.s32.totalorder %s208, %s222
      %p224 = scmp.eq.s32.totalorder %s30, 0
      %p225 = por %p223, %p224
      %s227 = sadd.s32 %s226, 1
      %p230 = scmp.eq.s32.totalorder %s24, 1
      %p231 = scmp.ne.s32.totalorder %s226, %s228
      %p232 = scmp.eq.s32.totalorder %s24, 0
      %p233 = por %p231, %p232
      %p234 = scmp.ne.s32.totalorder %s226, %s228
      %p235 = scmp.eq.s32.totalorder %s29, 1
      %p236 = por %p234, %p235
      %p237 = scmp.ne.s32.totalorder %s228, %s229
      %p238 = scmp.eq.s32.totalorder %s29, 0
      %p239 = por %p237, %p238
      %p240 = scmp.ne.s32.totalorder %s228, %s229
      %p241 = scmp.eq.s32.totalorder %s30, 1
      %p242 = por %p240, %p241
      %p244 = scmp.ne.s32.totalorder %s229, %s243
      %p245 = scmp.eq.s32.totalorder %s30, 0
      %p246 = por %p244, %p245
      %s247 = ssub.s32 %s24, %s31
      %p248 = scmp.eq.s32.totalorder %s247, 0
      %s250 = sadd.s32 %s249, 1
      %s251 = scalar_select %p248, %s249, %s250
      %p254 = pneg %p248
      %p255 = scmp.eq.s32.totalorder %s24, 1
      %p256 = por %p254, %p255
      %p257 = scmp.ne.s32.totalorder %s249, %s252
      %p258 = scmp.eq.s32.totalorder %s24, 0
      %p259 = por %p257, %p258
      %p260 = scmp.ne.s32.totalorder %s249, %s252
      %p261 = scmp.eq.s32.totalorder %s29, 1
      %p262 = por %p260, %p261
      %p263 = scmp.ne.s32.totalorder %s252, %s253
      %p264 = scmp.eq.s32.totalorder %s29, 0
      %p265 = por %p263, %p264
      %p266 = scmp.ne.s32.totalorder %s252, %s253
      %p267 = scmp.eq.s32.totalorder %s30, 1
      %p268 = por %p266, %p267
      %p270 = scmp.ne.s32.totalorder %s253, %s269
      %p271 = scmp.eq.s32.totalorder %s30, 0
      %p272 = por %p270, %p271
      %p273 = scmp.le.s32.totalorder 1, %s24
      %p274 = scmp.lt.s32.totalorder %s24, 3
      %p275 = pnand %p273, %p274
      %p276 = pneg %p275
      // Predicated region
      $region9: #{tpu_custom_call.1} parent=5 // pred_check
        _
      $region10: #{tpu_custom_call.1} parent=5 // pred_check_branch
        %278 = sbr.rel (%p275) target = $region12
      $region11: #{tpu_custom_call.1} parent=5 // pred_region
        %s279 = ssub.s32 %s24, 1
        // Predicated region
        $region13: #{tpu_custom_call.1} parent=11 // pred_check
          %p280 = pneg %p71
        $region14: #{tpu_custom_call.1} parent=11 // pred_check_branch
          %282 = sbr.rel (%p280) target = $region16
        $region15: #{tpu_custom_call.1} parent=11 // pred_region
          %s284 = ssub.s32 9216, 9216
          %285 = vsyncadd [#allocation8], %s284
          %s286 = sshll.u32 [#allocation7], 4
          %s287 = int_to_ptr.vmem [resolvable:$true] %s286
          %292 = dma.hbm_to_vmem [thread:$0]  %s1, 9216, %s287, [#allocation8], 64, 64, 4
        $region16: #{tpu_custom_call.1} parent=11 // pred_fallthru
          _
        // Predicated region
        $region17: #{tpu_custom_call.1} parent=11 // pred_check
          %p293 = pneg %p92
        $region18: #{tpu_custom_call.1} parent=11 // pred_check_branch
          %295 = sbr.rel (%p293) target = $region20
        $region19: #{tpu_custom_call.1} parent=11 // pred_region
          _
        $region20: #{tpu_custom_call.1} parent=11 // pred_fallthru
          _
        // Predicated region
        $region21: #{tpu_custom_call.1} parent=11 // pred_check
          %p296 = pneg %p113
        $region22: #{tpu_custom_call.1} parent=11 // pred_check_branch
          %298 = sbr.rel (%p296) target = $region24
        $region23: #{tpu_custom_call.1} parent=11 // pred_region
          _
        $region24: #{tpu_custom_call.1} parent=11 // pred_fallthru
          _
        // Predicated region
        $region25: #{tpu_custom_call.1} parent=11 // pred_check
          %p299 = pneg %p134
        $region26: #{tpu_custom_call.1} parent=11 // pred_check_branch
          %301 = sbr.rel (%p299) target = $region28
        $region27: #{tpu_custom_call.1} parent=11 // pred_region
          %s303 = ssub.s32 9216, 9216
          %304 = vsyncadd [#allocation8], %s303
          %s305 = sshll.u32 [#allocation9], 4
          %s306 = int_to_ptr.vmem [resolvable:$true] %s305
          %311 = dma.hbm_to_vmem [thread:$0]  %s4, 9216, %s306, [#allocation8], 64, 64, 4
        $region28: #{tpu_custom_call.1} parent=11 // pred_fallthru
          _
        // Predicated region
        $region29: #{tpu_custom_call.1} parent=11 // pred_check
          %p312 = pneg %p155
        $region30: #{tpu_custom_call.1} parent=11 // pred_check_branch
          %314 = sbr.rel (%p312) target = $region32
        $region31: #{tpu_custom_call.1} parent=11 // pred_region
          _
        $region32: #{tpu_custom_call.1} parent=11 // pred_fallthru
          _
        // Predicated region
        $region33: #{tpu_custom_call.1} parent=11 // pred_check
          %p315 = pneg %p176
        $region34: #{tpu_custom_call.1} parent=11 // pred_check_branch
          %317 = sbr.rel (%p315) target = $region36
        $region35: #{tpu_custom_call.1} parent=11 // pred_region
          _
        $region36: #{tpu_custom_call.1} parent=11 // pred_fallthru
          _
        // Predicated region
        $region37: #{tpu_custom_call.1} parent=11 // pred_check
          %p318 = pneg %p197
        $region38: #{tpu_custom_call.1} parent=11 // pred_check_branch
          %320 = sbr.rel (%p318) target = $region40
        $region39: #{tpu_custom_call.1} parent=11 // pred_region
          %s322 = ssub.s32 1024, 1024
          %323 = vsyncadd [#allocation11], %s322
          %s324 = sshll.u32 [#allocation10], 4
          %s325 = int_to_ptr.vmem [resolvable:$true] %s324
          %330 = dma.hbm_to_vmem [thread:$0]  %s7, 1024, %s325, [#allocation11], 64, 64, 4
        $region40: #{tpu_custom_call.1} parent=11 // pred_fallthru
          _
        // Predicated region
        $region41: #{tpu_custom_call.1} parent=11 // pred_check
          %p331 = pneg %p218
        $region42: #{tpu_custom_call.1} parent=11 // pred_check_branch
          %333 = sbr.rel (%p331) target = $region44
        $region43: #{tpu_custom_call.1} parent=11 // pred_region
          _
        $region44: #{tpu_custom_call.1} parent=11 // pred_fallthru
          _
        // Predicated region
        $region45: #{tpu_custom_call.1} parent=11 // pred_check
          %p334 = pneg %p239
        $region46: #{tpu_custom_call.1} parent=11 // pred_check_branch
          %336 = sbr.rel (%p334) target = $region48
        $region47: #{tpu_custom_call.1} parent=11 // pred_region
          _
        $region48: #{tpu_custom_call.1} parent=11 // pred_fallthru
          _
      $region12: #{tpu_custom_call.1} parent=5 // pred_fallthru
        _
      %p337 = scmp.lt.s32.totalorder %s24, 2
      // Predicated region
      $region49: #{tpu_custom_call.1} parent=5 // pred_check
        %p338 = pneg %p337
      $region50: #{tpu_custom_call.1} parent=5 // pred_check_branch
        %340 = sbr.rel (%p338) target = $region52
      $region51: #{tpu_custom_call.1} parent=5 // pred_region
        // Predicated region
        $region53: #{tpu_custom_call.1} parent=51 // pred_check
          %p341 = pneg %p44
        $region54: #{tpu_custom_call.1} parent=51 // pred_check_branch
          %343 = sbr.rel (%p341) target = $region56
        $region55: #{tpu_custom_call.1} parent=51 // pred_region
          %s344 = sand.u32 %s34, 1
          %s345 = scalar_lea.sflag [#allocation5], %s344
          %s346 = sand.u32 %s34, 1
          %s347 = smul.addr %s346, 128
          %s348 = scalar_lea.vmem [#allocation4], %s347
          %s350 = ssub.s32 2048, 2048
          %351 = vsyncadd %s345, %s350
          %s352 = smul.addr %s24, 32
          %s353 = smul.addr %s352, 64
          %s354 = scalar_lea.hbm %s0, %s353
          %s355 = sshll.u32 %s348, 4
          %s356 = int_to_ptr.vmem [resolvable:$true] %s355
          %361 = dma.hbm_to_vmem [thread:$0]  %s354, 2048, %s356, %s345, 64, 64, 4
        $region56: #{tpu_custom_call.1} parent=51 // pred_fallthru
          _
      $region52: #{tpu_custom_call.1} parent=5 // pred_fallthru
        _
      %p362 = scmp.le.s32.totalorder 1, %s24
      %p363 = scmp.lt.s32.totalorder %s24, 3
      %p364 = pnand %p362, %p363
      %p365 = pneg %p364
      // Predicated region
      $region57: #{tpu_custom_call.1} parent=5 // pred_check
        _
      $region58: #{tpu_custom_call.1} parent=5 // pred_check_branch
        %367 = sbr.rel (%p364) target = $region60
      $region59: #{tpu_custom_call.1} parent=5 // pred_region
        %s368 = ssub.s32 %s24, 1
        %s369 = sand.u32 %s37, 1
        %s370 = scalar_lea.sflag [#allocation5], %s369
        %s371 = sand.u32 %s37, 1
        %s372 = smul.addr %s371, 128
        %s373 = scalar_lea.vmem [#allocation4], %s372
        // Predicated region
        $region61: #{tpu_custom_call.1} parent=59 // pred_check
          %p374 = pneg %p50
        $region62: #{tpu_custom_call.1} parent=59 // pred_check_branch
          %376 = sbr.rel (%p374) target = $region64
        $region63: #{tpu_custom_call.1} parent=59 // pred_region
          %377 = dma.done %s370, 2048
        $region64: #{tpu_custom_call.1} parent=59 // pred_fallthru
          _
        // Predicated region
        $region65: #{tpu_custom_call.1} parent=59 // pred_check
          %p378 = pneg %p71
        $region66: #{tpu_custom_call.1} parent=59 // pred_check_branch
          %380 = sbr.rel (%p378) target = $region68
        $region67: #{tpu_custom_call.1} parent=59 // pred_region
          %381 = dma.done [#allocation8], 9216
        $region68: #{tpu_custom_call.1} parent=59 // pred_fallthru
          _
        // Predicated region
        $region69: #{tpu_custom_call.1} parent=59 // pred_check
          %p382 = pneg %p134
        $region70: #{tpu_custom_call.1} parent=59 // pred_check_branch
          %384 = sbr.rel (%p382) target = $region72
        $region71: #{tpu_custom_call.1} parent=59 // pred_region
          %385 = dma.done [#allocation8], 9216
        $region72: #{tpu_custom_call.1} parent=59 // pred_fallthru
          _
        // Predicated region
        $region73: #{tpu_custom_call.1} parent=59 // pred_check
          %p386 = pneg %p197
        $region74: #{tpu_custom_call.1} parent=59 // pred_check_branch
          %388 = sbr.rel (%p386) target = $region76
        $region75: #{tpu_custom_call.1} parent=59 // pred_region
          %389 = dma.done [#allocation11], 1024
        $region76: #{tpu_custom_call.1} parent=59 // pred_fallthru
          _
        %s390 = sand.u32 %s37, 1
        %s391 = scalar_lea.sflag [#allocation5], %s390
        %s392 = sand.u32 %s37, 1
        %s393 = smul.addr %s392, 128
        %s394 = scalar_lea.vmem [#allocation4], %s393
        %p395 = pneg %p50
        %p396 = pneg %p47
        %p397 = pneg %p71
        %p398 = pneg %p68
        %p399 = pneg %p92
        %p400 = pneg %p89
        %p401 = pneg %p113
        %p402 = pneg %p110
        %p403 = pneg %p134
        %p404 = pneg %p131
        %p405 = pneg %p155
        %p406 = pneg %p152
        %p407 = pneg %p176
        %p408 = pneg %p173
        %p409 = pneg %p197
        %p410 = pneg %p194
        %p411 = pneg %p218
        %p412 = pneg %p215
        %p413 = pneg %p239
        %p414 = pneg %p236
        %p415 = pneg %p265
        %p416 = pneg %p262
        %s417 = sand.u32 %s252, 1
        %s418 = scalar_lea.sflag [#allocation6], %s417
        %s419 = sand.u32 %s252, 1
        %s420 = smul.addr %s419, 256
        %s421 = scalar_lea.vmem [#allocation12], %s420
        %423 = vst [vmem:[#allocation2] sm:$0xf] 0
        %424 = vst [vmem:[#allocation2 + $0x4] sm:$0xf] 0
        %425 = vst [vmem:[#allocation2 + $0x8] sm:$0x1] 0
        %s426 = scalar_lea.vmem [#allocation2], 204
        %427 = vst [vmem:[%s426] sm:$0xf] 0
        %428 = vst [vmem:[%s426 + $0x4] sm:$0xf] 0
        %429 = vst [vmem:[%s426 + $0x8] sm:$0x1] 0
        %s430 = scalar_lea.vmem [#allocation2], 12
        %vm431 = vcmask 1040384
        %vm432 = vsmask.f32 256
        %vm433 = vmand %vm431, %vm432
        %v434 = vld [vmem:[%s430] sm:$0x1]
        %v435 = vsel %vm433, 0, %v434
        %436 = vst [vmem:[%s430] sm:$0x1] %v435
        %v437 = vld [vmem:[%s430 + $0xc] sm:$0x1]
        %v438 = vsel %vm433, 0, %v437
        %439 = vst [vmem:[%s430 + $0xc] sm:$0x1] %v438
        %v440 = vld [vmem:[%s430 + $0x18] sm:$0x1]
        %v441 = vsel %vm433, 0, %v440
        %442 = vst [vmem:[%s430 + $0x18] sm:$0x1] %v441
        %v443 = vld [vmem:[%s430 + $0x24] sm:$0x1]
        %v444 = vsel %vm433, 0, %v443
        %445 = vst [vmem:[%s430 + $0x24] sm:$0x1] %v444
        %v446 = vld [vmem:[%s430 + $0x30] sm:$0x1]
        %v447 = vsel %vm433, 0, %v446
        %448 = vst [vmem:[%s430 + $0x30] sm:$0x1] %v447
        %v449 = vld [vmem:[%s430 + $0x3c] sm:$0x1]
        %v450 = vsel %vm433, 0, %v449
        %451 = vst [vmem:[%s430 + $0x3c] sm:$0x1] %v450
        %v452 = vld [vmem:[%s430 + $0x48] sm:$0x1]
        %v453 = vsel %vm433, 0, %v452
        %454 = vst [vmem:[%s430 + $0x48] sm:$0x1] %v453
        %v455 = vld [vmem:[%s430 + $0x54] sm:$0x1]
        %v456 = vsel %vm433, 0, %v455
        %457 = vst [vmem:[%s430 + $0x54] sm:$0x1] %v456
        %v458 = vld [vmem:[%s430 + $0x60] sm:$0x1]
        %v459 = vsel %vm433, 0, %v458
        %460 = vst [vmem:[%s430 + $0x60] sm:$0x1] %v459
        %v461 = vld [vmem:[%s430 + $0x6c] sm:$0x1]
        %v462 = vsel %vm433, 0, %v461
        %463 = vst [vmem:[%s430 + $0x6c] sm:$0x1] %v462
        %v464 = vld [vmem:[%s430 + $0x78] sm:$0x1]
        %v465 = vsel %vm433, 0, %v464
        %466 = vst [vmem:[%s430 + $0x78] sm:$0x1] %v465
        %v467 = vld [vmem:[%s430 + $0x84] sm:$0x1]
        %v468 = vsel %vm433, 0, %v467
        %469 = vst [vmem:[%s430 + $0x84] sm:$0x1] %v468
        %v470 = vld [vmem:[%s430 + $0x90] sm:$0x1]
        %v471 = vsel %vm433, 0, %v470
        %472 = vst [vmem:[%s430 + $0x90] sm:$0x1] %v471
        %v473 = vld [vmem:[%s430 + $0x9c] sm:$0x1]
        %v474 = vsel %vm433, 0, %v473
        %475 = vst [vmem:[%s430 + $0x9c] sm:$0x1] %v474
        %v476 = vld [vmem:[%s430 + $0xa8] sm:$0x1]
        %v477 = vsel %vm433, 0, %v476
        %478 = vst [vmem:[%s430 + $0xa8] sm:$0x1] %v477
        %v479 = vld [vmem:[%s430 + $0xb4] sm:$0x1]
        %v480 = vsel %vm433, 0, %v479
        %481 = vst [vmem:[%s430 + $0xb4] sm:$0x1] %v480
        %vm482 = vsmask.f32 7938
        %vm483 = vmand %vm431, %vm482
        %v484 = vld [vmem:[%s430 + $0x8] sm:$0x1]
        %v485 = vsel %vm483, 0, %v484
        %486 = vst [vmem:[%s430 + $0x8] sm:$0x1] %v485
        %v487 = vld [vmem:[%s430 + $0x14] sm:$0x1]
        %v488 = vsel %vm483, 0, %v487
        %489 = vst [vmem:[%s430 + $0x14] sm:$0x1] %v488
        %v490 = vld [vmem:[%s430 + $0x20] sm:$0x1]
        %v491 = vsel %vm483, 0, %v490
        %492 = vst [vmem:[%s430 + $0x20] sm:$0x1] %v491
        %v493 = vld [vmem:[%s430 + $0x2c] sm:$0x1]
        %v494 = vsel %vm483, 0, %v493
        %495 = vst [vmem:[%s430 + $0x2c] sm:$0x1] %v494
        %v496 = vld [vmem:[%s430 + $0x38] sm:$0x1]
        %v497 = vsel %vm483, 0, %v496
        %498 = vst [vmem:[%s430 + $0x38] sm:$0x1] %v497
        %v499 = vld [vmem:[%s430 + $0x44] sm:$0x1]
        %v500 = vsel %vm483, 0, %v499
        %501 = vst [vmem:[%s430 + $0x44] sm:$0x1] %v500
        %v502 = vld [vmem:[%s430 + $0x50] sm:$0x1]
        %v503 = vsel %vm483, 0, %v502
        %504 = vst [vmem:[%s430 + $0x50] sm:$0x1] %v503
        %v505 = vld [vmem:[%s430 + $0x5c] sm:$0x1]
        %v506 = vsel %vm483, 0, %v505
        %507 = vst [vmem:[%s430 + $0x5c] sm:$0x1] %v506
        %v508 = vld [vmem:[%s430 + $0x68] sm:$0x1]
        %v509 = vsel %vm483, 0, %v508
        %510 = vst [vmem:[%s430 + $0x68] sm:$0x1] %v509
        %v511 = vld [vmem:[%s430 + $0x74] sm:$0x1]
        %v512 = vsel %vm483, 0, %v511
        %513 = vst [vmem:[%s430 + $0x74] sm:$0x1] %v512
        %v514 = vld [vmem:[%s430 + $0x80] sm:$0x1]
        %v515 = vsel %vm483, 0, %v514
        %516 = vst [vmem:[%s430 + $0x80] sm:$0x1] %v515
        %v517 = vld [vmem:[%s430 + $0x8c] sm:$0x1]
        %v518 = vsel %vm483, 0, %v517
        %519 = vst [vmem:[%s430 + $0x8c] sm:$0x1] %v518
        %v520 = vld [vmem:[%s430 + $0x98] sm:$0x1]
        %v521 = vsel %vm483, 0, %v520
        %522 = vst [vmem:[%s430 + $0x98] sm:$0x1] %v521
        %v523 = vld [vmem:[%s430 + $0xa4] sm:$0x1]
        %v524 = vsel %vm483, 0, %v523
        %525 = vst [vmem:[%s430 + $0xa4] sm:$0x1] %v524
        %v526 = vld [vmem:[%s430 + $0xb0] sm:$0x1]
        %v527 = vsel %vm483, 0, %v526
        %528 = vst [vmem:[%s430 + $0xb0] sm:$0x1] %v527
        %v529 = vld [vmem:[%s430 + $0xbc] sm:$0x1]
        %v530 = vsel %vm483, 0, %v529
        %531 = vst [vmem:[%s430 + $0xbc] sm:$0x1] %v530
        %v532 = vld [vmem:[%s373] sm:$0xf]
        %v533 = vld [vmem:[%s373 + $0x4] sm:$0xf]
        %v534 = vld [vmem:[%s373 + $0x8] sm:$0xf]
        %v535 = vld [vmem:[%s373 + $0xc] sm:$0xf]
        %v536 = vld [vmem:[%s373 + $0x10] sm:$0xf]
        %v537 = vld [vmem:[%s373 + $0x14] sm:$0xf]
        %v538 = vld [vmem:[%s373 + $0x18] sm:$0xf]
        %v539 = vld [vmem:[%s373 + $0x1c] sm:$0xf]
        %v540 = vld [vmem:[%s373 + $0x20] sm:$0xf]
        %v541 = vld [vmem:[%s373 + $0x24] sm:$0xf]
        %v542 = vld [vmem:[%s373 + $0x28] sm:$0xf]
        %v543 = vld [vmem:[%s373 + $0x2c] sm:$0xf]
        %v544 = vld [vmem:[%s373 + $0x30] sm:$0xf]
        %v545 = vld [vmem:[%s373 + $0x34] sm:$0xf]
        %v546 = vld [vmem:[%s373 + $0x38] sm:$0xf]
        %v547 = vld [vmem:[%s373 + $0x3c] sm:$0xf]
        %v548 = vld [vmem:[%s373 + $0x40] sm:$0xf]
        %v549 = vld [vmem:[%s373 + $0x44] sm:$0xf]
        %v550 = vld [vmem:[%s373 + $0x48] sm:$0xf]
        %v551 = vld [vmem:[%s373 + $0x4c] sm:$0xf]
        %v552 = vld [vmem:[%s373 + $0x50] sm:$0xf]
        %v553 = vld [vmem:[%s373 + $0x54] sm:$0xf]
        %v554 = vld [vmem:[%s373 + $0x58] sm:$0xf]
        %v555 = vld [vmem:[%s373 + $0x5c] sm:$0xf]
        %v556 = vld [vmem:[%s373 + $0x60] sm:$0xf]
        %v557 = vld [vmem:[%s373 + $0x64] sm:$0xf]
        %v558 = vld [vmem:[%s373 + $0x68] sm:$0xf]
        %v559 = vld [vmem:[%s373 + $0x6c] sm:$0xf]
        %v560 = vld [vmem:[%s373 + $0x70] sm:$0xf]
        %v561 = vld [vmem:[%s373 + $0x74] sm:$0xf]
        %v562 = vld [vmem:[%s373 + $0x78] sm:$0xf]
        %v563 = vld [vmem:[%s373 + $0x7c] sm:$0xf]
        %vm564 = vsmask.f32 4368
        %vm565 = vmor %vm432, %vm564
        %v567 = vshrl.u32 %v532, 16
        %v569 = vrot.slane %v567, 7
        %v570 = vshll.u32 %v532, 16
        %v572 = vor.u32 %v569, %v570
        %v573 = vrot.slane %v569, 4
        %v575 = vshrl.u32 %v533, 16
        %v577 = vrot.slane %v575, 7
        %v578 = vshll.u32 %v533, 16
        %v580 = vor.u32 %v577, %v578
        %v581 = vsel %vm565, %v573, %v580
        %v582 = vrot.slane %v577, 4
        %v584 = vshrl.u32 %v534, 16
        %v586 = vrot.slane %v584, 7
        %v587 = vshll.u32 %v534, 16
        %v589 = vor.u32 %v586, %v587
        %v590 = vrot.slane %v586, 4
        %v592 = vshrl.u32 %v535, 16
        %v594 = vrot.slane %v592, 7
        %v595 = vshll.u32 %v535, 16
        %v597 = vor.u32 %v594, %v595
        %v598 = vsel %vm565, %v590, %v597
        %v599 = vrot.slane %v594, 4
        %v601 = vshrl.u32 %v536, 16
        %v603 = vrot.slane %v601, 7
        %v604 = vshll.u32 %v536, 16
        %v606 = vor.u32 %v603, %v604
        %v607 = vrot.slane %v603, 4
        %v609 = vshrl.u32 %v537, 16
        %v611 = vrot.slane %v609, 7
        %v612 = vshll.u32 %v537, 16
        %v614 = vor.u32 %v611, %v612
        %v615 = vsel %vm565, %v607, %v614
        %v616 = vrot.slane %v611, 4
        %v618 = vshrl.u32 %v538, 16
        %v620 = vrot.slane %v618, 7
        %v621 = vshll.u32 %v538, 16
        %v623 = vor.u32 %v620, %v621
        %v624 = vrot.slane %v620, 4
        %v626 = vshrl.u32 %v539, 16
        %v628 = vrot.slane %v626, 7
        %v629 = vshll.u32 %v539, 16
        %v631 = vor.u32 %v628, %v629
        %v632 = vsel %vm565, %v624, %v631
        %v633 = vrot.slane %v628, 4
        %v635 = vshrl.u32 %v540, 16
        %v637 = vrot.slane %v635, 7
        %v638 = vshll.u32 %v540, 16
        %v640 = vor.u32 %v637, %v638
        %v641 = vrot.slane %v637, 4
        %v643 = vshrl.u32 %v541, 16
        %v645 = vrot.slane %v643, 7
        %v646 = vshll.u32 %v541, 16
        %v648 = vor.u32 %v645, %v646
        %v649 = vsel %vm565, %v641, %v648
        %v650 = vrot.slane %v645, 4
        %v652 = vshrl.u32 %v542, 16
        %v654 = vrot.slane %v652, 7
        %v655 = vshll.u32 %v542, 16
        %v657 = vor.u32 %v654, %v655
        %v658 = vrot.slane %v654, 4
        %v660 = vshrl.u32 %v543, 16
        %v662 = vrot.slane %v660, 7
        %v663 = vshll.u32 %v543, 16
        %v665 = vor.u32 %v662, %v663
        %v666 = vsel %vm565, %v658, %v665
        %v667 = vrot.slane %v662, 4
        %v669 = vshrl.u32 %v544, 16
        %v671 = vrot.slane %v669, 7
        %v672 = vshll.u32 %v544, 16
        %v674 = vor.u32 %v671, %v672
        %v675 = vrot.slane %v671, 4
        %v677 = vshrl.u32 %v545, 16
        %v679 = vrot.slane %v677, 7
        %v680 = vshll.u32 %v545, 16
        %v682 = vor.u32 %v679, %v680
        %v683 = vsel %vm565, %v675, %v682
        %v684 = vrot.slane %v679, 4
        %v686 = vshrl.u32 %v546, 16
        %v688 = vrot.slane %v686, 7
        %v689 = vshll.u32 %v546, 16
        %v691 = vor.u32 %v688, %v689
        %v692 = vrot.slane %v688, 4
        %v694 = vshrl.u32 %v547, 16
        %v696 = vrot.slane %v694, 7
        %v697 = vshll.u32 %v547, 16
        %v699 = vor.u32 %v696, %v697
        %v700 = vsel %vm565, %v692, %v699
        %v701 = vrot.slane %v696, 4
        %v703 = vshrl.u32 %v548, 16
        %v705 = vrot.slane %v703, 7
        %v706 = vshll.u32 %v548, 16
        %v708 = vor.u32 %v705, %v706
        %v709 = vrot.slane %v705, 4
        %v711 = vshrl.u32 %v549, 16
        %v713 = vrot.slane %v711, 7
        %v714 = vshll.u32 %v549, 16
        %v716 = vor.u32 %v713, %v714
        %v717 = vsel %vm565, %v709, %v716
        %v718 = vrot.slane %v713, 4
        %v720 = vshrl.u32 %v550, 16
        %v722 = vrot.slane %v720, 7
        %v723 = vshll.u32 %v550, 16
        %v725 = vor.u32 %v722, %v723
        %v726 = vrot.slane %v722, 4
        %v728 = vshrl.u32 %v551, 16
        %v730 = vrot.slane %v728, 7
        %v731 = vshll.u32 %v551, 16
        %v733 = vor.u32 %v730, %v731
        %v734 = vsel %vm565, %v726, %v733
        %v735 = vrot.slane %v730, 4
        %v737 = vshrl.u32 %v552, 16
        %v739 = vrot.slane %v737, 7
        %v740 = vshll.u32 %v552, 16
        %v742 = vor.u32 %v739, %v740
        %v743 = vrot.slane %v739, 4
        %v745 = vshrl.u32 %v553, 16
        %v747 = vrot.slane %v745, 7
        %v748 = vshll.u32 %v553, 16
        %v750 = vor.u32 %v747, %v748
        %v751 = vsel %vm565, %v743, %v750
        %v752 = vrot.slane %v747, 4
        %v754 = vshrl.u32 %v554, 16
        %v756 = vrot.slane %v754, 7
        %v757 = vshll.u32 %v554, 16
        %v759 = vor.u32 %v756, %v757
        %v760 = vrot.slane %v756, 4
        %v762 = vshrl.u32 %v555, 16
        %v764 = vrot.slane %v762, 7
        %v765 = vshll.u32 %v555, 16
        %v767 = vor.u32 %v764, %v765
        %v768 = vsel %vm565, %v760, %v767
        %v769 = vrot.slane %v764, 4
        %v771 = vshrl.u32 %v556, 16
        %v773 = vrot.slane %v771, 7
        %v774 = vshll.u32 %v556, 16
        %v776 = vor.u32 %v773, %v774
        %v777 = vrot.slane %v773, 4
        %v779 = vshrl.u32 %v557, 16
        %v781 = vrot.slane %v779, 7
        %v782 = vshll.u32 %v557, 16
        %v784 = vor.u32 %v781, %v782
        %v785 = vsel %vm565, %v777, %v784
        %v786 = vrot.slane %v781, 4
        %v788 = vshrl.u32 %v558, 16
        %v790 = vrot.slane %v788, 7
        %v791 = vshll.u32 %v558, 16
        %v793 = vor.u32 %v790, %v791
        %v794 = vrot.slane %v790, 4
        %v796 = vshrl.u32 %v559, 16
        %v798 = vrot.slane %v796, 7
        %v799 = vshll.u32 %v559, 16
        %v801 = vor.u32 %v798, %v799
        %v802 = vsel %vm565, %v794, %v801
        %v803 = vrot.slane %v798, 4
        %v805 = vshrl.u32 %v560, 16
        %v807 = vrot.slane %v805, 7
        %v808 = vshll.u32 %v560, 16
        %v810 = vor.u32 %v807, %v808
        %v811 = vrot.slane %v807, 4
        %v813 = vshrl.u32 %v561, 16
        %v815 = vrot.slane %v813, 7
        %v816 = vshll.u32 %v561, 16
        %v818 = vor.u32 %v815, %v816
        %v819 = vsel %vm565, %v811, %v818
        %v820 = vrot.slane %v815, 4
        %v822 = vshrl.u32 %v562, 16
        %v824 = vrot.slane %v822, 7
        %v825 = vshll.u32 %v562, 16
        %v827 = vor.u32 %v824, %v825
        %v828 = vrot.slane %v824, 4
        %v830 = vshrl.u32 %v563, 16
        %v832 = vrot.slane %v830, 7
        %v833 = vshll.u32 %v563, 16
        %v835 = vor.u32 %v832, %v833
        %v836 = vsel %vm565, %v828, %v835
        %v837 = vrot.slane %v832, 4
        %vm886 = vcmask 1043456
        %vm887 = vmand %vm886, %vm482
        %v888 = vld [vmem:[%s430] sm:$0xf]
        %v889 = vsel %vm887, %v572, %v888
        %890 = vst [vmem:[%s430] sm:$0xf] %v889
        %891 = vst [vmem:[%s430 + $0x4] sm:$0xf] %v581
        %v892 = vld [vmem:[%s430 + $0x8] sm:$0x1]
        %v893 = vsel %vm433, %v582, %v892
        %894 = vst [vmem:[%s430 + $0x8] sm:$0x1] %v893
        %v895 = vld [vmem:[%s430 + $0xc] sm:$0xf]
        %v896 = vsel %vm887, %v589, %v895
        %897 = vst [vmem:[%s430 + $0xc] sm:$0xf] %v896
        %898 = vst [vmem:[%s430 + $0x10] sm:$0xf] %v598
        %v899 = vld [vmem:[%s430 + $0x14] sm:$0x1]
        %v900 = vsel %vm433, %v599, %v899
        %901 = vst [vmem:[%s430 + $0x14] sm:$0x1] %v900
        %v902 = vld [vmem:[%s430 + $0x18] sm:$0xf]
        %v903 = vsel %vm887, %v606, %v902
        %904 = vst [vmem:[%s430 + $0x18] sm:$0xf] %v903
        %905 = vst [vmem:[%s430 + $0x1c] sm:$0xf] %v615
        %v906 = vld [vmem:[%s430 + $0x20] sm:$0x1]
        %v907 = vsel %vm433, %v616, %v906
        %908 = vst [vmem:[%s430 + $0x20] sm:$0x1] %v907
        %v909 = vld [vmem:[%s430 + $0x24] sm:$0xf]
        %v910 = vsel %vm887, %v623, %v909
        %911 = vst [vmem:[%s430 + $0x24] sm:$0xf] %v910
        %912 = vst [vmem:[%s430 + $0x28] sm:$0xf] %v632
        %v913 = vld [vmem:[%s430 + $0x2c] sm:$0x1]
        %v914 = vsel %vm433, %v633, %v913
        %915 = vst [vmem:[%s430 + $0x2c] sm:$0x1] %v914
        %v916 = vld [vmem:[%s430 + $0x30] sm:$0xf]
        %v917 = vsel %vm887, %v640, %v916
        %918 = vst [vmem:[%s430 + $0x30] sm:$0xf] %v917
        %919 = vst [vmem:[%s430 + $0x34] sm:$0xf] %v649
        %v920 = vld [vmem:[%s430 + $0x38] sm:$0x1]
        %v921 = vsel %vm433, %v650, %v920
        %922 = vst [vmem:[%s430 + $0x38] sm:$0x1] %v921
        %v923 = vld [vmem:[%s430 + $0x3c] sm:$0xf]
        %v924 = vsel %vm887, %v657, %v923
        %925 = vst [vmem:[%s430 + $0x3c] sm:$0xf] %v924
        %926 = vst [vmem:[%s430 + $0x40] sm:$0xf] %v666
        %v927 = vld [vmem:[%s430 + $0x44] sm:$0x1]
        %v928 = vsel %vm433, %v667, %v927
        %929 = vst [vmem:[%s430 + $0x44] sm:$0x1] %v928
        %v930 = vld [vmem:[%s430 + $0x48] sm:$0xf]
        %v931 = vsel %vm887, %v674, %v930
        %932 = vst [vmem:[%s430 + $0x48] sm:$0xf] %v931
        %933 = vst [vmem:[%s430 + $0x4c] sm:$0xf] %v683
        %v934 = vld [vmem:[%s430 + $0x50] sm:$0x1]
        %v935 = vsel %vm433, %v684, %v934
        %936 = vst [vmem:[%s430 + $0x50] sm:$0x1] %v935
        %v937 = vld [vmem:[%s430 + $0x54] sm:$0xf]
        %v938 = vsel %vm887, %v691, %v937
        %939 = vst [vmem:[%s430 + $0x54] sm:$0xf] %v938
        %940 = vst [vmem:[%s430 + $0x58] sm:$0xf] %v700
        %v941 = vld [vmem:[%s430 + $0x5c] sm:$0x1]
        %v942 = vsel %vm433, %v701, %v941
        %943 = vst [vmem:[%s430 + $0x5c] sm:$0x1] %v942
        %v944 = vld [vmem:[%s430 + $0x60] sm:$0xf]
        %v945 = vsel %vm887, %v708, %v944
        %946 = vst [vmem:[%s430 + $0x60] sm:$0xf] %v945
        %947 = vst [vmem:[%s430 + $0x64] sm:$0xf] %v717
        %v948 = vld [vmem:[%s430 + $0x68] sm:$0x1]
        %v949 = vsel %vm433, %v718, %v948
        %950 = vst [vmem:[%s430 + $0x68] sm:$0x1] %v949
        %v951 = vld [vmem:[%s430 + $0x6c] sm:$0xf]
        %v952 = vsel %vm887, %v725, %v951
        %953 = vst [vmem:[%s430 + $0x6c] sm:$0xf] %v952
        %954 = vst [vmem:[%s430 + $0x70] sm:$0xf] %v734
        %v955 = vld [vmem:[%s430 + $0x74] sm:$0x1]
        %v956 = vsel %vm433, %v735, %v955
        %957 = vst [vmem:[%s430 + $0x74] sm:$0x1] %v956
        %v958 = vld [vmem:[%s430 + $0x78] sm:$0xf]
        %v959 = vsel %vm887, %v742, %v958
        %960 = vst [vmem:[%s430 + $0x78] sm:$0xf] %v959
        %961 = vst [vmem:[%s430 + $0x7c] sm:$0xf] %v751
        %v962 = vld [vmem:[%s430 + $0x80] sm:$0x1]
        %v963 = vsel %vm433, %v752, %v962
        %964 = vst [vmem:[%s430 + $0x80] sm:$0x1] %v963
        %v965 = vld [vmem:[%s430 + $0x84] sm:$0xf]
        %v966 = vsel %vm887, %v759, %v965
        %967 = vst [vmem:[%s430 + $0x84] sm:$0xf] %v966
        %968 = vst [vmem:[%s430 + $0x88] sm:$0xf] %v768
        %v969 = vld [vmem:[%s430 + $0x8c] sm:$0x1]
        %v970 = vsel %vm433, %v769, %v969
        %971 = vst [vmem:[%s430 + $0x8c] sm:$0x1] %v970
        %v972 = vld [vmem:[%s430 + $0x90] sm:$0xf]
        %v973 = vsel %vm887, %v776, %v972
        %974 = vst [vmem:[%s430 + $0x90] sm:$0xf] %v973
        %975 = vst [vmem:[%s430 + $0x94] sm:$0xf] %v785
        %v976 = vld [vmem:[%s430 + $0x98] sm:$0x1]
        %v977 = vsel %vm433, %v786, %v976
        %978 = vst [vmem:[%s430 + $0x98] sm:$0x1] %v977
        %v979 = vld [vmem:[%s430 + $0x9c] sm:$0xf]
        %v980 = vsel %vm887, %v793, %v979
        %981 = vst [vmem:[%s430 + $0x9c] sm:$0xf] %v980
        %982 = vst [vmem:[%s430 + $0xa0] sm:$0xf] %v802
        %v983 = vld [vmem:[%s430 + $0xa4] sm:$0x1]
        %v984 = vsel %vm433, %v803, %v983
        %985 = vst [vmem:[%s430 + $0xa4] sm:$0x1] %v984
        %v986 = vld [vmem:[%s430 + $0xa8] sm:$0xf]
        %v987 = vsel %vm887, %v810, %v986
        %988 = vst [vmem:[%s430 + $0xa8] sm:$0xf] %v987
        %989 = vst [vmem:[%s430 + $0xac] sm:$0xf] %v819
        %v990 = vld [vmem:[%s430 + $0xb0] sm:$0x1]
        %v991 = vsel %vm433, %v820, %v990
        %992 = vst [vmem:[%s430 + $0xb0] sm:$0x1] %v991
        %v993 = vld [vmem:[%s430 + $0xb4] sm:$0xf]
        %v994 = vsel %vm887, %v827, %v993
        %995 = vst [vmem:[%s430 + $0xb4] sm:$0xf] %v994
        %996 = vst [vmem:[%s430 + $0xb8] sm:$0xf] %v836
        %v997 = vld [vmem:[%s430 + $0xbc] sm:$0x1]
        %v998 = vsel %vm433, %v837, %v997
        %999 = vst [vmem:[%s430 + $0xbc] sm:$0x1] %v998
        %v1000 = vld [vmem:[#allocation2] sm:$0xf]
        %v1001 = vld [vmem:[#allocation2 + $0x4] sm:$0xf]
        %v1002 = vld [vmem:[#allocation2 + $0x8] sm:$0x1]
        %v1003 = vld [vmem:[#allocation2 + $0xc] sm:$0xf]
        %v1004 = vld [vmem:[#allocation2 + $0x10] sm:$0xf]
        %v1005 = vld [vmem:[#allocation2 + $0x14] sm:$0x1]
        %v1006 = vld [vmem:[#allocation2 + $0x18] sm:$0xf]
        %v1007 = vld [vmem:[#allocation2 + $0x1c] sm:$0xf]
        %v1008 = vld [vmem:[#allocation2 + $0x20] sm:$0x1]
        %v1009 = vld [vmem:[#allocation2 + $0x24] sm:$0xf]
        %v1010 = vld [vmem:[#allocation2 + $0x28] sm:$0xf]
        %v1011 = vld [vmem:[#allocation2 + $0x2c] sm:$0x1]
        %v1012 = vld [vmem:[#allocation2 + $0x30] sm:$0xf]
        %v1013 = vld [vmem:[#allocation2 + $0x34] sm:$0xf]
        %v1014 = vld [vmem:[#allocation2 + $0x38] sm:$0x1]
        %v1015 = vld [vmem:[#allocation2 + $0x3c] sm:$0xf]
        %v1016 = vld [vmem:[#allocation2 + $0x40] sm:$0xf]
        %v1017 = vld [vmem:[#allocation2 + $0x44] sm:$0x1]
        %v1018 = vld [vmem:[#allocation2 + $0x48] sm:$0xf]
        %v1019 = vld [vmem:[#allocation2 + $0x4c] sm:$0xf]
        %v1020 = vld [vmem:[#allocation2 + $0x50] sm:$0x1]
        %v1021 = vld [vmem:[#allocation2 + $0x54] sm:$0xf]
        %v1022 = vld [vmem:[#allocation2 + $0x58] sm:$0xf]
        %v1023 = vld [vmem:[#allocation2 + $0x5c] sm:$0x1]
        %v1024 = vld [vmem:[#allocation2 + $0x60] sm:$0xf]
        %v1025 = vld [vmem:[#allocation2 + $0x64] sm:$0xf]
        %v1026 = vld [vmem:[#allocation2 + $0x68] sm:$0x1]
        %v1027 = vld [vmem:[#allocation2 + $0x6c] sm:$0xf]
        %v1028 = vld [vmem:[#allocation2 + $0x70] sm:$0xf]
        %v1029 = vld [vmem:[#allocation2 + $0x74] sm:$0x1]
        %v1030 = vld [vmem:[#allocation2 + $0x78] sm:$0xf]
        %v1031 = vld [vmem:[#allocation2 + $0x7c] sm:$0xf]
        %v1032 = vld [vmem:[#allocation2 + $0x80] sm:$0x1]
        %v1033 = vld [vmem:[#allocation2 + $0x84] sm:$0xf]
        %v1034 = vld [vmem:[#allocation2 + $0x88] sm:$0xf]
        %v1035 = vld [vmem:[#allocation2 + $0x8c] sm:$0x1]
        %v1036 = vld [vmem:[#allocation2 + $0x90] sm:$0xf]
        %v1037 = vld [vmem:[#allocation2 + $0x94] sm:$0xf]
        %v1038 = vld [vmem:[#allocation2 + $0x98] sm:$0x1]
        %v1039 = vld [vmem:[#allocation2 + $0x9c] sm:$0xf]
        %v1040 = vld [vmem:[#allocation2 + $0xa0] sm:$0xf]
        %v1041 = vld [vmem:[#allocation2 + $0xa4] sm:$0x1]
        %v1042 = vld [vmem:[#allocation2 + $0xa8] sm:$0xf]
        %v1043 = vld [vmem:[#allocation2 + $0xac] sm:$0xf]
        %v1044 = vld [vmem:[#allocation2 + $0xb0] sm:$0x1]
        %v1045 = vld [vmem:[#allocation2 + $0xb4] sm:$0xf]
        %v1046 = vld [vmem:[#allocation2 + $0xb8] sm:$0xf]
        %v1047 = vld [vmem:[#allocation2 + $0xbc] sm:$0x1]
        %v1048 = vld [vmem:[#allocation2 + $0xc0] sm:$0xf]
        %v1049 = vld [vmem:[#allocation2 + $0xc4] sm:$0xf]
        %v1050 = vld [vmem:[#allocation2 + $0xc8] sm:$0x1]
        %v1051 = vld [vmem:[#allocation2 + $0xcc] sm:$0xf]
        %v1052 = vld [vmem:[#allocation2 + $0xd0] sm:$0xf]
        %v1053 = vld [vmem:[#allocation2 + $0xd4] sm:$0x1]
        %vm1054 = vsmask.f32 3328
        %vm1055 = vsmask.f32 7440
        %vm1056 = vmor %vm1054, %vm1055
        %v1058 = vshrl.u32 %v1000, 16
        %v1060 = vrot.slane %v1058, 4
        %v1061 = vshll.u32 %v1000, 16
        %v1063 = vrot.slane %v1061, 5
        %v1064 = vor.u32 %v1060, %v1063
        %v1065 = vrot.slane %v1064, 4
        %v1067 = vshll.u32 %v1001, 16
        %v1069 = vrot.slane %v1067, 5
        %v1070 = vsel %vm1056, %v1065, %v1069
        %v1071 = vshrl.u32 %v1001, 16
        %v1073 = vrot.slane %v1071, 4
        %v1074 = vor.u32 %v1073, %v1069
        %v1075 = vrot.slane %v1074, 4
        %v1077 = vshll.u32 %v1002, 16
        %v1079 = vrot.slane %v1077, 5
        %v1080 = vsel %vm1056, %v1075, %v1079
        %v1082 = vshrl.u32 %v1003, 16
        %v1084 = vrot.slane %v1082, 4
        %v1085 = vshll.u32 %v1003, 16
        %v1087 = vrot.slane %v1085, 5
        %v1088 = vor.u32 %v1084, %v1087
        %v1089 = vrot.slane %v1088, 4
        %v1091 = vshll.u32 %v1004, 16
        %v1093 = vrot.slane %v1091, 5
        %v1094 = vsel %vm1056, %v1089, %v1093
        %v1095 = vshrl.u32 %v1004, 16
        %v1097 = vrot.slane %v1095, 4
        %v1098 = vor.u32 %v1097, %v1093
        %v1099 = vrot.slane %v1098, 4
        %v1101 = vshll.u32 %v1005, 16
        %v1103 = vrot.slane %v1101, 5
        %v1104 = vsel %vm1056, %v1099, %v1103
        %v1106 = vshrl.u32 %v1006, 16
        %v1108 = vrot.slane %v1106, 4
        %v1109 = vshll.u32 %v1006, 16
        %v1111 = vrot.slane %v1109, 5
        %v1112 = vor.u32 %v1108, %v1111
        %v1113 = vrot.slane %v1112, 4
        %v1115 = vshll.u32 %v1007, 16
        %v1117 = vrot.slane %v1115, 5
        %v1118 = vsel %vm1056, %v1113, %v1117
        %v1119 = vshrl.u32 %v1007, 16
        %v1121 = vrot.slane %v1119, 4
        %v1122 = vor.u32 %v1121, %v1117
        %v1123 = vrot.slane %v1122, 4
        %v1125 = vshll.u32 %v1008, 16
        %v1127 = vrot.slane %v1125, 5
        %v1128 = vsel %vm1056, %v1123, %v1127
        %v1130 = vshrl.u32 %v1009, 16
        %v1132 = vrot.slane %v1130, 4
        %v1133 = vshll.u32 %v1009, 16
        %v1135 = vrot.slane %v1133, 5
        %v1136 = vor.u32 %v1132, %v1135
        %v1137 = vrot.slane %v1136, 4
        %v1139 = vshll.u32 %v1010, 16
        %v1141 = vrot.slane %v1139, 5
        %v1142 = vsel %vm1056, %v1137, %v1141
        %v1143 = vshrl.u32 %v1010, 16
        %v1145 = vrot.slane %v1143, 4
        %v1146 = vor.u32 %v1145, %v1141
        %v1147 = vrot.slane %v1146, 4
        %v1149 = vshll.u32 %v1011, 16
        %v1151 = vrot.slane %v1149, 5
        %v1152 = vsel %vm1056, %v1147, %v1151
        %v1154 = vshrl.u32 %v1012, 16
        %v1156 = vrot.slane %v1154, 4
        %v1157 = vshll.u32 %v1012, 16
        %v1159 = vrot.slane %v1157, 5
        %v1160 = vor.u32 %v1156, %v1159
        %v1161 = vrot.slane %v1160, 4
        %v1163 = vshll.u32 %v1013, 16
        %v1165 = vrot.slane %v1163, 5
        %v1166 = vsel %vm1056, %v1161, %v1165
        %v1167 = vshrl.u32 %v1013, 16
        %v1169 = vrot.slane %v1167, 4
        %v1170 = vor.u32 %v1169, %v1165
        %v1171 = vrot.slane %v1170, 4
        %v1173 = vshll.u32 %v1014, 16
        %v1175 = vrot.slane %v1173, 5
        %v1176 = vsel %vm1056, %v1171, %v1175
        %v1178 = vshrl.u32 %v1015, 16
        %v1180 = vrot.slane %v1178, 4
        %v1181 = vshll.u32 %v1015, 16
        %v1183 = vrot.slane %v1181, 5
        %v1184 = vor.u32 %v1180, %v1183
        %v1185 = vrot.slane %v1184, 4
        %v1187 = vshll.u32 %v1016, 16
        %v1189 = vrot.slane %v1187, 5
        %v1190 = vsel %vm1056, %v1185, %v1189
        %v1191 = vshrl.u32 %v1016, 16
        %v1193 = vrot.slane %v1191, 4
        %v1194 = vor.u32 %v1193, %v1189
        %v1195 = vrot.slane %v1194, 4
        %v1197 = vshll.u32 %v1017, 16
        %v1199 = vrot.slane %v1197, 5
        %v1200 = vsel %vm1056, %v1195, %v1199
        %v1202 = vshrl.u32 %v1018, 16
        %v1204 = vrot.slane %v1202, 4
        %v1205 = vshll.u32 %v1018, 16
        %v1207 = vrot.slane %v1205, 5
        %v1208 = vor.u32 %v1204, %v1207
        %v1209 = vrot.slane %v1208, 4
        %v1211 = vshll.u32 %v1019, 16
        %v1213 = vrot.slane %v1211, 5
        %v1214 = vsel %vm1056, %v1209, %v1213
        %v1215 = vshrl.u32 %v1019, 16
        %v1217 = vrot.slane %v1215, 4
        %v1218 = vor.u32 %v1217, %v1213
        %v1219 = vrot.slane %v1218, 4
        %v1221 = vshll.u32 %v1020, 16
        %v1223 = vrot.slane %v1221, 5
        %v1224 = vsel %vm1056, %v1219, %v1223
        %v1226 = vshrl.u32 %v1021, 16
        %v1228 = vrot.slane %v1226, 4
        %v1229 = vshll.u32 %v1021, 16
        %v1231 = vrot.slane %v1229, 5
        %v1232 = vor.u32 %v1228, %v1231
        %v1233 = vrot.slane %v1232, 4
        %v1235 = vshll.u32 %v1022, 16
        %v1237 = vrot.slane %v1235, 5
        %v1238 = vsel %vm1056, %v1233, %v1237
        %v1239 = vshrl.u32 %v1022, 16
        %v1241 = vrot.slane %v1239, 4
        %v1242 = vor.u32 %v1241, %v1237
        %v1243 = vrot.slane %v1242, 4
        %v1245 = vshll.u32 %v1023, 16
        %v1247 = vrot.slane %v1245, 5
        %v1248 = vsel %vm1056, %v1243, %v1247
        %v1250 = vshrl.u32 %v1024, 16
        %v1252 = vrot.slane %v1250, 4
        %v1253 = vshll.u32 %v1024, 16
        %v1255 = vrot.slane %v1253, 5
        %v1256 = vor.u32 %v1252, %v1255
        %v1257 = vrot.slane %v1256, 4
        %v1259 = vshll.u32 %v1025, 16
        %v1261 = vrot.slane %v1259, 5
        %v1262 = vsel %vm1056, %v1257, %v1261
        %v1263 = vshrl.u32 %v1025, 16
        %v1265 = vrot.slane %v1263, 4
        %v1266 = vor.u32 %v1265, %v1261
        %v1267 = vrot.slane %v1266, 4
        %v1269 = vshll.u32 %v1026, 16
        %v1271 = vrot.slane %v1269, 5
        %v1272 = vsel %vm1056, %v1267, %v1271
        %v1274 = vshrl.u32 %v1027, 16
        %v1276 = vrot.slane %v1274, 4
        %v1277 = vshll.u32 %v1027, 16
        %v1279 = vrot.slane %v1277, 5
        %v1280 = vor.u32 %v1276, %v1279
        %v1281 = vrot.slane %v1280, 4
        %v1283 = vshll.u32 %v1028, 16
        %v1285 = vrot.slane %v1283, 5
        %v1286 = vsel %vm1056, %v1281, %v1285
        %v1287 = vshrl.u32 %v1028, 16
        %v1289 = vrot.slane %v1287, 4
        %v1290 = vor.u32 %v1289, %v1285
        %v1291 = vrot.slane %v1290, 4
        %v1293 = vshll.u32 %v1029, 16
        %v1295 = vrot.slane %v1293, 5
        %v1296 = vsel %vm1056, %v1291, %v1295
        %v1298 = vshrl.u32 %v1030, 16
        %v1300 = vrot.slane %v1298, 4
        %v1301 = vshll.u32 %v1030, 16
        %v1303 = vrot.slane %v1301, 5
        %v1304 = vor.u32 %v1300, %v1303
        %v1305 = vrot.slane %v1304, 4
        %v1307 = vshll.u32 %v1031, 16
        %v1309 = vrot.slane %v1307, 5
        %v1310 = vsel %vm1056, %v1305, %v1309
        %v1311 = vshrl.u32 %v1031, 16
        %v1313 = vrot.slane %v1311, 4
        %v1314 = vor.u32 %v1313, %v1309
        %v1315 = vrot.slane %v1314, 4
        %v1317 = vshll.u32 %v1032, 16
        %v1319 = vrot.slane %v1317, 5
        %v1320 = vsel %vm1056, %v1315, %v1319
        %v1322 = vshrl.u32 %v1033, 16
        %v1324 = vrot.slane %v1322, 4
        %v1325 = vshll.u32 %v1033, 16
        %v1327 = vrot.slane %v1325, 5
        %v1328 = vor.u32 %v1324, %v1327
        %v1329 = vrot.slane %v1328, 4
        %v1331 = vshll.u32 %v1034, 16
        %v1333 = vrot.slane %v1331, 5
        %v1334 = vsel %vm1056, %v1329, %v1333
        %v1335 = vshrl.u32 %v1034, 16
        %v1337 = vrot.slane %v1335, 4
        %v1338 = vor.u32 %v1337, %v1333
        %v1339 = vrot.slane %v1338, 4
        %v1341 = vshll.u32 %v1035, 16
        %v1343 = vrot.slane %v1341, 5
        %v1344 = vsel %vm1056, %v1339, %v1343
        %v1346 = vshrl.u32 %v1036, 16
        %v1348 = vrot.slane %v1346, 4
        %v1349 = vshll.u32 %v1036, 16
        %v1351 = vrot.slane %v1349, 5
        %v1352 = vor.u32 %v1348, %v1351
        %v1353 = vrot.slane %v1352, 4
        %v1355 = vshll.u32 %v1037, 16
        %v1357 = vrot.slane %v1355, 5
        %v1358 = vsel %vm1056, %v1353, %v1357
        %v1359 = vshrl.u32 %v1037, 16
        %v1361 = vrot.slane %v1359, 4
        %v1362 = vor.u32 %v1361, %v1357
        %v1363 = vrot.slane %v1362, 4
        %v1365 = vshll.u32 %v1038, 16
        %v1367 = vrot.slane %v1365, 5
        %v1368 = vsel %vm1056, %v1363, %v1367
        %v1370 = vshrl.u32 %v1039, 16
        %v1372 = vrot.slane %v1370, 4
        %v1373 = vshll.u32 %v1039, 16
        %v1375 = vrot.slane %v1373, 5
        %v1376 = vor.u32 %v1372, %v1375
        %v1377 = vrot.slane %v1376, 4
        %v1379 = vshll.u32 %v1040, 16
        %v1381 = vrot.slane %v1379, 5
        %v1382 = vsel %vm1056, %v1377, %v1381
        %v1383 = vshrl.u32 %v1040, 16
        %v1385 = vrot.slane %v1383, 4
        %v1386 = vor.u32 %v1385, %v1381
        %v1387 = vrot.slane %v1386, 4
        %v1389 = vshll.u32 %v1041, 16
        %v1391 = vrot.slane %v1389, 5
        %v1392 = vsel %vm1056, %v1387, %v1391
        %v1394 = vshrl.u32 %v1042, 16
        %v1396 = vrot.slane %v1394, 4
        %v1397 = vshll.u32 %v1042, 16
        %v1399 = vrot.slane %v1397, 5
        %v1400 = vor.u32 %v1396, %v1399
        %v1401 = vrot.slane %v1400, 4
        %v1403 = vshll.u32 %v1043, 16
        %v1405 = vrot.slane %v1403, 5
        %v1406 = vsel %vm1056, %v1401, %v1405
        %v1407 = vshrl.u32 %v1043, 16
        %v1409 = vrot.slane %v1407, 4
        %v1410 = vor.u32 %v1409, %v1405
        %v1411 = vrot.slane %v1410, 4
        %v1413 = vshll.u32 %v1044, 16
        %v1415 = vrot.slane %v1413, 5
        %v1416 = vsel %vm1056, %v1411, %v1415
        %v1418 = vshrl.u32 %v1045, 16
        %v1420 = vrot.slane %v1418, 4
        %v1421 = vshll.u32 %v1045, 16
        %v1423 = vrot.slane %v1421, 5
        %v1424 = vor.u32 %v1420, %v1423
        %v1425 = vrot.slane %v1424, 4
        %v1427 = vshll.u32 %v1046, 16
        %v1429 = vrot.slane %v1427, 5
        %v1430 = vsel %vm1056, %v1425, %v1429
        %v1431 = vshrl.u32 %v1046, 16
        %v1433 = vrot.slane %v1431, 4
        %v1434 = vor.u32 %v1433, %v1429
        %v1435 = vrot.slane %v1434, 4
        %v1437 = vshll.u32 %v1047, 16
        %v1439 = vrot.slane %v1437, 5
        %v1440 = vsel %vm1056, %v1435, %v1439
        %vm1489 = vcmask 1042432
        %vm1490 = vcmask 1046532
        %vm1491 = vmor %vm1489, %vm1490
        %v1492 = vrot.slane %v1000, 5
        %v1493 = vrot.slane %v1492, 4
        %v1494 = vrot.slane %v1001, 5
        %v1495 = vsel %vm1491, %v1493, %v1494
        %v1496 = vrot.slane %v1494, 4
        %v1497 = vrot.slane %v1002, 5
        %v1498 = vsel %vm1491, %v1496, %v1497
        %v1499 = vrot.slane %v1003, 5
        %v1500 = vrot.slane %v1499, 4
        %v1501 = vrot.slane %v1004, 5
        %v1502 = vsel %vm1491, %v1500, %v1501
        %v1503 = vrot.slane %v1501, 4
        %v1504 = vrot.slane %v1005, 5
        %v1505 = vsel %vm1491, %v1503, %v1504
        %v1506 = vrot.slane %v1006, 5
        %v1507 = vrot.slane %v1506, 4
        %v1508 = vrot.slane %v1007, 5
        %v1509 = vsel %vm1491, %v1507, %v1508
        %v1510 = vrot.slane %v1508, 4
        %v1511 = vrot.slane %v1008, 5
        %v1512 = vsel %vm1491, %v1510, %v1511
        %v1513 = vrot.slane %v1009, 5
        %v1514 = vrot.slane %v1513, 4
        %v1515 = vrot.slane %v1010, 5
        %v1516 = vsel %vm1491, %v1514, %v1515
        %v1517 = vrot.slane %v1515, 4
        %v1518 = vrot.slane %v1011, 5
        %v1519 = vsel %vm1491, %v1517, %v1518
        %v1520 = vrot.slane %v1012, 5
        %v1521 = vrot.slane %v1520, 4
        %v1522 = vrot.slane %v1013, 5
        %v1523 = vsel %vm1491, %v1521, %v1522
        %v1524 = vrot.slane %v1522, 4
        %v1525 = vrot.slane %v1014, 5
        %v1526 = vsel %vm1491, %v1524, %v1525
        %v1527 = vrot.slane %v1015, 5
        %v1528 = vrot.slane %v1527, 4
        %v1529 = vrot.slane %v1016, 5
        %v1530 = vsel %vm1491, %v1528, %v1529
        %v1531 = vrot.slane %v1529, 4
        %v1532 = vrot.slane %v1017, 5
        %v1533 = vsel %vm1491, %v1531, %v1532
        %v1534 = vrot.slane %v1018, 5
        %v1535 = vrot.slane %v1534, 4
        %v1536 = vrot.slane %v1019, 5
        %v1537 = vsel %vm1491, %v1535, %v1536
        %v1538 = vrot.slane %v1536, 4
        %v1539 = vrot.slane %v1020, 5
        %v1540 = vsel %vm1491, %v1538, %v1539
        %v1541 = vrot.slane %v1021, 5
        %v1542 = vrot.slane %v1541, 4
        %v1543 = vrot.slane %v1022, 5
        %v1544 = vsel %vm1491, %v1542, %v1543
        %v1545 = vrot.slane %v1543, 4
        %v1546 = vrot.slane %v1023, 5
        %v1547 = vsel %vm1491, %v1545, %v1546
        %v1548 = vrot.slane %v1024, 5
        %v1549 = vrot.slane %v1548, 4
        %v1550 = vrot.slane %v1025, 5
        %v1551 = vsel %vm1491, %v1549, %v1550
        %v1552 = vrot.slane %v1550, 4
        %v1553 = vrot.slane %v1026, 5
        %v1554 = vsel %vm1491, %v1552, %v1553
        %v1555 = vrot.slane %v1027, 5
        %v1556 = vrot.slane %v1555, 4
        %v1557 = vrot.slane %v1028, 5
        %v1558 = vsel %vm1491, %v1556, %v1557
        %v1559 = vrot.slane %v1557, 4
        %v1560 = vrot.slane %v1029, 5
        %v1561 = vsel %vm1491, %v1559, %v1560
        %v1562 = vrot.slane %v1030, 5
        %v1563 = vrot.slane %v1562, 4
        %v1564 = vrot.slane %v1031, 5
        %v1565 = vsel %vm1491, %v1563, %v1564
        %v1566 = vrot.slane %v1564, 4
        %v1567 = vrot.slane %v1032, 5
        %v1568 = vsel %vm1491, %v1566, %v1567
        %v1569 = vrot.slane %v1033, 5
        %v1570 = vrot.slane %v1569, 4
        %v1571 = vrot.slane %v1034, 5
        %v1572 = vsel %vm1491, %v1570, %v1571
        %v1573 = vrot.slane %v1571, 4
        %v1574 = vrot.slane %v1035, 5
        %v1575 = vsel %vm1491, %v1573, %v1574
        %v1576 = vrot.slane %v1036, 5
        %v1577 = vrot.slane %v1576, 4
        %v1578 = vrot.slane %v1037, 5
        %v1579 = vsel %vm1491, %v1577, %v1578
        %v1580 = vrot.slane %v1578, 4
        %v1581 = vrot.slane %v1038, 5
        %v1582 = vsel %vm1491, %v1580, %v1581
        %v1583 = vrot.slane %v1039, 5
        %v1584 = vrot.slane %v1583, 4
        %v1585 = vrot.slane %v1040, 5
        %v1586 = vsel %vm1491, %v1584, %v1585
        %v1587 = vrot.slane %v1585, 4
        %v1588 = vrot.slane %v1041, 5
        %v1589 = vsel %vm1491, %v1587, %v1588
        %v1590 = vrot.slane %v1042, 5
        %v1591 = vrot.slane %v1590, 4
        %v1592 = vrot.slane %v1043, 5
        %v1593 = vsel %vm1491, %v1591, %v1592
        %v1594 = vrot.slane %v1592, 4
        %v1595 = vrot.slane %v1044, 5
        %v1596 = vsel %vm1491, %v1594, %v1595
        %v1597 = vrot.slane %v1045, 5
        %v1598 = vrot.slane %v1597, 4
        %v1599 = vrot.slane %v1046, 5
        %v1600 = vsel %vm1491, %v1598, %v1599
        %v1601 = vrot.slane %v1599, 4
        %v1602 = vrot.slane %v1047, 5
        %v1603 = vsel %vm1491, %v1601, %v1602
        %v1605 = vshrl.u32 %v1048, 16
        %v1607 = vrot.slane %v1605, 4
        %v1608 = vshll.u32 %v1048, 16
        %v1610 = vrot.slane %v1608, 5
        %v1611 = vor.u32 %v1607, %v1610
        %v1612 = vrot.slane %v1611, 4
        %v1614 = vshll.u32 %v1049, 16
        %v1616 = vrot.slane %v1614, 5
        %v1617 = vsel %vm1056, %v1612, %v1616
        %v1618 = vshrl.u32 %v1049, 16
        %v1620 = vrot.slane %v1618, 4
        %v1621 = vor.u32 %v1620, %v1616
        %v1622 = vrot.slane %v1621, 4
        %v1624 = vshll.u32 %v1050, 16
        %v1626 = vrot.slane %v1624, 5
        %v1627 = vsel %vm1056, %v1622, %v1626
        %v1631 = vrot.slane %v1048, 5
        %v1632 = vrot.slane %v1631, 4
        %v1633 = vrot.slane %v1049, 5
        %v1634 = vsel %vm1491, %v1632, %v1633
        %v1635 = vrot.slane %v1633, 4
        %v1636 = vrot.slane %v1050, 5
        %v1637 = vsel %vm1491, %v1635, %v1636
        %v1639 = vshrl.u32 %v1051, 16
        %v1641 = vrot.slane %v1639, 4
        %v1642 = vshll.u32 %v1051, 16
        %v1644 = vrot.slane %v1642, 5
        %v1645 = vor.u32 %v1641, %v1644
        %v1646 = vrot.slane %v1645, 4
        %v1648 = vshll.u32 %v1052, 16
        %v1650 = vrot.slane %v1648, 5
        %v1651 = vsel %vm1056, %v1646, %v1650
        %v1652 = vshrl.u32 %v1052, 16
        %v1654 = vrot.slane %v1652, 4
        %v1655 = vor.u32 %v1654, %v1650
        %v1656 = vrot.slane %v1655, 4
        %v1658 = vshll.u32 %v1053, 16
        %v1660 = vrot.slane %v1658, 5
        %v1661 = vsel %vm1056, %v1656, %v1660
        %v1665 = vrot.slane %v1051, 5
        %v1666 = vrot.slane %v1665, 4
        %v1667 = vrot.slane %v1052, 5
        %v1668 = vsel %vm1491, %v1666, %v1667
        %v1669 = vrot.slane %v1667, 4
        %v1670 = vrot.slane %v1053, 5
        %v1671 = vsel %vm1491, %v1669, %v1670
        %v1672 = vunpack.c.l.b16 %v1000
        %v1673 = vunpack.c.l.b16 %v1001
        %v1674 = vunpack.c.l.b16 %v1003
        %v1675 = vunpack.c.l.b16 %v1004
        %v1676 = vunpack.c.l.b16 %v1006
        %v1677 = vunpack.c.l.b16 %v1007
        %v1678 = vunpack.c.l.b16 %v1009
        %v1679 = vunpack.c.l.b16 %v1010
        %v1680 = vunpack.c.l.b16 %v1012
        %v1681 = vunpack.c.l.b16 %v1013
        %v1682 = vunpack.c.l.b16 %v1015
        %v1683 = vunpack.c.l.b16 %v1016
        %v1684 = vunpack.c.l.b16 %v1018
        %v1685 = vunpack.c.l.b16 %v1019
        %v1686 = vunpack.c.l.b16 %v1021
        %v1687 = vunpack.c.l.b16 %v1022
        %v1688 = vunpack.c.l.b16 %v1024
        %v1689 = vunpack.c.l.b16 %v1025
        %v1690 = vunpack.c.l.b16 %v1027
        %v1691 = vunpack.c.l.b16 %v1028
        %v1692 = vunpack.c.l.b16 %v1030
        %v1693 = vunpack.c.l.b16 %v1031
        %v1694 = vunpack.c.l.b16 %v1033
        %v1695 = vunpack.c.l.b16 %v1034
        %v1696 = vunpack.c.l.b16 %v1036
        %v1697 = vunpack.c.l.b16 %v1037
        %v1698 = vunpack.c.l.b16 %v1039
        %v1699 = vunpack.c.l.b16 %v1040
        %v1700 = vunpack.c.l.b16 %v1042
        %v1701 = vunpack.c.l.b16 %v1043
        %v1702 = vunpack.c.l.b16 %v1045
        %v1703 = vunpack.c.l.b16 %v1046
        %v1704 = vpack.c.b16 %v1673, %v1672
        %v1705 = vpack.c.b16 %v1675, %v1674
        %v1706 = vpack.c.b16 %v1677, %v1676
        %v1707 = vpack.c.b16 %v1679, %v1678
        %v1708 = vpack.c.b16 %v1681, %v1680
        %v1709 = vpack.c.b16 %v1683, %v1682
        %v1710 = vpack.c.b16 %v1685, %v1684
        %v1711 = vpack.c.b16 %v1687, %v1686
        %v1712 = vpack.c.b16 %v1689, %v1688
        %v1713 = vpack.c.b16 %v1691, %v1690
        %v1714 = vpack.c.b16 %v1693, %v1692
        %v1715 = vpack.c.b16 %v1695, %v1694
        %v1716 = vpack.c.b16 %v1697, %v1696
        %v1717 = vpack.c.b16 %v1699, %v1698
        %v1718 = vpack.c.b16 %v1701, %v1700
        %v1719 = vpack.c.b16 %v1703, %v1702
        %v1736 = vunpack.c.l.b16 %v1070
        %v1737 = vunpack.c.l.b16 %v1080
        %v1738 = vunpack.c.l.b16 %v1094
        %v1739 = vunpack.c.l.b16 %v1104
        %v1740 = vunpack.c.l.b16 %v1118
        %v1741 = vunpack.c.l.b16 %v1128
        %v1742 = vunpack.c.l.b16 %v1142
        %v1743 = vunpack.c.l.b16 %v1152
        %v1744 = vunpack.c.l.b16 %v1166
        %v1745 = vunpack.c.l.b16 %v1176
        %v1746 = vunpack.c.l.b16 %v1190
        %v1747 = vunpack.c.l.b16 %v1200
        %v1748 = vunpack.c.l.b16 %v1214
        %v1749 = vunpack.c.l.b16 %v1224
        %v1750 = vunpack.c.l.b16 %v1238
        %v1751 = vunpack.c.l.b16 %v1248
        %v1752 = vunpack.c.l.b16 %v1262
        %v1753 = vunpack.c.l.b16 %v1272
        %v1754 = vunpack.c.l.b16 %v1286
        %v1755 = vunpack.c.l.b16 %v1296
        %v1756 = vunpack.c.l.b16 %v1310
        %v1757 = vunpack.c.l.b16 %v1320
        %v1758 = vunpack.c.l.b16 %v1334
        %v1759 = vunpack.c.l.b16 %v1344
        %v1760 = vunpack.c.l.b16 %v1358
        %v1761 = vunpack.c.l.b16 %v1368
        %v1762 = vunpack.c.l.b16 %v1382
        %v1763 = vunpack.c.l.b16 %v1392
        %v1764 = vunpack.c.l.b16 %v1406
        %v1765 = vunpack.c.l.b16 %v1416
        %v1766 = vunpack.c.l.b16 %v1430
        %v1767 = vunpack.c.l.b16 %v1440
        %v1768 = vpack.c.b16 %v1737, %v1736
        %v1769 = vpack.c.b16 %v1739, %v1738
        %v1770 = vpack.c.b16 %v1741, %v1740
        %v1771 = vpack.c.b16 %v1743, %v1742
        %v1772 = vpack.c.b16 %v1745, %v1744
        %v1773 = vpack.c.b16 %v1747, %v1746
        %v1774 = vpack.c.b16 %v1749, %v1748
        %v1775 = vpack.c.b16 %v1751, %v1750
        %v1776 = vpack.c.b16 %v1753, %v1752
        %v1777 = vpack.c.b16 %v1755, %v1754
        %v1778 = vpack.c.b16 %v1757, %v1756
        %v1779 = vpack.c.b16 %v1759, %v1758
        %v1780 = vpack.c.b16 %v1761, %v1760
        %v1781 = vpack.c.b16 %v1763, %v1762
        %v1782 = vpack.c.b16 %v1765, %v1764
        %v1783 = vpack.c.b16 %v1767, %v1766
        %v1800 = vunpack.c.l.b16 %v1495
        %v1801 = vunpack.c.l.b16 %v1498
        %v1802 = vunpack.c.l.b16 %v1502
        %v1803 = vunpack.c.l.b16 %v1505
        %v1804 = vunpack.c.l.b16 %v1509
        %v1805 = vunpack.c.l.b16 %v1512
        %v1806 = vunpack.c.l.b16 %v1516
        %v1807 = vunpack.c.l.b16 %v1519
        %v1808 = vunpack.c.l.b16 %v1523
        %v1809 = vunpack.c.l.b16 %v1526
        %v1810 = vunpack.c.l.b16 %v1530
        %v1811 = vunpack.c.l.b16 %v1533
        %v1812 = vunpack.c.l.b16 %v1537
        %v1813 = vunpack.c.l.b16 %v1540
        %v1814 = vunpack.c.l.b16 %v1544
        %v1815 = vunpack.c.l.b16 %v1547
        %v1816 = vunpack.c.l.b16 %v1551
        %v1817 = vunpack.c.l.b16 %v1554
        %v1818 = vunpack.c.l.b16 %v1558
        %v1819 = vunpack.c.l.b16 %v1561
        %v1820 = vunpack.c.l.b16 %v1565
        %v1821 = vunpack.c.l.b16 %v1568
        %v1822 = vunpack.c.l.b16 %v1572
        %v1823 = vunpack.c.l.b16 %v1575
        %v1824 = vunpack.c.l.b16 %v1579
        %v1825 = vunpack.c.l.b16 %v1582
        %v1826 = vunpack.c.l.b16 %v1586
        %v1827 = vunpack.c.l.b16 %v1589
        %v1828 = vunpack.c.l.b16 %v1593
        %v1829 = vunpack.c.l.b16 %v1596
        %v1830 = vunpack.c.l.b16 %v1600
        %v1831 = vunpack.c.l.b16 %v1603
        %v1832 = vpack.c.b16 %v1801, %v1800
        %v1833 = vpack.c.b16 %v1803, %v1802
        %v1834 = vpack.c.b16 %v1805, %v1804
        %v1835 = vpack.c.b16 %v1807, %v1806
        %v1836 = vpack.c.b16 %v1809, %v1808
        %v1837 = vpack.c.b16 %v1811, %v1810
        %v1838 = vpack.c.b16 %v1813, %v1812
        %v1839 = vpack.c.b16 %v1815, %v1814
        %v1840 = vpack.c.b16 %v1817, %v1816
        %v1841 = vpack.c.b16 %v1819, %v1818
        %v1842 = vpack.c.b16 %v1821, %v1820
        %v1843 = vpack.c.b16 %v1823, %v1822
        %v1844 = vpack.c.b16 %v1825, %v1824
        %v1845 = vpack.c.b16 %v1827, %v1826
        %v1846 = vpack.c.b16 %v1829, %v1828
        %v1847 = vpack.c.b16 %v1831, %v1830
        %v1864 = vunpack.c.l.b16 %v1048
        %v1865 = vunpack.c.l.b16 %v1049
        %v1866 = vpack.c.b16 %v1865, %v1864
        %v1868 = vunpack.c.l.b16 %v1617
        %v1869 = vunpack.c.l.b16 %v1627
        %v1870 = vpack.c.b16 %v1869, %v1868
        %v1872 = vunpack.c.l.b16 %v1634
        %v1873 = vunpack.c.l.b16 %v1637
        %v1874 = vpack.c.b16 %v1873, %v1872
        %v1876 = vunpack.c.l.b16 %v1051
        %v1877 = vunpack.c.l.b16 %v1052
        %v1878 = vpack.c.b16 %v1877, %v1876
        %v1880 = vunpack.c.l.b16 %v1651
        %v1881 = vunpack.c.l.b16 %v1661
        %v1882 = vpack.c.b16 %v1881, %v1880
        %v1884 = vunpack.c.l.b16 %v1668
        %v1885 = vunpack.c.l.b16 %v1671
        %v1886 = vpack.c.b16 %v1885, %v1884
        %v1888 = vld [vmem:[#allocation7] sm:$0xf]
        %v1889 = vld [vmem:[#allocation7 + $0x4] sm:$0xf]
        %v1890 = vld [vmem:[#allocation7 + $0x8] sm:$0xf]
        %v1891 = vld [vmem:[#allocation7 + $0xc] sm:$0xf]
        %v1892 = vld [vmem:[#allocation7 + $0x10] sm:$0xf]
        %v1893 = vld [vmem:[#allocation7 + $0x14] sm:$0xf]
        %v1894 = vld [vmem:[#allocation7 + $0x18] sm:$0xf]
        %v1895 = vld [vmem:[#allocation7 + $0x1c] sm:$0xf]
        %v1896 = vld [vmem:[#allocation7 + $0x20] sm:$0xf]
        %v1897 = vld [vmem:[#allocation7 + $0x24] sm:$0xf]
        %v1898 = vld [vmem:[#allocation7 + $0x28] sm:$0xf]
        %v1899 = vld [vmem:[#allocation7 + $0x2c] sm:$0xf]
        %v1900 = vld [vmem:[#allocation7 + $0x30] sm:$0xf]
        %v1901 = vld [vmem:[#allocation7 + $0x34] sm:$0xf]
        %v1902 = vld [vmem:[#allocation7 + $0x38] sm:$0xf]
        %v1903 = vld [vmem:[#allocation7 + $0x3c] sm:$0xf]
        %v1904 = vld [vmem:[#allocation7 + $0x40] sm:$0xf]
        %v1905 = vld [vmem:[#allocation7 + $0x44] sm:$0xf]
        %v1906 = vld [vmem:[#allocation7 + $0x48] sm:$0xf]
        %v1907 = vld [vmem:[#allocation7 + $0x4c] sm:$0xf]
        %v1908 = vld [vmem:[#allocation7 + $0x50] sm:$0xf]
        %v1909 = vld [vmem:[#allocation7 + $0x54] sm:$0xf]
        %v1910 = vld [vmem:[#allocation7 + $0x58] sm:$0xf]
        %v1911 = vld [vmem:[#allocation7 + $0x5c] sm:$0xf]
        %v1912 = vld [vmem:[#allocation7 + $0x60] sm:$0xf]
        %v1913 = vld [vmem:[#allocation7 + $0x64] sm:$0xf]
        %v1914 = vld [vmem:[#allocation7 + $0x68] sm:$0xf]
        %v1915 = vld [vmem:[#allocation7 + $0x6c] sm:$0xf]
        %v1916 = vld [vmem:[#allocation7 + $0x70] sm:$0xf]
        %v1917 = vld [vmem:[#allocation7 + $0x74] sm:$0xf]
        %v1918 = vld [vmem:[#allocation7 + $0x78] sm:$0xf]
        %v1919 = vld [vmem:[#allocation7 + $0x7c] sm:$0xf]
        %v1920 = vld [vmem:[#allocation7 + $0x80] sm:$0xf]
        %v1921 = vld [vmem:[#allocation7 + $0x84] sm:$0xf]
        %v1922 = vld [vmem:[#allocation7 + $0x88] sm:$0xf]
        %v1923 = vld [vmem:[#allocation7 + $0x8c] sm:$0xf]
        %v1924 = vld [vmem:[#allocation7 + $0x90] sm:$0xf]
        %v1925 = vld [vmem:[#allocation7 + $0x94] sm:$0xf]
        %v1926 = vld [vmem:[#allocation7 + $0x98] sm:$0xf]
        %v1927 = vld [vmem:[#allocation7 + $0x9c] sm:$0xf]
        %v1928 = vld [vmem:[#allocation7 + $0xa0] sm:$0xf]
        %v1929 = vld [vmem:[#allocation7 + $0xa4] sm:$0xf]
        %v1930 = vld [vmem:[#allocation7 + $0xa8] sm:$0xf]
        %v1931 = vld [vmem:[#allocation7 + $0xac] sm:$0xf]
        %v1932 = vld [vmem:[#allocation7 + $0xb0] sm:$0xf]
        %v1933 = vld [vmem:[#allocation7 + $0xb4] sm:$0xf]
        %v1934 = vld [vmem:[#allocation7 + $0xb8] sm:$0xf]
        %v1935 = vld [vmem:[#allocation7 + $0xbc] sm:$0xf]
        %v1936 = vld [vmem:[#allocation7 + $0xc0] sm:$0xf]
        %v1937 = vld [vmem:[#allocation7 + $0xc4] sm:$0xf]
        %v1938 = vld [vmem:[#allocation7 + $0xc8] sm:$0xf]
        %v1939 = vld [vmem:[#allocation7 + $0xcc] sm:$0xf]
        %v1940 = vld [vmem:[#allocation7 + $0xd0] sm:$0xf]
        %v1941 = vld [vmem:[#allocation7 + $0xd4] sm:$0xf]
        %v1942 = vld [vmem:[#allocation7 + $0xd8] sm:$0xf]
        %v1943 = vld [vmem:[#allocation7 + $0xdc] sm:$0xf]
        %v1944 = vld [vmem:[#allocation7 + $0xe0] sm:$0xf]
        %v1945 = vld [vmem:[#allocation7 + $0xe4] sm:$0xf]
        %v1946 = vld [vmem:[#allocation7 + $0xe8] sm:$0xf]
        %v1947 = vld [vmem:[#allocation7 + $0xec] sm:$0xf]
        %v1948 = vld [vmem:[#allocation7 + $0xf0] sm:$0xf]
        %v1949 = vld [vmem:[#allocation7 + $0xf4] sm:$0xf]
        %v1950 = vld [vmem:[#allocation7 + $0xf8] sm:$0xf]
        %v1951 = vld [vmem:[#allocation7 + $0xfc] sm:$0xf]
        %v1952 = vld [vmem:[#allocation7 + $0x100] sm:$0xf]
        %v1953 = vld [vmem:[#allocation7 + $0x104] sm:$0xf]
        %v1954 = vld [vmem:[#allocation7 + $0x108] sm:$0xf]
        %v1955 = vld [vmem:[#allocation7 + $0x10c] sm:$0xf]
        %v1956 = vld [vmem:[#allocation7 + $0x110] sm:$0xf]
        %v1957 = vld [vmem:[#allocation7 + $0x114] sm:$0xf]
        %v1958 = vld [vmem:[#allocation7 + $0x118] sm:$0xf]
        %v1959 = vld [vmem:[#allocation7 + $0x11c] sm:$0xf]
        %v1960 = vld [vmem:[#allocation7 + $0x120] sm:$0xf]
        %v1961 = vld [vmem:[#allocation7 + $0x124] sm:$0xf]
        %v1962 = vld [vmem:[#allocation7 + $0x128] sm:$0xf]
        %v1963 = vld [vmem:[#allocation7 + $0x12c] sm:$0xf]
        %v1964 = vld [vmem:[#allocation7 + $0x130] sm:$0xf]
        %v1965 = vld [vmem:[#allocation7 + $0x134] sm:$0xf]
        %v1966 = vld [vmem:[#allocation7 + $0x138] sm:$0xf]
        %v1967 = vld [vmem:[#allocation7 + $0x13c] sm:$0xf]
        %v1968 = vld [vmem:[#allocation7 + $0x140] sm:$0xf]
        %v1969 = vld [vmem:[#allocation7 + $0x144] sm:$0xf]
        %v1970 = vld [vmem:[#allocation7 + $0x148] sm:$0xf]
        %v1971 = vld [vmem:[#allocation7 + $0x14c] sm:$0xf]
        %v1972 = vld [vmem:[#allocation7 + $0x150] sm:$0xf]
        %v1973 = vld [vmem:[#allocation7 + $0x154] sm:$0xf]
        %v1974 = vld [vmem:[#allocation7 + $0x158] sm:$0xf]
        %v1975 = vld [vmem:[#allocation7 + $0x15c] sm:$0xf]
        %v1976 = vld [vmem:[#allocation7 + $0x160] sm:$0xf]
        %v1977 = vld [vmem:[#allocation7 + $0x164] sm:$0xf]
        %v1978 = vld [vmem:[#allocation7 + $0x168] sm:$0xf]
        %v1979 = vld [vmem:[#allocation7 + $0x16c] sm:$0xf]
        %v1980 = vld [vmem:[#allocation7 + $0x170] sm:$0xf]
        %v1981 = vld [vmem:[#allocation7 + $0x174] sm:$0xf]
        %v1982 = vld [vmem:[#allocation7 + $0x178] sm:$0xf]
        %v1983 = vld [vmem:[#allocation7 + $0x17c] sm:$0xf]
        %v1984 = vld [vmem:[#allocation7 + $0x180] sm:$0xf]
        %v1985 = vld [vmem:[#allocation7 + $0x184] sm:$0xf]
        %v1986 = vld [vmem:[#allocation7 + $0x188] sm:$0xf]
        %v1987 = vld [vmem:[#allocation7 + $0x18c] sm:$0xf]
        %v1988 = vld [vmem:[#allocation7 + $0x190] sm:$0xf]
        %v1989 = vld [vmem:[#allocation7 + $0x194] sm:$0xf]
        %v1990 = vld [vmem:[#allocation7 + $0x198] sm:$0xf]
        %v1991 = vld [vmem:[#allocation7 + $0x19c] sm:$0xf]
        %v1992 = vld [vmem:[#allocation7 + $0x1a0] sm:$0xf]
        %v1993 = vld [vmem:[#allocation7 + $0x1a4] sm:$0xf]
        %v1994 = vld [vmem:[#allocation7 + $0x1a8] sm:$0xf]
        %v1995 = vld [vmem:[#allocation7 + $0x1ac] sm:$0xf]
        %v1996 = vld [vmem:[#allocation7 + $0x1b0] sm:$0xf]
        %v1997 = vld [vmem:[#allocation7 + $0x1b4] sm:$0xf]
        %v1998 = vld [vmem:[#allocation7 + $0x1b8] sm:$0xf]
        %v1999 = vld [vmem:[#allocation7 + $0x1bc] sm:$0xf]
        %v2000 = vld [vmem:[#allocation7 + $0x1c0] sm:$0xf]
        %v2001 = vld [vmem:[#allocation7 + $0x1c4] sm:$0xf]
        %v2002 = vld [vmem:[#allocation7 + $0x1c8] sm:$0xf]
        %v2003 = vld [vmem:[#allocation7 + $0x1cc] sm:$0xf]
        %v2004 = vld [vmem:[#allocation7 + $0x1d0] sm:$0xf]
        %v2005 = vld [vmem:[#allocation7 + $0x1d4] sm:$0xf]
        %v2006 = vld [vmem:[#allocation7 + $0x1d8] sm:$0xf]
        %v2007 = vld [vmem:[#allocation7 + $0x1dc] sm:$0xf]
        %v2008 = vld [vmem:[#allocation7 + $0x1e0] sm:$0xf]
        %v2009 = vld [vmem:[#allocation7 + $0x1e4] sm:$0xf]
        %v2010 = vld [vmem:[#allocation7 + $0x1e8] sm:$0xf]
        %v2011 = vld [vmem:[#allocation7 + $0x1ec] sm:$0xf]
        %v2012 = vld [vmem:[#allocation7 + $0x1f0] sm:$0xf]
        %v2013 = vld [vmem:[#allocation7 + $0x1f4] sm:$0xf]
        %v2014 = vld [vmem:[#allocation7 + $0x1f8] sm:$0xf]
        %v2015 = vld [vmem:[#allocation7 + $0x1fc] sm:$0xf]
        %v2016 = vld [vmem:[#allocation7 + $0x200] sm:$0xf]
        %v2017 = vld [vmem:[#allocation7 + $0x204] sm:$0xf]
        %v2018 = vld [vmem:[#allocation7 + $0x208] sm:$0xf]
        %v2019 = vld [vmem:[#allocation7 + $0x20c] sm:$0xf]
        %v2020 = vld [vmem:[#allocation7 + $0x210] sm:$0xf]
        %v2021 = vld [vmem:[#allocation7 + $0x214] sm:$0xf]
        %v2022 = vld [vmem:[#allocation7 + $0x218] sm:$0xf]
        %v2023 = vld [vmem:[#allocation7 + $0x21c] sm:$0xf]
        %v2024 = vld [vmem:[#allocation7 + $0x220] sm:$0xf]
        %v2025 = vld [vmem:[#allocation7 + $0x224] sm:$0xf]
        %v2026 = vld [vmem:[#allocation7 + $0x228] sm:$0xf]
        %v2027 = vld [vmem:[#allocation7 + $0x22c] sm:$0xf]
        %v2028 = vld [vmem:[#allocation7 + $0x230] sm:$0xf]
        %v2029 = vld [vmem:[#allocation7 + $0x234] sm:$0xf]
        %v2030 = vld [vmem:[#allocation7 + $0x238] sm:$0xf]
        %v2031 = vld [vmem:[#allocation7 + $0x23c] sm:$0xf]
        %v2176 = vunpack.c.l.b16 %v1888
        %v2177 = vunpack.c.l.b16 %v1889
        %v2178 = vunpack.c.l.b16 %v1890
        %v2179 = vunpack.c.l.b16 %v1891
        %v2180 = vunpack.c.l.b16 %v1892
        %v2181 = vunpack.c.l.b16 %v1893
        %v2182 = vunpack.c.l.b16 %v1894
        %v2183 = vunpack.c.l.b16 %v1895
        %v2184 = vunpack.c.l.b16 %v1896
        %v2185 = vunpack.c.l.b16 %v1897
        %v2186 = vunpack.c.l.b16 %v1898
        %v2187 = vunpack.c.l.b16 %v1899
        %v2188 = vunpack.c.l.b16 %v1900
        %v2189 = vunpack.c.l.b16 %v1901
        %v2190 = vunpack.c.l.b16 %v1902
        %v2191 = vunpack.c.l.b16 %v1903
        %v2192 = vunpack.c.l.b16 %v1904
        %v2193 = vunpack.c.l.b16 %v1905
        %v2194 = vunpack.c.l.b16 %v1906
        %v2195 = vunpack.c.l.b16 %v1907
        %v2196 = vunpack.c.l.b16 %v1908
        %v2197 = vunpack.c.l.b16 %v1909
        %v2198 = vunpack.c.l.b16 %v1910
        %v2199 = vunpack.c.l.b16 %v1911
        %v2200 = vunpack.c.l.b16 %v1912
        %v2201 = vunpack.c.l.b16 %v1913
        %v2202 = vunpack.c.l.b16 %v1914
        %v2203 = vunpack.c.l.b16 %v1915
        %v2204 = vunpack.c.l.b16 %v1916
        %v2205 = vunpack.c.l.b16 %v1917
        %v2206 = vunpack.c.l.b16 %v1918
        %v2207 = vunpack.c.l.b16 %v1919
        %v2208 = vunpack.c.l.b16 %v1920
        %v2209 = vunpack.c.l.b16 %v1921
        %v2210 = vunpack.c.l.b16 %v1922
        %v2211 = vunpack.c.l.b16 %v1923
        %v2212 = vunpack.c.l.b16 %v1924
        %v2213 = vunpack.c.l.b16 %v1925
        %v2214 = vunpack.c.l.b16 %v1926
        %v2215 = vunpack.c.l.b16 %v1927
        %v2216 = vunpack.c.l.b16 %v1928
        %v2217 = vunpack.c.l.b16 %v1929
        %v2218 = vunpack.c.l.b16 %v1930
        %v2219 = vunpack.c.l.b16 %v1931
        %v2220 = vunpack.c.l.b16 %v1932
        %v2221 = vunpack.c.l.b16 %v1933
        %v2222 = vunpack.c.l.b16 %v1934
        %v2223 = vunpack.c.l.b16 %v1935
        %v2224 = vunpack.c.l.b16 %v1936
        %v2225 = vunpack.c.l.b16 %v1937
        %v2226 = vunpack.c.l.b16 %v1938
        %v2227 = vunpack.c.l.b16 %v1939
        %v2228 = vunpack.c.l.b16 %v1940
        %v2229 = vunpack.c.l.b16 %v1941
        %v2230 = vunpack.c.l.b16 %v1942
        %v2231 = vunpack.c.l.b16 %v1943
        %v2232 = vunpack.c.l.b16 %v1944
        %v2233 = vunpack.c.l.b16 %v1945
        %v2234 = vunpack.c.l.b16 %v1946
        %v2235 = vunpack.c.l.b16 %v1947
        %v2236 = vunpack.c.l.b16 %v1948
        %v2237 = vunpack.c.l.b16 %v1949
        %v2238 = vunpack.c.l.b16 %v1950
        %v2239 = vunpack.c.l.b16 %v1951
        %v2240 = vunpack.c.l.b16 %v1952
        %v2241 = vunpack.c.l.b16 %v1953
        %v2242 = vunpack.c.l.b16 %v1954
        %v2243 = vunpack.c.l.b16 %v1955
        %v2244 = vunpack.c.l.b16 %v1956
        %v2245 = vunpack.c.l.b16 %v1957
        %v2246 = vunpack.c.l.b16 %v1958
        %v2247 = vunpack.c.l.b16 %v1959
        %v2248 = vunpack.c.l.b16 %v1960
        %v2249 = vunpack.c.l.b16 %v1961
        %v2250 = vunpack.c.l.b16 %v1962
        %v2251 = vunpack.c.l.b16 %v1963
        %v2252 = vunpack.c.l.b16 %v1964
        %v2253 = vunpack.c.l.b16 %v1965
        %v2254 = vunpack.c.l.b16 %v1966
        %v2255 = vunpack.c.l.b16 %v1967
        %v2256 = vunpack.c.l.b16 %v1968
        %v2257 = vunpack.c.l.b16 %v1969
        %v2258 = vunpack.c.l.b16 %v1970
        %v2259 = vunpack.c.l.b16 %v1971
        %v2260 = vunpack.c.l.b16 %v1972
        %v2261 = vunpack.c.l.b16 %v1973
        %v2262 = vunpack.c.l.b16 %v1974
        %v2263 = vunpack.c.l.b16 %v1975
        %v2264 = vunpack.c.l.b16 %v1976
        %v2265 = vunpack.c.l.b16 %v1977
        %v2266 = vunpack.c.l.b16 %v1978
        %v2267 = vunpack.c.l.b16 %v1979
        %v2268 = vunpack.c.l.b16 %v1980
        %v2269 = vunpack.c.l.b16 %v1981
        %v2270 = vunpack.c.l.b16 %v1982
        %v2271 = vunpack.c.l.b16 %v1983
        %v2272 = vunpack.c.l.b16 %v1984
        %v2273 = vunpack.c.l.b16 %v1985
        %v2274 = vunpack.c.l.b16 %v1986
        %v2275 = vunpack.c.l.b16 %v1987
        %v2276 = vunpack.c.l.b16 %v1988
        %v2277 = vunpack.c.l.b16 %v1989
        %v2278 = vunpack.c.l.b16 %v1990
        %v2279 = vunpack.c.l.b16 %v1991
        %v2280 = vunpack.c.l.b16 %v1992
        %v2281 = vunpack.c.l.b16 %v1993
        %v2282 = vunpack.c.l.b16 %v1994
        %v2283 = vunpack.c.l.b16 %v1995
        %v2284 = vunpack.c.l.b16 %v1996
        %v2285 = vunpack.c.l.b16 %v1997
        %v2286 = vunpack.c.l.b16 %v1998
        %v2287 = vunpack.c.l.b16 %v1999
        %v2288 = vunpack.c.l.b16 %v2000
        %v2289 = vunpack.c.l.b16 %v2001
        %v2290 = vunpack.c.l.b16 %v2002
        %v2291 = vunpack.c.l.b16 %v2003
        %v2292 = vunpack.c.l.b16 %v2004
        %v2293 = vunpack.c.l.b16 %v2005
        %v2294 = vunpack.c.l.b16 %v2006
        %v2295 = vunpack.c.l.b16 %v2007
        %v2296 = vunpack.c.l.b16 %v2008
        %v2297 = vunpack.c.l.b16 %v2009
        %v2298 = vunpack.c.l.b16 %v2010
        %v2299 = vunpack.c.l.b16 %v2011
        %v2300 = vunpack.c.l.b16 %v2012
        %v2301 = vunpack.c.l.b16 %v2013
        %v2302 = vunpack.c.l.b16 %v2014
        %v2303 = vunpack.c.l.b16 %v2015
        %v2304 = vunpack.c.l.b16 %v2016
        %v2305 = vunpack.c.l.b16 %v2017
        %v2306 = vunpack.c.l.b16 %v2018
        %v2307 = vunpack.c.l.b16 %v2019
        %v2308 = vunpack.c.l.b16 %v2020
        %v2309 = vunpack.c.l.b16 %v2021
        %v2310 = vunpack.c.l.b16 %v2022
        %v2311 = vunpack.c.l.b16 %v2023
        %v2312 = vunpack.c.l.b16 %v2024
        %v2313 = vunpack.c.l.b16 %v2025
        %v2314 = vunpack.c.l.b16 %v2026
        %v2315 = vunpack.c.l.b16 %v2027
        %v2316 = vunpack.c.l.b16 %v2028
        %v2317 = vunpack.c.l.b16 %v2029
        %v2318 = vunpack.c.l.b16 %v2030
        %v2319 = vunpack.c.l.b16 %v2031
        %v2320 = vpack.c.b16 %v2177, %v2176
        %v2321 = vpack.c.b16 %v2179, %v2178
        %v2322 = vpack.c.b16 %v2181, %v2180
        %v2323 = vpack.c.b16 %v2183, %v2182
        %v2324 = vpack.c.b16 %v2185, %v2184
        %v2325 = vpack.c.b16 %v2187, %v2186
        %v2326 = vpack.c.b16 %v2189, %v2188
        %v2327 = vpack.c.b16 %v2191, %v2190
        %v2328 = vpack.c.b16 %v2193, %v2192
        %v2329 = vpack.c.b16 %v2195, %v2194
        %v2330 = vpack.c.b16 %v2197, %v2196
        %v2331 = vpack.c.b16 %v2199, %v2198
        %v2332 = vpack.c.b16 %v2201, %v2200
        %v2333 = vpack.c.b16 %v2203, %v2202
        %v2334 = vpack.c.b16 %v2205, %v2204
        %v2335 = vpack.c.b16 %v2207, %v2206
        %v2336 = vpack.c.b16 %v2209, %v2208
        %v2337 = vpack.c.b16 %v2211, %v2210
        %v2338 = vpack.c.b16 %v2213, %v2212
        %v2339 = vpack.c.b16 %v2215, %v2214
        %v2340 = vpack.c.b16 %v2217, %v2216
        %v2341 = vpack.c.b16 %v2219, %v2218
        %v2342 = vpack.c.b16 %v2221, %v2220
        %v2343 = vpack.c.b16 %v2223, %v2222
        %v2344 = vpack.c.b16 %v2225, %v2224
        %v2345 = vpack.c.b16 %v2227, %v2226
        %v2346 = vpack.c.b16 %v2229, %v2228
        %v2347 = vpack.c.b16 %v2231, %v2230
        %v2348 = vpack.c.b16 %v2233, %v2232
        %v2349 = vpack.c.b16 %v2235, %v2234
        %v2350 = vpack.c.b16 %v2237, %v2236
        %v2351 = vpack.c.b16 %v2239, %v2238
        %v2352 = vpack.c.b16 %v2241, %v2240
        %v2353 = vpack.c.b16 %v2243, %v2242
        %v2354 = vpack.c.b16 %v2245, %v2244
        %v2355 = vpack.c.b16 %v2247, %v2246
        %v2356 = vpack.c.b16 %v2249, %v2248
        %v2357 = vpack.c.b16 %v2251, %v2250
        %v2358 = vpack.c.b16 %v2253, %v2252
        %v2359 = vpack.c.b16 %v2255, %v2254
        %v2360 = vpack.c.b16 %v2257, %v2256
        %v2361 = vpack.c.b16 %v2259, %v2258
        %v2362 = vpack.c.b16 %v2261, %v2260
        %v2363 = vpack.c.b16 %v2263, %v2262
        %v2364 = vpack.c.b16 %v2265, %v2264
        %v2365 = vpack.c.b16 %v2267, %v2266
        %v2366 = vpack.c.b16 %v2269, %v2268
        %v2367 = vpack.c.b16 %v2271, %v2270
        %v2368 = vpack.c.b16 %v2273, %v2272
        %v2369 = vpack.c.b16 %v2275, %v2274
        %v2370 = vpack.c.b16 %v2277, %v2276
        %v2371 = vpack.c.b16 %v2279, %v2278
        %v2372 = vpack.c.b16 %v2281, %v2280
        %v2373 = vpack.c.b16 %v2283, %v2282
        %v2374 = vpack.c.b16 %v2285, %v2284
        %v2375 = vpack.c.b16 %v2287, %v2286
        %v2376 = vpack.c.b16 %v2289, %v2288
        %v2377 = vpack.c.b16 %v2291, %v2290
        %v2378 = vpack.c.b16 %v2293, %v2292
        %v2379 = vpack.c.b16 %v2295, %v2294
        %v2380 = vpack.c.b16 %v2297, %v2296
        %v2381 = vpack.c.b16 %v2299, %v2298
        %v2382 = vpack.c.b16 %v2301, %v2300
        %v2383 = vpack.c.b16 %v2303, %v2302
        %v2384 = vpack.c.b16 %v2305, %v2304
        %v2385 = vpack.c.b16 %v2307, %v2306
        %v2386 = vpack.c.b16 %v2309, %v2308
        %v2387 = vpack.c.b16 %v2311, %v2310
        %v2388 = vpack.c.b16 %v2313, %v2312
        %v2389 = vpack.c.b16 %v2315, %v2314
        %v2390 = vpack.c.b16 %v2317, %v2316
        %v2391 = vpack.c.b16 %v2319, %v2318
        %2464 = vmatprep.subr.bf16.mxu0 0
        %2465 = vmatpush1.bf16.msra.mxu0 %v2327
        %2466 = vmatprep.subr.bf16.mxu0 0
        %2467 = vmatpush1.bf16.msra.mxu0 %v2326
        %2468 = vmatprep.subr.bf16.mxu0 0
        %2469 = vmatpush1.bf16.msra.mxu0 %v2325
        %2470 = vmatprep.subr.bf16.mxu0 0
        %2471 = vmatpush1.bf16.msra.mxu0 %v2324
        %2472 = vmatprep.subr.bf16.mxu0 0
        %2473 = vmatpush1.bf16.msra.mxu0 %v2323
        %2474 = vmatprep.subr.bf16.mxu0 0
        %2475 = vmatpush1.bf16.msra.mxu0 %v2322
        %2476 = vmatprep.subr.bf16.mxu0 0
        %2477 = vmatpush1.bf16.msra.mxu0 %v2321
        %2478 = vmatprep.subr.bf16.mxu0 0
        %2479 = vmatpush1.bf16.msra.mxu0 %v2320
        %2480 = vmatprep.subr.bf16.mxu0 0
        %2481 = vmatpush2.bf16.msra.mxu0 %v2335
        %2482 = vmatprep.subr.bf16.mxu0 0
        %2483 = vmatpush2.bf16.msra.mxu0 %v2334
        %2484 = vmatprep.subr.bf16.mxu0 0
        %2485 = vmatpush2.bf16.msra.mxu0 %v2333
        %2486 = vmatprep.subr.bf16.mxu0 0
        %2487 = vmatpush2.bf16.msra.mxu0 %v2332
        %2488 = vmatprep.subr.bf16.mxu0 0
        %2489 = vmatpush2.bf16.msra.mxu0 %v2331
        %2490 = vmatprep.subr.bf16.mxu0 0
        %2491 = vmatpush2.bf16.msra.mxu0 %v2330
        %2492 = vmatprep.subr.bf16.mxu0 0
        %2493 = vmatpush2.bf16.msra.mxu0 %v2329
        %2494 = vmatprep.subr.bf16.mxu0 0
        %2495 = vmatpush2.bf16.msra.mxu0 %v2328
        %2496 = vmatprep.mubr.bf16.mxu0 %v1768
        %2497 = vmatmul.mubr.bf16.gmra.mxu0 %v1704
        %v2498 = vpop.f32.mrf.mxu0
        %v2499 = vadd.f32 0.0, %v2498
        %v2500 = vpop.f32.mrf.mxu0
        %v2501 = vpop.f32.mrf.mxu0
        %v2502 = vadd.f32 0.0, %v2501
        %v2503 = vpop.f32.mrf.mxu0
        %2504 = vmatprep.mubr.bf16.mxu0 %v1769
        %2505 = vmatmul.mubr.bf16.gmra.mxu0 %v1705
        %v2506 = vpop.f32.mrf.mxu0
        %v2507 = vadd.f32 0.0, %v2506
        %v2508 = vpop.f32.mrf.mxu0
        %v2509 = vpop.f32.mrf.mxu0
        %v2510 = vadd.f32 0.0, %v2509
        %v2511 = vpop.f32.mrf.mxu0
        %2512 = vmatprep.mubr.bf16.mxu0 %v1770
        %2513 = vmatmul.mubr.bf16.gmra.mxu0 %v1706
        %v2514 = vpop.f32.mrf.mxu0
        %v2515 = vadd.f32 0.0, %v2514
        %v2516 = vpop.f32.mrf.mxu0
        %v2517 = vpop.f32.mrf.mxu0
        %v2518 = vadd.f32 0.0, %v2517
        %v2519 = vpop.f32.mrf.mxu0
        %2520 = vmatprep.mubr.bf16.mxu0 %v1771
        %2521 = vmatmul.mubr.bf16.gmra.mxu0 %v1707
        %v2522 = vpop.f32.mrf.mxu0
        %v2523 = vadd.f32 0.0, %v2522
        %v2524 = vpop.f32.mrf.mxu0
        %v2525 = vpop.f32.mrf.mxu0
        %v2526 = vadd.f32 0.0, %v2525
        %v2527 = vpop.f32.mrf.mxu0
        %2528 = vmatprep.mubr.bf16.mxu0 %v1772
        %2529 = vmatmul.mubr.bf16.gmra.mxu0 %v1708
        %v2530 = vpop.f32.mrf.mxu0
        %v2531 = vadd.f32 0.0, %v2530
        %v2532 = vpop.f32.mrf.mxu0
        %v2533 = vpop.f32.mrf.mxu0
        %v2534 = vadd.f32 0.0, %v2533
        %v2535 = vpop.f32.mrf.mxu0
        %2536 = vmatprep.mubr.bf16.mxu0 %v1773
        %2537 = vmatmul.mubr.bf16.gmra.mxu0 %v1709
        %v2538 = vpop.f32.mrf.mxu0
        %v2539 = vadd.f32 0.0, %v2538
        %v2540 = vpop.f32.mrf.mxu0
        %v2541 = vpop.f32.mrf.mxu0
        %v2542 = vadd.f32 0.0, %v2541
        %v2543 = vpop.f32.mrf.mxu0
        %2544 = vmatprep.mubr.bf16.mxu0 %v1774
        %2545 = vmatmul.mubr.bf16.gmra.mxu0 %v1710
        %v2546 = vpop.f32.mrf.mxu0
        %v2547 = vadd.f32 0.0, %v2546
        %v2548 = vpop.f32.mrf.mxu0
        %v2549 = vpop.f32.mrf.mxu0
        %v2550 = vadd.f32 0.0, %v2549
        %v2551 = vpop.f32.mrf.mxu0
        %2552 = vmatprep.mubr.bf16.mxu0 %v1775
        %2553 = vmatmul.mubr.bf16.gmra.mxu0 %v1711
        %v2554 = vpop.f32.mrf.mxu0
        %v2555 = vadd.f32 0.0, %v2554
        %v2556 = vpop.f32.mrf.mxu0
        %v2557 = vpop.f32.mrf.mxu0
        %v2558 = vadd.f32 0.0, %v2557
        %v2559 = vpop.f32.mrf.mxu0
        %2560 = vmatprep.mubr.bf16.mxu0 %v1776
        %2561 = vmatmul.mubr.bf16.gmra.mxu0 %v1712
        %v2562 = vpop.f32.mrf.mxu0
        %v2563 = vadd.f32 0.0, %v2562
        %v2564 = vpop.f32.mrf.mxu0
        %v2565 = vpop.f32.mrf.mxu0
        %v2566 = vadd.f32 0.0, %v2565
        %v2567 = vpop.f32.mrf.mxu0
        %2568 = vmatprep.mubr.bf16.mxu0 %v1777
        %2569 = vmatmul.mubr.bf16.gmra.mxu0 %v1713
        %v2570 = vpop.f32.mrf.mxu0
        %v2571 = vadd.f32 0.0, %v2570
        %v2572 = vpop.f32.mrf.mxu0
        %v2573 = vpop.f32.mrf.mxu0
        %v2574 = vadd.f32 0.0, %v2573
        %v2575 = vpop.f32.mrf.mxu0
        %2576 = vmatprep.mubr.bf16.mxu0 %v1778
        %2577 = vmatmul.mubr.bf16.gmra.mxu0 %v1714
        %v2578 = vpop.f32.mrf.mxu0
        %v2579 = vadd.f32 0.0, %v2578
        %v2580 = vpop.f32.mrf.mxu0
        %v2581 = vpop.f32.mrf.mxu0
        %v2582 = vadd.f32 0.0, %v2581
        %v2583 = vpop.f32.mrf.mxu0
        %2584 = vmatprep.mubr.bf16.mxu0 %v1779
        %2585 = vmatmul.mubr.bf16.gmra.mxu0 %v1715
        %v2586 = vpop.f32.mrf.mxu0
        %v2587 = vadd.f32 0.0, %v2586
        %v2588 = vpop.f32.mrf.mxu0
        %v2589 = vpop.f32.mrf.mxu0
        %v2590 = vadd.f32 0.0, %v2589
        %v2591 = vpop.f32.mrf.mxu0
        %2592 = vmatprep.mubr.bf16.mxu0 %v1780
        %2593 = vmatmul.mubr.bf16.gmra.mxu0 %v1716
        %v2594 = vpop.f32.mrf.mxu0
        %v2595 = vadd.f32 0.0, %v2594
        %v2596 = vpop.f32.mrf.mxu0
        %v2597 = vpop.f32.mrf.mxu0
        %v2598 = vadd.f32 0.0, %v2597
        %v2599 = vpop.f32.mrf.mxu0
        %2600 = vmatprep.mubr.bf16.mxu0 %v1781
        %2601 = vmatmul.mubr.bf16.gmra.mxu0 %v1717
        %v2602 = vpop.f32.mrf.mxu0
        %v2603 = vadd.f32 0.0, %v2602
        %v2604 = vpop.f32.mrf.mxu0
        %v2605 = vpop.f32.mrf.mxu0
        %v2606 = vadd.f32 0.0, %v2605
        %v2607 = vpop.f32.mrf.mxu0
        %2608 = vmatprep.mubr.bf16.mxu0 %v1782
        %2609 = vmatmul.mubr.bf16.gmra.mxu0 %v1718
        %v2610 = vpop.f32.mrf.mxu0
        %v2611 = vadd.f32 0.0, %v2610
        %v2612 = vpop.f32.mrf.mxu0
        %v2613 = vpop.f32.mrf.mxu0
        %v2614 = vadd.f32 0.0, %v2613
        %v2615 = vpop.f32.mrf.mxu0
        %2616 = vmatprep.mubr.bf16.mxu0 %v1783
        %2617 = vmatmul.mubr.bf16.gmra.mxu0 %v1719
        %v2618 = vpop.f32.mrf.mxu0
        %v2619 = vadd.f32 0.0, %v2618
        %v2620 = vpop.f32.mrf.mxu0
        %v2621 = vpop.f32.mrf.mxu0
        %v2622 = vadd.f32 0.0, %v2621
        %v2623 = vpop.f32.mrf.mxu0
        %2624 = vdwg.mxu0
        %2625 = vmatprep.subr.bf16.mxu0 0
        %2626 = vmatpush1.bf16.msra.mxu0 %v2343
        %2627 = vmatprep.subr.bf16.mxu0 0
        %2628 = vmatpush1.bf16.msra.mxu0 %v2342
        %2629 = vmatprep.subr.bf16.mxu0 0
        %2630 = vmatpush1.bf16.msra.mxu0 %v2341
        %2631 = vmatprep.subr.bf16.mxu0 0
        %2632 = vmatpush1.bf16.msra.mxu0 %v2340
        %2633 = vmatprep.subr.bf16.mxu0 0
        %2634 = vmatpush1.bf16.msra.mxu0 %v2339
        %2635 = vmatprep.subr.bf16.mxu0 0
        %2636 = vmatpush1.bf16.msra.mxu0 %v2338
        %2637 = vmatprep.subr.bf16.mxu0 0
        %2638 = vmatpush1.bf16.msra.mxu0 %v2337
        %2639 = vmatprep.subr.bf16.mxu0 0
        %2640 = vmatpush1.bf16.msra.mxu0 %v2336
        %2641 = vmatprep.subr.bf16.mxu0 0
        %2642 = vmatpush2.bf16.msra.mxu0 %v2351
        %2643 = vmatprep.subr.bf16.mxu0 0
        %2644 = vmatpush2.bf16.msra.mxu0 %v2350
        %2645 = vmatprep.subr.bf16.mxu0 0
        %2646 = vmatpush2.bf16.msra.mxu0 %v2349
        %2647 = vmatprep.subr.bf16.mxu0 0
        %2648 = vmatpush2.bf16.msra.mxu0 %v2348
        %2649 = vmatprep.subr.bf16.mxu0 0
        %2650 = vmatpush2.bf16.msra.mxu0 %v2347
        %2651 = vmatprep.subr.bf16.mxu0 0
        %2652 = vmatpush2.bf16.msra.mxu0 %v2346
        %2653 = vmatprep.subr.bf16.mxu0 0
        %2654 = vmatpush2.bf16.msra.mxu0 %v2345
        %2655 = vmatprep.subr.bf16.mxu0 0
        %2656 = vmatpush2.bf16.msra.mxu0 %v2344
        %2657 = vmatprep.mubr.bf16.mxu0 %v1705
        %2658 = vmatmul.mubr.bf16.gmra.mxu0 %v1832
        %v2659 = vpop.f32.mrf.mxu0
        %v2660 = vadd.f32 %v2499, %v2659
        %v2661 = vpop.f32.mrf.mxu0
        %v2662 = vpop.f32.mrf.mxu0
        %v2663 = vadd.f32 %v2502, %v2662
        %v2664 = vpop.f32.mrf.mxu0
        %2665 = vmatprep.mubr.bf16.mxu0 %v1706
        %2666 = vmatmul.mubr.bf16.gmra.mxu0 %v1833
        %v2667 = vpop.f32.mrf.mxu0
        %v2668 = vadd.f32 %v2507, %v2667
        %v2669 = vpop.f32.mrf.mxu0
        %v2670 = vpop.f32.mrf.mxu0
        %v2671 = vadd.f32 %v2510, %v2670
        %v2672 = vpop.f32.mrf.mxu0
        %2673 = vmatprep.mubr.bf16.mxu0 %v1707
        %2674 = vmatmul.mubr.bf16.gmra.mxu0 %v1834
        %v2675 = vpop.f32.mrf.mxu0
        %v2676 = vadd.f32 %v2515, %v2675
        %v2677 = vpop.f32.mrf.mxu0
        %v2678 = vpop.f32.mrf.mxu0
        %v2679 = vadd.f32 %v2518, %v2678
        %v2680 = vpop.f32.mrf.mxu0
        %2681 = vmatprep.mubr.bf16.mxu0 %v1708
        %2682 = vmatmul.mubr.bf16.gmra.mxu0 %v1835
        %v2683 = vpop.f32.mrf.mxu0
        %v2684 = vadd.f32 %v2523, %v2683
        %v2685 = vpop.f32.mrf.mxu0
        %v2686 = vpop.f32.mrf.mxu0
        %v2687 = vadd.f32 %v2526, %v2686
        %v2688 = vpop.f32.mrf.mxu0
        %2689 = vmatprep.mubr.bf16.mxu0 %v1709
        %2690 = vmatmul.mubr.bf16.gmra.mxu0 %v1836
        %v2691 = vpop.f32.mrf.mxu0
        %v2692 = vadd.f32 %v2531, %v2691
        %v2693 = vpop.f32.mrf.mxu0
        %v2694 = vpop.f32.mrf.mxu0
        %v2695 = vadd.f32 %v2534, %v2694
        %v2696 = vpop.f32.mrf.mxu0
        %2697 = vmatprep.mubr.bf16.mxu0 %v1710
        %2698 = vmatmul.mubr.bf16.gmra.mxu0 %v1837
        %v2699 = vpop.f32.mrf.mxu0
        %v2700 = vadd.f32 %v2539, %v2699
        %v2701 = vpop.f32.mrf.mxu0
        %v2702 = vpop.f32.mrf.mxu0
        %v2703 = vadd.f32 %v2542, %v2702
        %v2704 = vpop.f32.mrf.mxu0
        %2705 = vmatprep.mubr.bf16.mxu0 %v1711
        %2706 = vmatmul.mubr.bf16.gmra.mxu0 %v1838
        %v2707 = vpop.f32.mrf.mxu0
        %v2708 = vadd.f32 %v2547, %v2707
        %v2709 = vpop.f32.mrf.mxu0
        %v2710 = vpop.f32.mrf.mxu0
        %v2711 = vadd.f32 %v2550, %v2710
        %v2712 = vpop.f32.mrf.mxu0
        %2713 = vmatprep.mubr.bf16.mxu0 %v1712
        %2714 = vmatmul.mubr.bf16.gmra.mxu0 %v1839
        %v2715 = vpop.f32.mrf.mxu0
        %v2716 = vadd.f32 %v2555, %v2715
        %v2717 = vpop.f32.mrf.mxu0
        %v2718 = vpop.f32.mrf.mxu0
        %v2719 = vadd.f32 %v2558, %v2718
        %v2720 = vpop.f32.mrf.mxu0
        %2721 = vmatprep.mubr.bf16.mxu0 %v1713
        %2722 = vmatmul.mubr.bf16.gmra.mxu0 %v1840
        %v2723 = vpop.f32.mrf.mxu0
        %v2724 = vadd.f32 %v2563, %v2723
        %v2725 = vpop.f32.mrf.mxu0
        %v2726 = vpop.f32.mrf.mxu0
        %v2727 = vadd.f32 %v2566, %v2726
        %v2728 = vpop.f32.mrf.mxu0
        %2729 = vmatprep.mubr.bf16.mxu0 %v1714
        %2730 = vmatmul.mubr.bf16.gmra.mxu0 %v1841
        %v2731 = vpop.f32.mrf.mxu0
        %v2732 = vadd.f32 %v2571, %v2731
        %v2733 = vpop.f32.mrf.mxu0
        %v2734 = vpop.f32.mrf.mxu0
        %v2735 = vadd.f32 %v2574, %v2734
        %v2736 = vpop.f32.mrf.mxu0
        %2737 = vmatprep.mubr.bf16.mxu0 %v1715
        %2738 = vmatmul.mubr.bf16.gmra.mxu0 %v1842
        %v2739 = vpop.f32.mrf.mxu0
        %v2740 = vadd.f32 %v2579, %v2739
        %v2741 = vpop.f32.mrf.mxu0
        %v2742 = vpop.f32.mrf.mxu0
        %v2743 = vadd.f32 %v2582, %v2742
        %v2744 = vpop.f32.mrf.mxu0
        %2745 = vmatprep.mubr.bf16.mxu0 %v1716
        %2746 = vmatmul.mubr.bf16.gmra.mxu0 %v1843
        %v2747 = vpop.f32.mrf.mxu0
        %v2748 = vadd.f32 %v2587, %v2747
        %v2749 = vpop.f32.mrf.mxu0
        %v2750 = vpop.f32.mrf.mxu0
        %v2751 = vadd.f32 %v2590, %v2750
        %v2752 = vpop.f32.mrf.mxu0
        %2753 = vmatprep.mubr.bf16.mxu0 %v1717
        %2754 = vmatmul.mubr.bf16.gmra.mxu0 %v1844
        %v2755 = vpop.f32.mrf.mxu0
        %v2756 = vadd.f32 %v2595, %v2755
        %v2757 = vpop.f32.mrf.mxu0
        %v2758 = vpop.f32.mrf.mxu0
        %v2759 = vadd.f32 %v2598, %v2758
        %v2760 = vpop.f32.mrf.mxu0
        %2761 = vmatprep.mubr.bf16.mxu0 %v1718
        %2762 = vmatmul.mubr.bf16.gmra.mxu0 %v1845
        %v2763 = vpop.f32.mrf.mxu0
        %v2764 = vadd.f32 %v2603, %v2763
        %v2765 = vpop.f32.mrf.mxu0
        %v2766 = vpop.f32.mrf.mxu0
        %v2767 = vadd.f32 %v2606, %v2766
        %v2768 = vpop.f32.mrf.mxu0
        %2769 = vmatprep.mubr.bf16.mxu0 %v1719
        %2770 = vmatmul.mubr.bf16.gmra.mxu0 %v1846
        %v2771 = vpop.f32.mrf.mxu0
        %v2772 = vadd.f32 %v2611, %v2771
        %v2773 = vpop.f32.mrf.mxu0
        %v2774 = vpop.f32.mrf.mxu0
        %v2775 = vadd.f32 %v2614, %v2774
        %v2776 = vpop.f32.mrf.mxu0
        %2777 = vmatprep.mubr.bf16.mxu0 %v1866
        %2778 = vmatmul.mubr.bf16.gmra.mxu0 %v1847
        %v2779 = vpop.f32.mrf.mxu0
        %v2780 = vadd.f32 %v2619, %v2779
        %v2781 = vpop.f32.mrf.mxu0
        %v2782 = vpop.f32.mrf.mxu0
        %v2783 = vadd.f32 %v2622, %v2782
        %v2784 = vpop.f32.mrf.mxu0
        %2785 = vdwg.mxu0
        %2786 = vmatprep.subr.bf16.mxu0 0
        %2787 = vmatpush1.bf16.msra.mxu0 %v2359
        %2788 = vmatprep.subr.bf16.mxu0 0
        %2789 = vmatpush1.bf16.msra.mxu0 %v2358
        %2790 = vmatprep.subr.bf16.mxu0 0
        %2791 = vmatpush1.bf16.msra.mxu0 %v2357
        %2792 = vmatprep.subr.bf16.mxu0 0
        %2793 = vmatpush1.bf16.msra.mxu0 %v2356
        %2794 = vmatprep.subr.bf16.mxu0 0
        %2795 = vmatpush1.bf16.msra.mxu0 %v2355
        %2796 = vmatprep.subr.bf16.mxu0 0
        %2797 = vmatpush1.bf16.msra.mxu0 %v2354
        %2798 = vmatprep.subr.bf16.mxu0 0
        %2799 = vmatpush1.bf16.msra.mxu0 %v2353
        %2800 = vmatprep.subr.bf16.mxu0 0
        %2801 = vmatpush1.bf16.msra.mxu0 %v2352
        %2802 = vmatprep.subr.bf16.mxu0 0
        %2803 = vmatpush2.bf16.msra.mxu0 %v2367
        %2804 = vmatprep.subr.bf16.mxu0 0
        %2805 = vmatpush2.bf16.msra.mxu0 %v2366
        %2806 = vmatprep.subr.bf16.mxu0 0
        %2807 = vmatpush2.bf16.msra.mxu0 %v2365
        %2808 = vmatprep.subr.bf16.mxu0 0
        %2809 = vmatpush2.bf16.msra.mxu0 %v2364
        %2810 = vmatprep.subr.bf16.mxu0 0
        %2811 = vmatpush2.bf16.msra.mxu0 %v2363
        %2812 = vmatprep.subr.bf16.mxu0 0
        %2813 = vmatpush2.bf16.msra.mxu0 %v2362
        %2814 = vmatprep.subr.bf16.mxu0 0
        %2815 = vmatpush2.bf16.msra.mxu0 %v2361
        %2816 = vmatprep.subr.bf16.mxu0 0
        %2817 = vmatpush2.bf16.msra.mxu0 %v2360
        %2818 = vmatprep.mubr.bf16.mxu0 %v1833
        %2819 = vmatmul.mubr.bf16.gmra.mxu0 %v1769
        %v2820 = vpop.f32.mrf.mxu0
        %v2821 = vadd.f32 %v2660, %v2820
        %v2822 = vpop.f32.mrf.mxu0
        %v2823 = vpop.f32.mrf.mxu0
        %v2824 = vadd.f32 %v2663, %v2823
        %v2825 = vpop.f32.mrf.mxu0
        %2826 = vmatprep.mubr.bf16.mxu0 %v1834
        %2827 = vmatmul.mubr.bf16.gmra.mxu0 %v1770
        %v2828 = vpop.f32.mrf.mxu0
        %v2829 = vadd.f32 %v2668, %v2828
        %v2830 = vpop.f32.mrf.mxu0
        %v2831 = vpop.f32.mrf.mxu0
        %v2832 = vadd.f32 %v2671, %v2831
        %v2833 = vpop.f32.mrf.mxu0
        %2834 = vmatprep.mubr.bf16.mxu0 %v1835
        %2835 = vmatmul.mubr.bf16.gmra.mxu0 %v1771
        %v2836 = vpop.f32.mrf.mxu0
        %v2837 = vadd.f32 %v2676, %v2836
        %v2838 = vpop.f32.mrf.mxu0
        %v2839 = vpop.f32.mrf.mxu0
        %v2840 = vadd.f32 %v2679, %v2839
        %v2841 = vpop.f32.mrf.mxu0
        %2842 = vmatprep.mubr.bf16.mxu0 %v1836
        %2843 = vmatmul.mubr.bf16.gmra.mxu0 %v1772
        %v2844 = vpop.f32.mrf.mxu0
        %v2845 = vadd.f32 %v2684, %v2844
        %v2846 = vpop.f32.mrf.mxu0
        %v2847 = vpop.f32.mrf.mxu0
        %v2848 = vadd.f32 %v2687, %v2847
        %v2849 = vpop.f32.mrf.mxu0
        %2850 = vmatprep.mubr.bf16.mxu0 %v1837
        %2851 = vmatmul.mubr.bf16.gmra.mxu0 %v1773
        %v2852 = vpop.f32.mrf.mxu0
        %v2853 = vadd.f32 %v2692, %v2852
        %v2854 = vpop.f32.mrf.mxu0
        %v2855 = vpop.f32.mrf.mxu0
        %v2856 = vadd.f32 %v2695, %v2855
        %v2857 = vpop.f32.mrf.mxu0
        %2858 = vmatprep.mubr.bf16.mxu0 %v1838
        %2859 = vmatmul.mubr.bf16.gmra.mxu0 %v1774
        %v2860 = vpop.f32.mrf.mxu0
        %v2861 = vadd.f32 %v2700, %v2860
        %v2862 = vpop.f32.mrf.mxu0
        %v2863 = vpop.f32.mrf.mxu0
        %v2864 = vadd.f32 %v2703, %v2863
        %v2865 = vpop.f32.mrf.mxu0
        %2866 = vmatprep.mubr.bf16.mxu0 %v1839
        %2867 = vmatmul.mubr.bf16.gmra.mxu0 %v1775
        %v2868 = vpop.f32.mrf.mxu0
        %v2869 = vadd.f32 %v2708, %v2868
        %v2870 = vpop.f32.mrf.mxu0
        %v2871 = vpop.f32.mrf.mxu0
        %v2872 = vadd.f32 %v2711, %v2871
        %v2873 = vpop.f32.mrf.mxu0
        %2874 = vmatprep.mubr.bf16.mxu0 %v1840
        %2875 = vmatmul.mubr.bf16.gmra.mxu0 %v1776
        %v2876 = vpop.f32.mrf.mxu0
        %v2877 = vadd.f32 %v2716, %v2876
        %v2878 = vpop.f32.mrf.mxu0
        %v2879 = vpop.f32.mrf.mxu0
        %v2880 = vadd.f32 %v2719, %v2879
        %v2881 = vpop.f32.mrf.mxu0
        %2882 = vmatprep.mubr.bf16.mxu0 %v1841
        %2883 = vmatmul.mubr.bf16.gmra.mxu0 %v1777
        %v2884 = vpop.f32.mrf.mxu0
        %v2885 = vadd.f32 %v2724, %v2884
        %v2886 = vpop.f32.mrf.mxu0
        %v2887 = vpop.f32.mrf.mxu0
        %v2888 = vadd.f32 %v2727, %v2887
        %v2889 = vpop.f32.mrf.mxu0
        %2890 = vmatprep.mubr.bf16.mxu0 %v1842
        %2891 = vmatmul.mubr.bf16.gmra.mxu0 %v1778
        %v2892 = vpop.f32.mrf.mxu0
        %v2893 = vadd.f32 %v2732, %v2892
        %v2894 = vpop.f32.mrf.mxu0
        %v2895 = vpop.f32.mrf.mxu0
        %v2896 = vadd.f32 %v2735, %v2895
        %v2897 = vpop.f32.mrf.mxu0
        %2898 = vmatprep.mubr.bf16.mxu0 %v1843
        %2899 = vmatmul.mubr.bf16.gmra.mxu0 %v1779
        %v2900 = vpop.f32.mrf.mxu0
        %v2901 = vadd.f32 %v2740, %v2900
        %v2902 = vpop.f32.mrf.mxu0
        %v2903 = vpop.f32.mrf.mxu0
        %v2904 = vadd.f32 %v2743, %v2903
        %v2905 = vpop.f32.mrf.mxu0
        %2906 = vmatprep.mubr.bf16.mxu0 %v1844
        %2907 = vmatmul.mubr.bf16.gmra.mxu0 %v1780
        %v2908 = vpop.f32.mrf.mxu0
        %v2909 = vadd.f32 %v2748, %v2908
        %v2910 = vpop.f32.mrf.mxu0
        %v2911 = vpop.f32.mrf.mxu0
        %v2912 = vadd.f32 %v2751, %v2911
        %v2913 = vpop.f32.mrf.mxu0
        %2914 = vmatprep.mubr.bf16.mxu0 %v1845
        %2915 = vmatmul.mubr.bf16.gmra.mxu0 %v1781
        %v2916 = vpop.f32.mrf.mxu0
        %v2917 = vadd.f32 %v2756, %v2916
        %v2918 = vpop.f32.mrf.mxu0
        %v2919 = vpop.f32.mrf.mxu0
        %v2920 = vadd.f32 %v2759, %v2919
        %v2921 = vpop.f32.mrf.mxu0
        %2922 = vmatprep.mubr.bf16.mxu0 %v1846
        %2923 = vmatmul.mubr.bf16.gmra.mxu0 %v1782
        %v2924 = vpop.f32.mrf.mxu0
        %v2925 = vadd.f32 %v2764, %v2924
        %v2926 = vpop.f32.mrf.mxu0
        %v2927 = vpop.f32.mrf.mxu0
        %v2928 = vadd.f32 %v2767, %v2927
        %v2929 = vpop.f32.mrf.mxu0
        %2930 = vmatprep.mubr.bf16.mxu0 %v1847
        %2931 = vmatmul.mubr.bf16.gmra.mxu0 %v1783
        %v2932 = vpop.f32.mrf.mxu0
        %v2933 = vadd.f32 %v2772, %v2932
        %v2934 = vpop.f32.mrf.mxu0
        %v2935 = vpop.f32.mrf.mxu0
        %v2936 = vadd.f32 %v2775, %v2935
        %v2937 = vpop.f32.mrf.mxu0
        %2938 = vmatprep.mubr.bf16.mxu0 %v1874
        %2939 = vmatmul.mubr.bf16.gmra.mxu0 %v1870
        %v2940 = vpop.f32.mrf.mxu0
        %v2941 = vadd.f32 %v2780, %v2940
        %v2942 = vpop.f32.mrf.mxu0
        %v2943 = vpop.f32.mrf.mxu0
        %v2944 = vadd.f32 %v2783, %v2943
        %v2945 = vpop.f32.mrf.mxu0
        %2946 = vdwg.mxu0
        %2947 = vmatprep.subr.bf16.mxu0 0
        %2948 = vmatpush1.bf16.msra.mxu0 %v2375
        %2949 = vmatprep.subr.bf16.mxu0 0
        %2950 = vmatpush1.bf16.msra.mxu0 %v2374
        %2951 = vmatprep.subr.bf16.mxu0 0
        %2952 = vmatpush1.bf16.msra.mxu0 %v2373
        %2953 = vmatprep.subr.bf16.mxu0 0
        %2954 = vmatpush1.bf16.msra.mxu0 %v2372
        %2955 = vmatprep.subr.bf16.mxu0 0
        %2956 = vmatpush1.bf16.msra.mxu0 %v2371
        %2957 = vmatprep.subr.bf16.mxu0 0
        %2958 = vmatpush1.bf16.msra.mxu0 %v2370
        %2959 = vmatprep.subr.bf16.mxu0 0
        %2960 = vmatpush1.bf16.msra.mxu0 %v2369
        %2961 = vmatprep.subr.bf16.mxu0 0
        %2962 = vmatpush1.bf16.msra.mxu0 %v2368
        %2963 = vmatprep.subr.bf16.mxu0 0
        %2964 = vmatpush2.bf16.msra.mxu0 %v2383
        %2965 = vmatprep.subr.bf16.mxu0 0
        %2966 = vmatpush2.bf16.msra.mxu0 %v2382
        %2967 = vmatprep.subr.bf16.mxu0 0
        %2968 = vmatpush2.bf16.msra.mxu0 %v2381
        %2969 = vmatprep.subr.bf16.mxu0 0
        %2970 = vmatpush2.bf16.msra.mxu0 %v2380
        %2971 = vmatprep.subr.bf16.mxu0 0
        %2972 = vmatpush2.bf16.msra.mxu0 %v2379
        %2973 = vmatprep.subr.bf16.mxu0 0
        %2974 = vmatpush2.bf16.msra.mxu0 %v2378
        %2975 = vmatprep.subr.bf16.mxu0 0
        %2976 = vmatpush2.bf16.msra.mxu0 %v2377
        %2977 = vmatprep.subr.bf16.mxu0 0
        %2978 = vmatpush2.bf16.msra.mxu0 %v2376
        %2979 = vmatprep.mubr.bf16.mxu0 %v1770
        %2980 = vmatmul.mubr.bf16.gmra.mxu0 %v1706
        %v2981 = vpop.f32.mrf.mxu0
        %v2982 = vadd.f32 %v2821, %v2981
        %v2983 = vpop.f32.mrf.mxu0
        %v2984 = vpop.f32.mrf.mxu0
        %v2985 = vadd.f32 %v2824, %v2984
        %v2986 = vpop.f32.mrf.mxu0
        %2987 = vmatprep.mubr.bf16.mxu0 %v1771
        %2988 = vmatmul.mubr.bf16.gmra.mxu0 %v1707
        %v2989 = vpop.f32.mrf.mxu0
        %v2990 = vadd.f32 %v2829, %v2989
        %v2991 = vpop.f32.mrf.mxu0
        %v2992 = vpop.f32.mrf.mxu0
        %v2993 = vadd.f32 %v2832, %v2992
        %v2994 = vpop.f32.mrf.mxu0
        %2995 = vmatprep.mubr.bf16.mxu0 %v1772
        %2996 = vmatmul.mubr.bf16.gmra.mxu0 %v1708
        %v2997 = vpop.f32.mrf.mxu0
        %v2998 = vadd.f32 %v2837, %v2997
        %v2999 = vpop.f32.mrf.mxu0
        %v3000 = vpop.f32.mrf.mxu0
        %v3001 = vadd.f32 %v2840, %v3000
        %v3002 = vpop.f32.mrf.mxu0
        %3003 = vmatprep.mubr.bf16.mxu0 %v1773
        %3004 = vmatmul.mubr.bf16.gmra.mxu0 %v1709
        %v3005 = vpop.f32.mrf.mxu0
        %v3006 = vadd.f32 %v2845, %v3005
        %v3007 = vpop.f32.mrf.mxu0
        %v3008 = vpop.f32.mrf.mxu0
        %v3009 = vadd.f32 %v2848, %v3008
        %v3010 = vpop.f32.mrf.mxu0
        %3011 = vmatprep.mubr.bf16.mxu0 %v1774
        %3012 = vmatmul.mubr.bf16.gmra.mxu0 %v1710
        %v3013 = vpop.f32.mrf.mxu0
        %v3014 = vadd.f32 %v2853, %v3013
        %v3015 = vpop.f32.mrf.mxu0
        %v3016 = vpop.f32.mrf.mxu0
        %v3017 = vadd.f32 %v2856, %v3016
        %v3018 = vpop.f32.mrf.mxu0
        %3019 = vmatprep.mubr.bf16.mxu0 %v1775
        %3020 = vmatmul.mubr.bf16.gmra.mxu0 %v1711
        %v3021 = vpop.f32.mrf.mxu0
        %v3022 = vadd.f32 %v2861, %v3021
        %v3023 = vpop.f32.mrf.mxu0
        %v3024 = vpop.f32.mrf.mxu0
        %v3025 = vadd.f32 %v2864, %v3024
        %v3026 = vpop.f32.mrf.mxu0
        %3027 = vmatprep.mubr.bf16.mxu0 %v1776
        %3028 = vmatmul.mubr.bf16.gmra.mxu0 %v1712
        %v3029 = vpop.f32.mrf.mxu0
        %v3030 = vadd.f32 %v2869, %v3029
        %v3031 = vpop.f32.mrf.mxu0
        %v3032 = vpop.f32.mrf.mxu0
        %v3033 = vadd.f32 %v2872, %v3032
        %v3034 = vpop.f32.mrf.mxu0
        %3035 = vmatprep.mubr.bf16.mxu0 %v1777
        %3036 = vmatmul.mubr.bf16.gmra.mxu0 %v1713
        %v3037 = vpop.f32.mrf.mxu0
        %v3038 = vadd.f32 %v2877, %v3037
        %v3039 = vpop.f32.mrf.mxu0
        %v3040 = vpop.f32.mrf.mxu0
        %v3041 = vadd.f32 %v2880, %v3040
        %v3042 = vpop.f32.mrf.mxu0
        %3043 = vmatprep.mubr.bf16.mxu0 %v1778
        %3044 = vmatmul.mubr.bf16.gmra.mxu0 %v1714
        %v3045 = vpop.f32.mrf.mxu0
        %v3046 = vadd.f32 %v2885, %v3045
        %v3047 = vpop.f32.mrf.mxu0
        %v3048 = vpop.f32.mrf.mxu0
        %v3049 = vadd.f32 %v2888, %v3048
        %v3050 = vpop.f32.mrf.mxu0
        %3051 = vmatprep.mubr.bf16.mxu0 %v1779
        %3052 = vmatmul.mubr.bf16.gmra.mxu0 %v1715
        %v3053 = vpop.f32.mrf.mxu0
        %v3054 = vadd.f32 %v2893, %v3053
        %v3055 = vpop.f32.mrf.mxu0
        %v3056 = vpop.f32.mrf.mxu0
        %v3057 = vadd.f32 %v2896, %v3056
        %v3058 = vpop.f32.mrf.mxu0
        %3059 = vmatprep.mubr.bf16.mxu0 %v1780
        %3060 = vmatmul.mubr.bf16.gmra.mxu0 %v1716
        %v3061 = vpop.f32.mrf.mxu0
        %v3062 = vadd.f32 %v2901, %v3061
        %v3063 = vpop.f32.mrf.mxu0
        %v3064 = vpop.f32.mrf.mxu0
        %v3065 = vadd.f32 %v2904, %v3064
        %v3066 = vpop.f32.mrf.mxu0
        %3067 = vmatprep.mubr.bf16.mxu0 %v1781
        %3068 = vmatmul.mubr.bf16.gmra.mxu0 %v1717
        %v3069 = vpop.f32.mrf.mxu0
        %v3070 = vadd.f32 %v2909, %v3069
        %v3071 = vpop.f32.mrf.mxu0
        %v3072 = vpop.f32.mrf.mxu0
        %v3073 = vadd.f32 %v2912, %v3072
        %v3074 = vpop.f32.mrf.mxu0
        %3075 = vmatprep.mubr.bf16.mxu0 %v1782
        %3076 = vmatmul.mubr.bf16.gmra.mxu0 %v1718
        %v3077 = vpop.f32.mrf.mxu0
        %v3078 = vadd.f32 %v2917, %v3077
        %v3079 = vpop.f32.mrf.mxu0
        %v3080 = vpop.f32.mrf.mxu0
        %v3081 = vadd.f32 %v2920, %v3080
        %v3082 = vpop.f32.mrf.mxu0
        %3083 = vmatprep.mubr.bf16.mxu0 %v1783
        %3084 = vmatmul.mubr.bf16.gmra.mxu0 %v1719
        %v3085 = vpop.f32.mrf.mxu0
        %v3086 = vadd.f32 %v2925, %v3085
        %v3087 = vpop.f32.mrf.mxu0
        %v3088 = vpop.f32.mrf.mxu0
        %v3089 = vadd.f32 %v2928, %v3088
        %v3090 = vpop.f32.mrf.mxu0
        %3091 = vmatprep.mubr.bf16.mxu0 %v1870
        %3092 = vmatmul.mubr.bf16.gmra.mxu0 %v1866
        %v3093 = vpop.f32.mrf.mxu0
        %v3094 = vadd.f32 %v2933, %v3093
        %v3095 = vpop.f32.mrf.mxu0
        %v3096 = vpop.f32.mrf.mxu0
        %v3097 = vadd.f32 %v2936, %v3096
        %v3098 = vpop.f32.mrf.mxu0
        %3099 = vmatprep.mubr.bf16.mxu0 %v1882
        %3100 = vmatmul.mubr.bf16.gmra.mxu0 %v1878
        %v3101 = vpop.f32.mrf.mxu0
        %v3102 = vadd.f32 %v2941, %v3101
        %v3103 = vpop.f32.mrf.mxu0
        %v3104 = vpop.f32.mrf.mxu0
        %v3105 = vadd.f32 %v2944, %v3104
        %v3106 = vpop.f32.mrf.mxu0
        %3107 = vdwg.mxu0
        %3108 = vmatprep.subr.bf16.mxu0 0
        %3109 = vmatpush1.bf16.msra.mxu0 %v2391
        %3110 = vmatprep.subr.bf16.mxu0 0
        %3111 = vmatpush1.bf16.msra.mxu0 %v2390
        %3112 = vmatprep.subr.bf16.mxu0 0
        %3113 = vmatpush1.bf16.msra.mxu0 %v2389
        %3114 = vmatprep.subr.bf16.mxu0 0
        %3115 = vmatpush1.bf16.msra.mxu0 %v2388
        %3116 = vmatprep.subr.bf16.mxu0 0
        %3117 = vmatpush1.bf16.msra.mxu0 %v2387
        %3118 = vmatprep.subr.bf16.mxu0 0
        %3119 = vmatpush1.bf16.msra.mxu0 %v2386
        %3120 = vmatprep.subr.bf16.mxu0 0
        %3121 = vmatpush1.bf16.msra.mxu0 %v2385
        %3122 = vmatprep.subr.bf16.mxu0 0
        %3123 = vmatpush1.bf16.msra.mxu0 %v2384
        %3124 = vmatprep.subr.bf16.mxu0 0
        %3125 = vmatpush2.bf16.msra.mxu0 0
        %3126 = vmatprep.subr.bf16.mxu0 0
        %3127 = vmatpush2.bf16.msra.mxu0 0
        %3128 = vmatprep.subr.bf16.mxu0 0
        %3129 = vmatpush2.bf16.msra.mxu0 0
        %3130 = vmatprep.subr.bf16.mxu0 0
        %3131 = vmatpush2.bf16.msra.mxu0 0
        %3132 = vmatprep.subr.bf16.mxu0 0
        %3133 = vmatpush2.bf16.msra.mxu0 0
        %3134 = vmatprep.subr.bf16.mxu0 0
        %3135 = vmatpush2.bf16.msra.mxu0 0
        %3136 = vmatprep.subr.bf16.mxu0 0
        %3137 = vmatpush2.bf16.msra.mxu0 0
        %3138 = vmatprep.subr.bf16.mxu0 0
        %3139 = vmatpush2.bf16.msra.mxu0 0
        %3140 = vmatprep.mubr.bf16.mxu0 0
        %3141 = vmatmul.mubr.bf16.gmra.mxu0 %v1834
        %v3142 = vpop.f32.mrf.mxu0
        %v3143 = vadd.f32 %v2982, %v3142
        %v3144 = vpop.f32.mrf.mxu0
        %v3145 = vpop.f32.mrf.mxu0
        %v3146 = vadd.f32 %v2985, %v3145
        %v3147 = vpop.f32.mrf.mxu0
        %3148 = vmatprep.mubr.bf16.mxu0 0
        %3149 = vmatmul.mubr.bf16.gmra.mxu0 %v1835
        %v3150 = vpop.f32.mrf.mxu0
        %v3151 = vadd.f32 %v2990, %v3150
        %v3152 = vpop.f32.mrf.mxu0
        %v3153 = vpop.f32.mrf.mxu0
        %v3154 = vadd.f32 %v2993, %v3153
        %v3155 = vpop.f32.mrf.mxu0
        %3156 = vmatprep.mubr.bf16.mxu0 0
        %3157 = vmatmul.mubr.bf16.gmra.mxu0 %v1836
        %v3158 = vpop.f32.mrf.mxu0
        %v3159 = vadd.f32 %v2998, %v3158
        %v3160 = vpop.f32.mrf.mxu0
        %v3161 = vpop.f32.mrf.mxu0
        %v3162 = vadd.f32 %v3001, %v3161
        %v3163 = vpop.f32.mrf.mxu0
        %3164 = vmatprep.mubr.bf16.mxu0 0
        %3165 = vmatmul.mubr.bf16.gmra.mxu0 %v1837
        %v3166 = vpop.f32.mrf.mxu0
        %v3167 = vadd.f32 %v3006, %v3166
        %v3168 = vpop.f32.mrf.mxu0
        %v3169 = vpop.f32.mrf.mxu0
        %v3170 = vadd.f32 %v3009, %v3169
        %v3171 = vpop.f32.mrf.mxu0
        %3172 = vmatprep.mubr.bf16.mxu0 0
        %3173 = vmatmul.mubr.bf16.gmra.mxu0 %v1838
        %v3174 = vpop.f32.mrf.mxu0
        %v3175 = vadd.f32 %v3014, %v3174
        %v3176 = vpop.f32.mrf.mxu0
        %v3177 = vpop.f32.mrf.mxu0
        %v3178 = vadd.f32 %v3017, %v3177
        %v3179 = vpop.f32.mrf.mxu0
        %3180 = vmatprep.mubr.bf16.mxu0 0
        %3181 = vmatmul.mubr.bf16.gmra.mxu0 %v1839
        %v3182 = vpop.f32.mrf.mxu0
        %v3183 = vadd.f32 %v3022, %v3182
        %v3184 = vpop.f32.mrf.mxu0
        %v3185 = vpop.f32.mrf.mxu0
        %v3186 = vadd.f32 %v3025, %v3185
        %v3187 = vpop.f32.mrf.mxu0
        %3188 = vmatprep.mubr.bf16.mxu0 0
        %3189 = vmatmul.mubr.bf16.gmra.mxu0 %v1840
        %v3190 = vpop.f32.mrf.mxu0
        %v3191 = vadd.f32 %v3030, %v3190
        %v3192 = vpop.f32.mrf.mxu0
        %v3193 = vpop.f32.mrf.mxu0
        %v3194 = vadd.f32 %v3033, %v3193
        %v3195 = vpop.f32.mrf.mxu0
        %3196 = vmatprep.mubr.bf16.mxu0 0
        %3197 = vmatmul.mubr.bf16.gmra.mxu0 %v1841
        %v3198 = vpop.f32.mrf.mxu0
        %v3199 = vadd.f32 %v3038, %v3198
        %v3200 = vpop.f32.mrf.mxu0
        %v3201 = vpop.f32.mrf.mxu0
        %v3202 = vadd.f32 %v3041, %v3201
        %v3203 = vpop.f32.mrf.mxu0
        %3204 = vmatprep.mubr.bf16.mxu0 0
        %3205 = vmatmul.mubr.bf16.gmra.mxu0 %v1842
        %v3206 = vpop.f32.mrf.mxu0
        %v3207 = vadd.f32 %v3046, %v3206
        %v3208 = vpop.f32.mrf.mxu0
        %v3209 = vpop.f32.mrf.mxu0
        %v3210 = vadd.f32 %v3049, %v3209
        %v3211 = vpop.f32.mrf.mxu0
        %3212 = vmatprep.mubr.bf16.mxu0 0
        %3213 = vmatmul.mubr.bf16.gmra.mxu0 %v1843
        %v3214 = vpop.f32.mrf.mxu0
        %v3215 = vadd.f32 %v3054, %v3214
        %v3216 = vpop.f32.mrf.mxu0
        %v3217 = vpop.f32.mrf.mxu0
        %v3218 = vadd.f32 %v3057, %v3217
        %v3219 = vpop.f32.mrf.mxu0
        %3220 = vmatprep.mubr.bf16.mxu0 0
        %3221 = vmatmul.mubr.bf16.gmra.mxu0 %v1844
        %v3222 = vpop.f32.mrf.mxu0
        %v3223 = vadd.f32 %v3062, %v3222
        %v3224 = vpop.f32.mrf.mxu0
        %v3225 = vpop.f32.mrf.mxu0
        %v3226 = vadd.f32 %v3065, %v3225
        %v3227 = vpop.f32.mrf.mxu0
        %3228 = vmatprep.mubr.bf16.mxu0 0
        %3229 = vmatmul.mubr.bf16.gmra.mxu0 %v1845
        %v3230 = vpop.f32.mrf.mxu0
        %v3231 = vadd.f32 %v3070, %v3230
        %v3232 = vpop.f32.mrf.mxu0
        %v3233 = vpop.f32.mrf.mxu0
        %v3234 = vadd.f32 %v3073, %v3233
        %v3235 = vpop.f32.mrf.mxu0
        %3236 = vmatprep.mubr.bf16.mxu0 0
        %3237 = vmatmul.mubr.bf16.gmra.mxu0 %v1846
        %v3238 = vpop.f32.mrf.mxu0
        %v3239 = vadd.f32 %v3078, %v3238
        %v3240 = vpop.f32.mrf.mxu0
        %v3241 = vpop.f32.mrf.mxu0
        %v3242 = vadd.f32 %v3081, %v3241
        %v3243 = vpop.f32.mrf.mxu0
        %3244 = vmatprep.mubr.bf16.mxu0 0
        %3245 = vmatmul.mubr.bf16.gmra.mxu0 %v1847
        %v3246 = vpop.f32.mrf.mxu0
        %v3247 = vadd.f32 %v3086, %v3246
        %v3248 = vpop.f32.mrf.mxu0
        %v3249 = vpop.f32.mrf.mxu0
        %v3250 = vadd.f32 %v3089, %v3249
        %v3251 = vpop.f32.mrf.mxu0
        %3252 = vmatprep.mubr.bf16.mxu0 0
        %3253 = vmatmul.mubr.bf16.gmra.mxu0 %v1874
        %v3254 = vpop.f32.mrf.mxu0
        %v3255 = vadd.f32 %v3094, %v3254
        %v3256 = vpop.f32.mrf.mxu0
        %v3257 = vpop.f32.mrf.mxu0
        %v3258 = vadd.f32 %v3097, %v3257
        %v3259 = vpop.f32.mrf.mxu0
        %3260 = vmatprep.mubr.bf16.mxu0 0
        %3261 = vmatmul.mubr.bf16.gmra.mxu0 %v1886
        %v3262 = vpop.f32.mrf.mxu0
        %v3263 = vadd.f32 %v3102, %v3262
        %v3264 = vpop.f32.mrf.mxu0
        %v3265 = vpop.f32.mrf.mxu0
        %v3266 = vadd.f32 %v3105, %v3265
        %v3267 = vpop.f32.mrf.mxu0
        %3268 = vdwg.mxu0
        %v3269 = vld [vmem:[%s2] sm:$0x1]
        %v3271 = vlaneseq
        %v3272 = vshrl.u32 %v3271, 7
        %v3273 = vsub.s32 0, %v3272
        %v3274 = vrot.slane %v3269, %v3273
        %v3276 = vmul.f32 %v3143, %v3274
        %v3277 = vmul.f32 %v3146, %v3274
        %v3278 = vmul.f32 %v3151, %v3274
        %v3279 = vmul.f32 %v3154, %v3274
        %v3280 = vmul.f32 %v3159, %v3274
        %v3281 = vmul.f32 %v3162, %v3274
        %v3282 = vmul.f32 %v3167, %v3274
        %v3283 = vmul.f32 %v3170, %v3274
        %v3284 = vmul.f32 %v3175, %v3274
        %v3285 = vmul.f32 %v3178, %v3274
        %v3286 = vmul.f32 %v3183, %v3274
        %v3287 = vmul.f32 %v3186, %v3274
        %v3288 = vmul.f32 %v3191, %v3274
        %v3289 = vmul.f32 %v3194, %v3274
        %v3290 = vmul.f32 %v3199, %v3274
        %v3291 = vmul.f32 %v3202, %v3274
        %v3292 = vmul.f32 %v3207, %v3274
        %v3293 = vmul.f32 %v3210, %v3274
        %v3294 = vmul.f32 %v3215, %v3274
        %v3295 = vmul.f32 %v3218, %v3274
        %v3296 = vmul.f32 %v3223, %v3274
        %v3297 = vmul.f32 %v3226, %v3274
        %v3298 = vmul.f32 %v3231, %v3274
        %v3299 = vmul.f32 %v3234, %v3274
        %v3300 = vmul.f32 %v3239, %v3274
        %v3301 = vmul.f32 %v3242, %v3274
        %v3302 = vmul.f32 %v3247, %v3274
        %v3303 = vmul.f32 %v3250, %v3274
        %v3304 = vmul.f32 %v3255, %v3274
        %v3305 = vmul.f32 %v3258, %v3274
        %v3306 = vmul.f32 %v3263, %v3274
        %v3307 = vmul.f32 %v3266, %v3274
        %v3308 = vld [vmem:[%s3] sm:$0x1]
        %v3310 = vlaneseq
        %v3311 = vshrl.u32 %v3310, 7
        %v3312 = vsub.s32 0, %v3311
        %v3313 = vrot.slane %v3308, %v3312
        %v3315 = vadd.f32 %v3276, %v3313
        %v3316 = vadd.f32 %v3277, %v3313
        %v3317 = vadd.f32 %v3278, %v3313
        %v3318 = vadd.f32 %v3279, %v3313
        %v3319 = vadd.f32 %v3280, %v3313
        %v3320 = vadd.f32 %v3281, %v3313
        %v3321 = vadd.f32 %v3282, %v3313
        %v3322 = vadd.f32 %v3283, %v3313
        %v3323 = vadd.f32 %v3284, %v3313
        %v3324 = vadd.f32 %v3285, %v3313
        %v3325 = vadd.f32 %v3286, %v3313
        %v3326 = vadd.f32 %v3287, %v3313
        %v3327 = vadd.f32 %v3288, %v3313
        %v3328 = vadd.f32 %v3289, %v3313
        %v3329 = vadd.f32 %v3290, %v3313
        %v3330 = vadd.f32 %v3291, %v3313
        %v3331 = vadd.f32 %v3292, %v3313
        %v3332 = vadd.f32 %v3293, %v3313
        %v3333 = vadd.f32 %v3294, %v3313
        %v3334 = vadd.f32 %v3295, %v3313
        %v3335 = vadd.f32 %v3296, %v3313
        %v3336 = vadd.f32 %v3297, %v3313
        %v3337 = vadd.f32 %v3298, %v3313
        %v3338 = vadd.f32 %v3299, %v3313
        %v3339 = vadd.f32 %v3300, %v3313
        %v3340 = vadd.f32 %v3301, %v3313
        %v3341 = vadd.f32 %v3302, %v3313
        %v3342 = vadd.f32 %v3303, %v3313
        %v3343 = vadd.f32 %v3304, %v3313
        %v3344 = vadd.f32 %v3305, %v3313
        %v3345 = vadd.f32 %v3306, %v3313
        %v3346 = vadd.f32 %v3307, %v3313
        %v3347 = vmax.f32 %v3315, 0.0
        %v3348 = vmax.f32 %v3316, 0.0
        %v3349 = vmax.f32 %v3317, 0.0
        %v3350 = vmax.f32 %v3318, 0.0
        %v3351 = vmax.f32 %v3319, 0.0
        %v3352 = vmax.f32 %v3320, 0.0
        %v3353 = vmax.f32 %v3321, 0.0
        %v3354 = vmax.f32 %v3322, 0.0
        %v3355 = vmax.f32 %v3323, 0.0
        %v3356 = vmax.f32 %v3324, 0.0
        %v3357 = vmax.f32 %v3325, 0.0
        %v3358 = vmax.f32 %v3326, 0.0
        %v3359 = vmax.f32 %v3327, 0.0
        %v3360 = vmax.f32 %v3328, 0.0
        %v3361 = vmax.f32 %v3329, 0.0
        %v3362 = vmax.f32 %v3330, 0.0
        %v3363 = vmax.f32 %v3331, 0.0
        %v3364 = vmax.f32 %v3332, 0.0
        %v3365 = vmax.f32 %v3333, 0.0
        %v3366 = vmax.f32 %v3334, 0.0
        %v3367 = vmax.f32 %v3335, 0.0
        %v3368 = vmax.f32 %v3336, 0.0
        %v3369 = vmax.f32 %v3337, 0.0
        %v3370 = vmax.f32 %v3338, 0.0
        %v3371 = vmax.f32 %v3339, 0.0
        %v3372 = vmax.f32 %v3340, 0.0
        %v3373 = vmax.f32 %v3341, 0.0
        %v3374 = vmax.f32 %v3342, 0.0
        %v3375 = vmax.f32 %v3343, 0.0
        %v3376 = vmax.f32 %v3344, 0.0
        %v3377 = vmax.f32 %v3345, 0.0
        %v3378 = vmax.f32 %v3346, 0.0
        %3379 = vst [vmem:[#allocation3] sm:$0xf] 0
        %3380 = vst [vmem:[#allocation3 + $0x4] sm:$0xf] 0
        %3381 = vst [vmem:[#allocation3 + $0x8] sm:$0x1] 0
        %s3382 = scalar_lea.vmem [#allocation3], 204
        %3383 = vst [vmem:[%s3382] sm:$0xf] 0
        %3384 = vst [vmem:[%s3382 + $0x4] sm:$0xf] 0
        %3385 = vst [vmem:[%s3382 + $0x8] sm:$0x1] 0
        %s3386 = scalar_lea.vmem [#allocation3], 12
        %v3387 = vld [vmem:[%s3386] sm:$0x1]
        %v3388 = vsel %vm433, 0, %v3387
        %3389 = vst [vmem:[%s3386] sm:$0x1] %v3388
        %v3390 = vld [vmem:[%s3386 + $0xc] sm:$0x1]
        %v3391 = vsel %vm433, 0, %v3390
        %3392 = vst [vmem:[%s3386 + $0xc] sm:$0x1] %v3391
        %v3393 = vld [vmem:[%s3386 + $0x18] sm:$0x1]
        %v3394 = vsel %vm433, 0, %v3393
        %3395 = vst [vmem:[%s3386 + $0x18] sm:$0x1] %v3394
        %v3396 = vld [vmem:[%s3386 + $0x24] sm:$0x1]
        %v3397 = vsel %vm433, 0, %v3396
        %3398 = vst [vmem:[%s3386 + $0x24] sm:$0x1] %v3397
        %v3399 = vld [vmem:[%s3386 + $0x30] sm:$0x1]
        %v3400 = vsel %vm433, 0, %v3399
        %3401 = vst [vmem:[%s3386 + $0x30] sm:$0x1] %v3400
        %v3402 = vld [vmem:[%s3386 + $0x3c] sm:$0x1]
        %v3403 = vsel %vm433, 0, %v3402
        %3404 = vst [vmem:[%s3386 + $0x3c] sm:$0x1] %v3403
        %v3405 = vld [vmem:[%s3386 + $0x48] sm:$0x1]
        %v3406 = vsel %vm433, 0, %v3405
        %3407 = vst [vmem:[%s3386 + $0x48] sm:$0x1] %v3406
        %v3408 = vld [vmem:[%s3386 + $0x54] sm:$0x1]
        %v3409 = vsel %vm433, 0, %v3408
        %3410 = vst [vmem:[%s3386 + $0x54] sm:$0x1] %v3409
        %v3411 = vld [vmem:[%s3386 + $0x60] sm:$0x1]
        %v3412 = vsel %vm433, 0, %v3411
        %3413 = vst [vmem:[%s3386 + $0x60] sm:$0x1] %v3412
        %v3414 = vld [vmem:[%s3386 + $0x6c] sm:$0x1]
        %v3415 = vsel %vm433, 0, %v3414
        %3416 = vst [vmem:[%s3386 + $0x6c] sm:$0x1] %v3415
        %v3417 = vld [vmem:[%s3386 + $0x78] sm:$0x1]
        %v3418 = vsel %vm433, 0, %v3417
        %3419 = vst [vmem:[%s3386 + $0x78] sm:$0x1] %v3418
        %v3420 = vld [vmem:[%s3386 + $0x84] sm:$0x1]
        %v3421 = vsel %vm433, 0, %v3420
        %3422 = vst [vmem:[%s3386 + $0x84] sm:$0x1] %v3421
        %v3423 = vld [vmem:[%s3386 + $0x90] sm:$0x1]
        %v3424 = vsel %vm433, 0, %v3423
        %3425 = vst [vmem:[%s3386 + $0x90] sm:$0x1] %v3424
        %v3426 = vld [vmem:[%s3386 + $0x9c] sm:$0x1]
        %v3427 = vsel %vm433, 0, %v3426
        %3428 = vst [vmem:[%s3386 + $0x9c] sm:$0x1] %v3427
        %v3429 = vld [vmem:[%s3386 + $0xa8] sm:$0x1]
        %v3430 = vsel %vm433, 0, %v3429
        %3431 = vst [vmem:[%s3386 + $0xa8] sm:$0x1] %v3430
        %v3432 = vld [vmem:[%s3386 + $0xb4] sm:$0x1]
        %v3433 = vsel %vm433, 0, %v3432
        %3434 = vst [vmem:[%s3386 + $0xb4] sm:$0x1] %v3433
        %v3435 = vld [vmem:[%s3386 + $0x8] sm:$0x1]
        %v3436 = vsel %vm483, 0, %v3435
        %3437 = vst [vmem:[%s3386 + $0x8] sm:$0x1] %v3436
        %v3438 = vld [vmem:[%s3386 + $0x14] sm:$0x1]
        %v3439 = vsel %vm483, 0, %v3438
        %3440 = vst [vmem:[%s3386 + $0x14] sm:$0x1] %v3439
        %v3441 = vld [vmem:[%s3386 + $0x20] sm:$0x1]
        %v3442 = vsel %vm483, 0, %v3441
        %3443 = vst [vmem:[%s3386 + $0x20] sm:$0x1] %v3442
        %v3444 = vld [vmem:[%s3386 + $0x2c] sm:$0x1]
        %v3445 = vsel %vm483, 0, %v3444
        %3446 = vst [vmem:[%s3386 + $0x2c] sm:$0x1] %v3445
        %v3447 = vld [vmem:[%s3386 + $0x38] sm:$0x1]
        %v3448 = vsel %vm483, 0, %v3447
        %3449 = vst [vmem:[%s3386 + $0x38] sm:$0x1] %v3448
        %v3450 = vld [vmem:[%s3386 + $0x44] sm:$0x1]
        %v3451 = vsel %vm483, 0, %v3450
        %3452 = vst [vmem:[%s3386 + $0x44] sm:$0x1] %v3451
        %v3453 = vld [vmem:[%s3386 + $0x50] sm:$0x1]
        %v3454 = vsel %vm483, 0, %v3453
        %3455 = vst [vmem:[%s3386 + $0x50] sm:$0x1] %v3454
        %v3456 = vld [vmem:[%s3386 + $0x5c] sm:$0x1]
        %v3457 = vsel %vm483, 0, %v3456
        %3458 = vst [vmem:[%s3386 + $0x5c] sm:$0x1] %v3457
        %v3459 = vld [vmem:[%s3386 + $0x68] sm:$0x1]
        %v3460 = vsel %vm483, 0, %v3459
        %3461 = vst [vmem:[%s3386 + $0x68] sm:$0x1] %v3460
        %v3462 = vld [vmem:[%s3386 + $0x74] sm:$0x1]
        %v3463 = vsel %vm483, 0, %v3462
        %3464 = vst [vmem:[%s3386 + $0x74] sm:$0x1] %v3463
        %v3465 = vld [vmem:[%s3386 + $0x80] sm:$0x1]
        %v3466 = vsel %vm483, 0, %v3465
        %3467 = vst [vmem:[%s3386 + $0x80] sm:$0x1] %v3466
        %v3468 = vld [vmem:[%s3386 + $0x8c] sm:$0x1]
        %v3469 = vsel %vm483, 0, %v3468
        %3470 = vst [vmem:[%s3386 + $0x8c] sm:$0x1] %v3469
        %v3471 = vld [vmem:[%s3386 + $0x98] sm:$0x1]
        %v3472 = vsel %vm483, 0, %v3471
        %3473 = vst [vmem:[%s3386 + $0x98] sm:$0x1] %v3472
        %v3474 = vld [vmem:[%s3386 + $0xa4] sm:$0x1]
        %v3475 = vsel %vm483, 0, %v3474
        %3476 = vst [vmem:[%s3386 + $0xa4] sm:$0x1] %v3475
        %v3477 = vld [vmem:[%s3386 + $0xb0] sm:$0x1]
        %v3478 = vsel %vm483, 0, %v3477
        %3479 = vst [vmem:[%s3386 + $0xb0] sm:$0x1] %v3478
        %v3480 = vld [vmem:[%s3386 + $0xbc] sm:$0x1]
        %v3481 = vsel %vm483, 0, %v3480
        %3482 = vst [vmem:[%s3386 + $0xbc] sm:$0x1] %v3481
        %v3483 = vpack.c.bf16 %v3348, %v3347
        %v3484 = vpack.c.bf16 %v3350, %v3349
        %v3485 = vpack.c.bf16 %v3352, %v3351
        %v3486 = vpack.c.bf16 %v3354, %v3353
        %v3487 = vpack.c.bf16 %v3356, %v3355
        %v3488 = vpack.c.bf16 %v3358, %v3357
        %v3489 = vpack.c.bf16 %v3360, %v3359
        %v3490 = vpack.c.bf16 %v3362, %v3361
        %v3491 = vpack.c.bf16 %v3364, %v3363
        %v3492 = vpack.c.bf16 %v3366, %v3365
        %v3493 = vpack.c.bf16 %v3368, %v3367
        %v3494 = vpack.c.bf16 %v3370, %v3369
        %v3495 = vpack.c.bf16 %v3372, %v3371
        %v3496 = vpack.c.bf16 %v3374, %v3373
        %v3497 = vpack.c.bf16 %v3376, %v3375
        %v3498 = vpack.c.bf16 %v3378, %v3377
        %v3515 = vunpack.c.l.b16 %v3483
        %v3516 = vunpack.c.h.b16 %v3483
        %v3517 = vunpack.c.l.b16 %v3484
        %v3518 = vunpack.c.h.b16 %v3484
        %v3519 = vunpack.c.l.b16 %v3485
        %v3520 = vunpack.c.h.b16 %v3485
        %v3521 = vunpack.c.l.b16 %v3486
        %v3522 = vunpack.c.h.b16 %v3486
        %v3523 = vunpack.c.l.b16 %v3487
        %v3524 = vunpack.c.h.b16 %v3487
        %v3525 = vunpack.c.l.b16 %v3488
        %v3526 = vunpack.c.h.b16 %v3488
        %v3527 = vunpack.c.l.b16 %v3489
        %v3528 = vunpack.c.h.b16 %v3489
        %v3529 = vunpack.c.l.b16 %v3490
        %v3530 = vunpack.c.h.b16 %v3490
        %v3531 = vunpack.c.l.b16 %v3491
        %v3532 = vunpack.c.h.b16 %v3491
        %v3533 = vunpack.c.l.b16 %v3492
        %v3534 = vunpack.c.h.b16 %v3492
        %v3535 = vunpack.c.l.b16 %v3493
        %v3536 = vunpack.c.h.b16 %v3493
        %v3537 = vunpack.c.l.b16 %v3494
        %v3538 = vunpack.c.h.b16 %v3494
        %v3539 = vunpack.c.l.b16 %v3495
        %v3540 = vunpack.c.h.b16 %v3495
        %v3541 = vunpack.c.l.b16 %v3496
        %v3542 = vunpack.c.h.b16 %v3496
        %v3543 = vunpack.c.l.b16 %v3497
        %v3544 = vunpack.c.h.b16 %v3497
        %v3545 = vunpack.c.l.b16 %v3498
        %v3546 = vunpack.c.h.b16 %v3498
        %v3547 = vpack.c.b16 %v3515, %v3515
        %v3548 = vpack.c.b16 %v3516, %v3516
        %v3549 = vpack.c.b16 %v3517, %v3517
        %v3550 = vpack.c.b16 %v3518, %v3518
        %v3551 = vpack.c.b16 %v3519, %v3519
        %v3552 = vpack.c.b16 %v3520, %v3520
        %v3553 = vpack.c.b16 %v3521, %v3521
        %v3554 = vpack.c.b16 %v3522, %v3522
        %v3555 = vpack.c.b16 %v3523, %v3523
        %v3556 = vpack.c.b16 %v3524, %v3524
        %v3557 = vpack.c.b16 %v3525, %v3525
        %v3558 = vpack.c.b16 %v3526, %v3526
        %v3559 = vpack.c.b16 %v3527, %v3527
        %v3560 = vpack.c.b16 %v3528, %v3528
        %v3561 = vpack.c.b16 %v3529, %v3529
        %v3562 = vpack.c.b16 %v3530, %v3530
        %v3563 = vpack.c.b16 %v3531, %v3531
        %v3564 = vpack.c.b16 %v3532, %v3532
        %v3565 = vpack.c.b16 %v3533, %v3533
        %v3566 = vpack.c.b16 %v3534, %v3534
        %v3567 = vpack.c.b16 %v3535, %v3535
        %v3568 = vpack.c.b16 %v3536, %v3536
        %v3569 = vpack.c.b16 %v3537, %v3537
        %v3570 = vpack.c.b16 %v3538, %v3538
        %v3571 = vpack.c.b16 %v3539, %v3539
        %v3572 = vpack.c.b16 %v3540, %v3540
        %v3573 = vpack.c.b16 %v3541, %v3541
        %v3574 = vpack.c.b16 %v3542, %v3542
        %v3575 = vpack.c.b16 %v3543, %v3543
        %v3576 = vpack.c.b16 %v3544, %v3544
        %v3577 = vpack.c.b16 %v3545, %v3545
        %v3578 = vpack.c.b16 %v3546, %v3546
        %v3580 = vshrl.u32 %v3547, 16
        %v3582 = vrot.slane %v3580, 7
        %v3583 = vshll.u32 %v3547, 16
        %v3585 = vor.u32 %v3582, %v3583
        %v3586 = vrot.slane %v3582, 4
        %v3588 = vshrl.u32 %v3548, 16
        %v3590 = vrot.slane %v3588, 7
        %v3591 = vshll.u32 %v3548, 16
        %v3593 = vor.u32 %v3590, %v3591
        %v3594 = vsel %vm565, %v3586, %v3593
        %v3595 = vrot.slane %v3590, 4
        %v3597 = vshrl.u32 %v3549, 16
        %v3599 = vrot.slane %v3597, 7
        %v3600 = vshll.u32 %v3549, 16
        %v3602 = vor.u32 %v3599, %v3600
        %v3603 = vrot.slane %v3599, 4
        %v3605 = vshrl.u32 %v3550, 16
        %v3607 = vrot.slane %v3605, 7
        %v3608 = vshll.u32 %v3550, 16
        %v3610 = vor.u32 %v3607, %v3608
        %v3611 = vsel %vm565, %v3603, %v3610
        %v3612 = vrot.slane %v3607, 4
        %v3614 = vshrl.u32 %v3551, 16
        %v3616 = vrot.slane %v3614, 7
        %v3617 = vshll.u32 %v3551, 16
        %v3619 = vor.u32 %v3616, %v3617
        %v3620 = vrot.slane %v3616, 4
        %v3622 = vshrl.u32 %v3552, 16
        %v3624 = vrot.slane %v3622, 7
        %v3625 = vshll.u32 %v3552, 16
        %v3627 = vor.u32 %v3624, %v3625
        %v3628 = vsel %vm565, %v3620, %v3627
        %v3629 = vrot.slane %v3624, 4
        %v3631 = vshrl.u32 %v3553, 16
        %v3633 = vrot.slane %v3631, 7
        %v3634 = vshll.u32 %v3553, 16
        %v3636 = vor.u32 %v3633, %v3634
        %v3637 = vrot.slane %v3633, 4
        %v3639 = vshrl.u32 %v3554, 16
        %v3641 = vrot.slane %v3639, 7
        %v3642 = vshll.u32 %v3554, 16
        %v3644 = vor.u32 %v3641, %v3642
        %v3645 = vsel %vm565, %v3637, %v3644
        %v3646 = vrot.slane %v3641, 4
        %v3648 = vshrl.u32 %v3555, 16
        %v3650 = vrot.slane %v3648, 7
        %v3651 = vshll.u32 %v3555, 16
        %v3653 = vor.u32 %v3650, %v3651
        %v3654 = vrot.slane %v3650, 4
        %v3656 = vshrl.u32 %v3556, 16
        %v3658 = vrot.slane %v3656, 7
        %v3659 = vshll.u32 %v3556, 16
        %v3661 = vor.u32 %v3658, %v3659
        %v3662 = vsel %vm565, %v3654, %v3661
        %v3663 = vrot.slane %v3658, 4
        %v3665 = vshrl.u32 %v3557, 16
        %v3667 = vrot.slane %v3665, 7
        %v3668 = vshll.u32 %v3557, 16
        %v3670 = vor.u32 %v3667, %v3668
        %v3671 = vrot.slane %v3667, 4
        %v3673 = vshrl.u32 %v3558, 16
        %v3675 = vrot.slane %v3673, 7
        %v3676 = vshll.u32 %v3558, 16
        %v3678 = vor.u32 %v3675, %v3676
        %v3679 = vsel %vm565, %v3671, %v3678
        %v3680 = vrot.slane %v3675, 4
        %v3682 = vshrl.u32 %v3559, 16
        %v3684 = vrot.slane %v3682, 7
        %v3685 = vshll.u32 %v3559, 16
        %v3687 = vor.u32 %v3684, %v3685
        %v3688 = vrot.slane %v3684, 4
        %v3690 = vshrl.u32 %v3560, 16
        %v3692 = vrot.slane %v3690, 7
        %v3693 = vshll.u32 %v3560, 16
        %v3695 = vor.u32 %v3692, %v3693
        %v3696 = vsel %vm565, %v3688, %v3695
        %v3697 = vrot.slane %v3692, 4
        %v3699 = vshrl.u32 %v3561, 16
        %v3701 = vrot.slane %v3699, 7
        %v3702 = vshll.u32 %v3561, 16
        %v3704 = vor.u32 %v3701, %v3702
        %v3705 = vrot.slane %v3701, 4
        %v3707 = vshrl.u32 %v3562, 16
        %v3709 = vrot.slane %v3707, 7
        %v3710 = vshll.u32 %v3562, 16
        %v3712 = vor.u32 %v3709, %v3710
        %v3713 = vsel %vm565, %v3705, %v3712
        %v3714 = vrot.slane %v3709, 4
        %v3716 = vshrl.u32 %v3563, 16
        %v3718 = vrot.slane %v3716, 7
        %v3719 = vshll.u32 %v3563, 16
        %v3721 = vor.u32 %v3718, %v3719
        %v3722 = vrot.slane %v3718, 4
        %v3724 = vshrl.u32 %v3564, 16
        %v3726 = vrot.slane %v3724, 7
        %v3727 = vshll.u32 %v3564, 16
        %v3729 = vor.u32 %v3726, %v3727
        %v3730 = vsel %vm565, %v3722, %v3729
        %v3731 = vrot.slane %v3726, 4
        %v3733 = vshrl.u32 %v3565, 16
        %v3735 = vrot.slane %v3733, 7
        %v3736 = vshll.u32 %v3565, 16
        %v3738 = vor.u32 %v3735, %v3736
        %v3739 = vrot.slane %v3735, 4
        %v3741 = vshrl.u32 %v3566, 16
        %v3743 = vrot.slane %v3741, 7
        %v3744 = vshll.u32 %v3566, 16
        %v3746 = vor.u32 %v3743, %v3744
        %v3747 = vsel %vm565, %v3739, %v3746
        %v3748 = vrot.slane %v3743, 4
        %v3750 = vshrl.u32 %v3567, 16
        %v3752 = vrot.slane %v3750, 7
        %v3753 = vshll.u32 %v3567, 16
        %v3755 = vor.u32 %v3752, %v3753
        %v3756 = vrot.slane %v3752, 4
        %v3758 = vshrl.u32 %v3568, 16
        %v3760 = vrot.slane %v3758, 7
        %v3761 = vshll.u32 %v3568, 16
        %v3763 = vor.u32 %v3760, %v3761
        %v3764 = vsel %vm565, %v3756, %v3763
        %v3765 = vrot.slane %v3760, 4
        %v3767 = vshrl.u32 %v3569, 16
        %v3769 = vrot.slane %v3767, 7
        %v3770 = vshll.u32 %v3569, 16
        %v3772 = vor.u32 %v3769, %v3770
        %v3773 = vrot.slane %v3769, 4
        %v3775 = vshrl.u32 %v3570, 16
        %v3777 = vrot.slane %v3775, 7
        %v3778 = vshll.u32 %v3570, 16
        %v3780 = vor.u32 %v3777, %v3778
        %v3781 = vsel %vm565, %v3773, %v3780
        %v3782 = vrot.slane %v3777, 4
        %v3784 = vshrl.u32 %v3571, 16
        %v3786 = vrot.slane %v3784, 7
        %v3787 = vshll.u32 %v3571, 16
        %v3789 = vor.u32 %v3786, %v3787
        %v3790 = vrot.slane %v3786, 4
        %v3792 = vshrl.u32 %v3572, 16
        %v3794 = vrot.slane %v3792, 7
        %v3795 = vshll.u32 %v3572, 16
        %v3797 = vor.u32 %v3794, %v3795
        %v3798 = vsel %vm565, %v3790, %v3797
        %v3799 = vrot.slane %v3794, 4
        %v3801 = vshrl.u32 %v3573, 16
        %v3803 = vrot.slane %v3801, 7
        %v3804 = vshll.u32 %v3573, 16
        %v3806 = vor.u32 %v3803, %v3804
        %v3807 = vrot.slane %v3803, 4
        %v3809 = vshrl.u32 %v3574, 16
        %v3811 = vrot.slane %v3809, 7
        %v3812 = vshll.u32 %v3574, 16
        %v3814 = vor.u32 %v3811, %v3812
        %v3815 = vsel %vm565, %v3807, %v3814
        %v3816 = vrot.slane %v3811, 4
        %v3818 = vshrl.u32 %v3575, 16
        %v3820 = vrot.slane %v3818, 7
        %v3821 = vshll.u32 %v3575, 16
        %v3823 = vor.u32 %v3820, %v3821
        %v3824 = vrot.slane %v3820, 4
        %v3826 = vshrl.u32 %v3576, 16
        %v3828 = vrot.slane %v3826, 7
        %v3829 = vshll.u32 %v3576, 16
        %v3831 = vor.u32 %v3828, %v3829
        %v3832 = vsel %vm565, %v3824, %v3831
        %v3833 = vrot.slane %v3828, 4
        %v3835 = vshrl.u32 %v3577, 16
        %v3837 = vrot.slane %v3835, 7
        %v3838 = vshll.u32 %v3577, 16
        %v3840 = vor.u32 %v3837, %v3838
        %v3841 = vrot.slane %v3837, 4
        %v3843 = vshrl.u32 %v3578, 16
        %v3845 = vrot.slane %v3843, 7
        %v3846 = vshll.u32 %v3578, 16
        %v3848 = vor.u32 %v3845, %v3846
        %v3849 = vsel %vm565, %v3841, %v3848
        %v3850 = vrot.slane %v3845, 4
        %v3899 = vld [vmem:[%s3386] sm:$0xf]
        %v3900 = vsel %vm887, %v3585, %v3899
        %3901 = vst [vmem:[%s3386] sm:$0xf] %v3900
        %3902 = vst [vmem:[%s3386 + $0x4] sm:$0xf] %v3594
        %v3903 = vld [vmem:[%s3386 + $0x8] sm:$0x1]
        %v3904 = vsel %vm433, %v3595, %v3903
        %3905 = vst [vmem:[%s3386 + $0x8] sm:$0x1] %v3904
        %v3906 = vld [vmem:[%s3386 + $0xc] sm:$0xf]
        %v3907 = vsel %vm887, %v3602, %v3906
        %3908 = vst [vmem:[%s3386 + $0xc] sm:$0xf] %v3907
        %3909 = vst [vmem:[%s3386 + $0x10] sm:$0xf] %v3611
        %v3910 = vld [vmem:[%s3386 + $0x14] sm:$0x1]
        %v3911 = vsel %vm433, %v3612, %v3910
        %3912 = vst [vmem:[%s3386 + $0x14] sm:$0x1] %v3911
        %v3913 = vld [vmem:[%s3386 + $0x18] sm:$0xf]
        %v3914 = vsel %vm887, %v3619, %v3913
        %3915 = vst [vmem:[%s3386 + $0x18] sm:$0xf] %v3914
        %3916 = vst [vmem:[%s3386 + $0x1c] sm:$0xf] %v3628
        %v3917 = vld [vmem:[%s3386 + $0x20] sm:$0x1]
        %v3918 = vsel %vm433, %v3629, %v3917
        %3919 = vst [vmem:[%s3386 + $0x20] sm:$0x1] %v3918
        %v3920 = vld [vmem:[%s3386 + $0x24] sm:$0xf]
        %v3921 = vsel %vm887, %v3636, %v3920
        %3922 = vst [vmem:[%s3386 + $0x24] sm:$0xf] %v3921
        %3923 = vst [vmem:[%s3386 + $0x28] sm:$0xf] %v3645
        %v3924 = vld [vmem:[%s3386 + $0x2c] sm:$0x1]
        %v3925 = vsel %vm433, %v3646, %v3924
        %3926 = vst [vmem:[%s3386 + $0x2c] sm:$0x1] %v3925
        %v3927 = vld [vmem:[%s3386 + $0x30] sm:$0xf]
        %v3928 = vsel %vm887, %v3653, %v3927
        %3929 = vst [vmem:[%s3386 + $0x30] sm:$0xf] %v3928
        %3930 = vst [vmem:[%s3386 + $0x34] sm:$0xf] %v3662
        %v3931 = vld [vmem:[%s3386 + $0x38] sm:$0x1]
        %v3932 = vsel %vm433, %v3663, %v3931
        %3933 = vst [vmem:[%s3386 + $0x38] sm:$0x1] %v3932
        %v3934 = vld [vmem:[%s3386 + $0x3c] sm:$0xf]
        %v3935 = vsel %vm887, %v3670, %v3934
        %3936 = vst [vmem:[%s3386 + $0x3c] sm:$0xf] %v3935
        %3937 = vst [vmem:[%s3386 + $0x40] sm:$0xf] %v3679
        %v3938 = vld [vmem:[%s3386 + $0x44] sm:$0x1]
        %v3939 = vsel %vm433, %v3680, %v3938
        %3940 = vst [vmem:[%s3386 + $0x44] sm:$0x1] %v3939
        %v3941 = vld [vmem:[%s3386 + $0x48] sm:$0xf]
        %v3942 = vsel %vm887, %v3687, %v3941
        %3943 = vst [vmem:[%s3386 + $0x48] sm:$0xf] %v3942
        %3944 = vst [vmem:[%s3386 + $0x4c] sm:$0xf] %v3696
        %v3945 = vld [vmem:[%s3386 + $0x50] sm:$0x1]
        %v3946 = vsel %vm433, %v3697, %v3945
        %3947 = vst [vmem:[%s3386 + $0x50] sm:$0x1] %v3946
        %v3948 = vld [vmem:[%s3386 + $0x54] sm:$0xf]
        %v3949 = vsel %vm887, %v3704, %v3948
        %3950 = vst [vmem:[%s3386 + $0x54] sm:$0xf] %v3949
        %3951 = vst [vmem:[%s3386 + $0x58] sm:$0xf] %v3713
        %v3952 = vld [vmem:[%s3386 + $0x5c] sm:$0x1]
        %v3953 = vsel %vm433, %v3714, %v3952
        %3954 = vst [vmem:[%s3386 + $0x5c] sm:$0x1] %v3953
        %v3955 = vld [vmem:[%s3386 + $0x60] sm:$0xf]
        %v3956 = vsel %vm887, %v3721, %v3955
        %3957 = vst [vmem:[%s3386 + $0x60] sm:$0xf] %v3956
        %3958 = vst [vmem:[%s3386 + $0x64] sm:$0xf] %v3730
        %v3959 = vld [vmem:[%s3386 + $0x68] sm:$0x1]
        %v3960 = vsel %vm433, %v3731, %v3959
        %3961 = vst [vmem:[%s3386 + $0x68] sm:$0x1] %v3960
        %v3962 = vld [vmem:[%s3386 + $0x6c] sm:$0xf]
        %v3963 = vsel %vm887, %v3738, %v3962
        %3964 = vst [vmem:[%s3386 + $0x6c] sm:$0xf] %v3963
        %3965 = vst [vmem:[%s3386 + $0x70] sm:$0xf] %v3747
        %v3966 = vld [vmem:[%s3386 + $0x74] sm:$0x1]
        %v3967 = vsel %vm433, %v3748, %v3966
        %3968 = vst [vmem:[%s3386 + $0x74] sm:$0x1] %v3967
        %v3969 = vld [vmem:[%s3386 + $0x78] sm:$0xf]
        %v3970 = vsel %vm887, %v3755, %v3969
        %3971 = vst [vmem:[%s3386 + $0x78] sm:$0xf] %v3970
        %3972 = vst [vmem:[%s3386 + $0x7c] sm:$0xf] %v3764
        %v3973 = vld [vmem:[%s3386 + $0x80] sm:$0x1]
        %v3974 = vsel %vm433, %v3765, %v3973
        %3975 = vst [vmem:[%s3386 + $0x80] sm:$0x1] %v3974
        %v3976 = vld [vmem:[%s3386 + $0x84] sm:$0xf]
        %v3977 = vsel %vm887, %v3772, %v3976
        %3978 = vst [vmem:[%s3386 + $0x84] sm:$0xf] %v3977
        %3979 = vst [vmem:[%s3386 + $0x88] sm:$0xf] %v3781
        %v3980 = vld [vmem:[%s3386 + $0x8c] sm:$0x1]
        %v3981 = vsel %vm433, %v3782, %v3980
        %3982 = vst [vmem:[%s3386 + $0x8c] sm:$0x1] %v3981
        %v3983 = vld [vmem:[%s3386 + $0x90] sm:$0xf]
        %v3984 = vsel %vm887, %v3789, %v3983
        %3985 = vst [vmem:[%s3386 + $0x90] sm:$0xf] %v3984
        %3986 = vst [vmem:[%s3386 + $0x94] sm:$0xf] %v3798
        %v3987 = vld [vmem:[%s3386 + $0x98] sm:$0x1]
        %v3988 = vsel %vm433, %v3799, %v3987
        %3989 = vst [vmem:[%s3386 + $0x98] sm:$0x1] %v3988
        %v3990 = vld [vmem:[%s3386 + $0x9c] sm:$0xf]
        %v3991 = vsel %vm887, %v3806, %v3990
        %3992 = vst [vmem:[%s3386 + $0x9c] sm:$0xf] %v3991
        %3993 = vst [vmem:[%s3386 + $0xa0] sm:$0xf] %v3815
        %v3994 = vld [vmem:[%s3386 + $0xa4] sm:$0x1]
        %v3995 = vsel %vm433, %v3816, %v3994
        %3996 = vst [vmem:[%s3386 + $0xa4] sm:$0x1] %v3995
        %v3997 = vld [vmem:[%s3386 + $0xa8] sm:$0xf]
        %v3998 = vsel %vm887, %v3823, %v3997
        %3999 = vst [vmem:[%s3386 + $0xa8] sm:$0xf] %v3998
        %4000 = vst [vmem:[%s3386 + $0xac] sm:$0xf] %v3832
        %v4001 = vld [vmem:[%s3386 + $0xb0] sm:$0x1]
        %v4002 = vsel %vm433, %v3833, %v4001
        %4003 = vst [vmem:[%s3386 + $0xb0] sm:$0x1] %v4002
        %v4004 = vld [vmem:[%s3386 + $0xb4] sm:$0xf]
        %v4005 = vsel %vm887, %v3840, %v4004
        %4006 = vst [vmem:[%s3386 + $0xb4] sm:$0xf] %v4005
        %4007 = vst [vmem:[%s3386 + $0xb8] sm:$0xf] %v3849
        %v4008 = vld [vmem:[%s3386 + $0xbc] sm:$0x1]
        %v4009 = vsel %vm433, %v3850, %v4008
        %4010 = vst [vmem:[%s3386 + $0xbc] sm:$0x1] %v4009
        %v4011 = vld [vmem:[#allocation3] sm:$0xf]
        %v4012 = vld [vmem:[#allocation3 + $0x4] sm:$0xf]
        %v4013 = vld [vmem:[#allocation3 + $0x8] sm:$0x1]
        %v4014 = vld [vmem:[#allocation3 + $0xc] sm:$0xf]
        %v4015 = vld [vmem:[#allocation3 + $0x10] sm:$0xf]
        %v4016 = vld [vmem:[#allocation3 + $0x14] sm:$0x1]
        %v4017 = vld [vmem:[#allocation3 + $0x18] sm:$0xf]
        %v4018 = vld [vmem:[#allocation3 + $0x1c] sm:$0xf]
        %v4019 = vld [vmem:[#allocation3 + $0x20] sm:$0x1]
        %v4020 = vld [vmem:[#allocation3 + $0x24] sm:$0xf]
        %v4021 = vld [vmem:[#allocation3 + $0x28] sm:$0xf]
        %v4022 = vld [vmem:[#allocation3 + $0x2c] sm:$0x1]
        %v4023 = vld [vmem:[#allocation3 + $0x30] sm:$0xf]
        %v4024 = vld [vmem:[#allocation3 + $0x34] sm:$0xf]
        %v4025 = vld [vmem:[#allocation3 + $0x38] sm:$0x1]
        %v4026 = vld [vmem:[#allocation3 + $0x3c] sm:$0xf]
        %v4027 = vld [vmem:[#allocation3 + $0x40] sm:$0xf]
        %v4028 = vld [vmem:[#allocation3 + $0x44] sm:$0x1]
        %v4029 = vld [vmem:[#allocation3 + $0x48] sm:$0xf]
        %v4030 = vld [vmem:[#allocation3 + $0x4c] sm:$0xf]
        %v4031 = vld [vmem:[#allocation3 + $0x50] sm:$0x1]
        %v4032 = vld [vmem:[#allocation3 + $0x54] sm:$0xf]
        %v4033 = vld [vmem:[#allocation3 + $0x58] sm:$0xf]
        %v4034 = vld [vmem:[#allocation3 + $0x5c] sm:$0x1]
        %v4035 = vld [vmem:[#allocation3 + $0x60] sm:$0xf]
        %v4036 = vld [vmem:[#allocation3 + $0x64] sm:$0xf]
        %v4037 = vld [vmem:[#allocation3 + $0x68] sm:$0x1]
        %v4038 = vld [vmem:[#allocation3 + $0x6c] sm:$0xf]
        %v4039 = vld [vmem:[#allocation3 + $0x70] sm:$0xf]
        %v4040 = vld [vmem:[#allocation3 + $0x74] sm:$0x1]
        %v4041 = vld [vmem:[#allocation3 + $0x78] sm:$0xf]
        %v4042 = vld [vmem:[#allocation3 + $0x7c] sm:$0xf]
        %v4043 = vld [vmem:[#allocation3 + $0x80] sm:$0x1]
        %v4044 = vld [vmem:[#allocation3 + $0x84] sm:$0xf]
        %v4045 = vld [vmem:[#allocation3 + $0x88] sm:$0xf]
        %v4046 = vld [vmem:[#allocation3 + $0x8c] sm:$0x1]
        %v4047 = vld [vmem:[#allocation3 + $0x90] sm:$0xf]
        %v4048 = vld [vmem:[#allocation3 + $0x94] sm:$0xf]
        %v4049 = vld [vmem:[#allocation3 + $0x98] sm:$0x1]
        %v4050 = vld [vmem:[#allocation3 + $0x9c] sm:$0xf]
        %v4051 = vld [vmem:[#allocation3 + $0xa0] sm:$0xf]
        %v4052 = vld [vmem:[#allocation3 + $0xa4] sm:$0x1]
        %v4053 = vld [vmem:[#allocation3 + $0xa8] sm:$0xf]
        %v4054 = vld [vmem:[#allocation3 + $0xac] sm:$0xf]
        %v4055 = vld [vmem:[#allocation3 + $0xb0] sm:$0x1]
        %v4056 = vld [vmem:[#allocation3 + $0xb4] sm:$0xf]
        %v4057 = vld [vmem:[#allocation3 + $0xb8] sm:$0xf]
        %v4058 = vld [vmem:[#allocation3 + $0xbc] sm:$0x1]
        %v4059 = vld [vmem:[#allocation3 + $0xc0] sm:$0xf]
        %v4060 = vld [vmem:[#allocation3 + $0xc4] sm:$0xf]
        %v4061 = vld [vmem:[#allocation3 + $0xc8] sm:$0x1]
        %v4062 = vld [vmem:[#allocation3 + $0xcc] sm:$0xf]
        %v4063 = vld [vmem:[#allocation3 + $0xd0] sm:$0xf]
        %v4064 = vld [vmem:[#allocation3 + $0xd4] sm:$0x1]
        %v4066 = vshrl.u32 %v4011, 16
        %v4068 = vrot.slane %v4066, 4
        %v4069 = vshll.u32 %v4011, 16
        %v4071 = vrot.slane %v4069, 5
        %v4072 = vor.u32 %v4068, %v4071
        %v4073 = vrot.slane %v4072, 4
        %v4075 = vshll.u32 %v4012, 16
        %v4077 = vrot.slane %v4075, 5
        %v4078 = vsel %vm1056, %v4073, %v4077
        %v4079 = vshrl.u32 %v4012, 16
        %v4081 = vrot.slane %v4079, 4
        %v4082 = vor.u32 %v4081, %v4077
        %v4083 = vrot.slane %v4082, 4
        %v4085 = vshll.u32 %v4013, 16
        %v4087 = vrot.slane %v4085, 5
        %v4088 = vsel %vm1056, %v4083, %v4087
        %v4090 = vshrl.u32 %v4014, 16
        %v4092 = vrot.slane %v4090, 4
        %v4093 = vshll.u32 %v4014, 16
        %v4095 = vrot.slane %v4093, 5
        %v4096 = vor.u32 %v4092, %v4095
        %v4097 = vrot.slane %v4096, 4
        %v4099 = vshll.u32 %v4015, 16
        %v4101 = vrot.slane %v4099, 5
        %v4102 = vsel %vm1056, %v4097, %v4101
        %v4103 = vshrl.u32 %v4015, 16
        %v4105 = vrot.slane %v4103, 4
        %v4106 = vor.u32 %v4105, %v4101
        %v4107 = vrot.slane %v4106, 4
        %v4109 = vshll.u32 %v4016, 16
        %v4111 = vrot.slane %v4109, 5
        %v4112 = vsel %vm1056, %v4107, %v4111
        %v4114 = vshrl.u32 %v4017, 16
        %v4116 = vrot.slane %v4114, 4
        %v4117 = vshll.u32 %v4017, 16
        %v4119 = vrot.slane %v4117, 5
        %v4120 = vor.u32 %v4116, %v4119
        %v4121 = vrot.slane %v4120, 4
        %v4123 = vshll.u32 %v4018, 16
        %v4125 = vrot.slane %v4123, 5
        %v4126 = vsel %vm1056, %v4121, %v4125
        %v4127 = vshrl.u32 %v4018, 16
        %v4129 = vrot.slane %v4127, 4
        %v4130 = vor.u32 %v4129, %v4125
        %v4131 = vrot.slane %v4130, 4
        %v4133 = vshll.u32 %v4019, 16
        %v4135 = vrot.slane %v4133, 5
        %v4136 = vsel %vm1056, %v4131, %v4135
        %v4138 = vshrl.u32 %v4020, 16
        %v4140 = vrot.slane %v4138, 4
        %v4141 = vshll.u32 %v4020, 16
        %v4143 = vrot.slane %v4141, 5
        %v4144 = vor.u32 %v4140, %v4143
        %v4145 = vrot.slane %v4144, 4
        %v4147 = vshll.u32 %v4021, 16
        %v4149 = vrot.slane %v4147, 5
        %v4150 = vsel %vm1056, %v4145, %v4149
        %v4151 = vshrl.u32 %v4021, 16
        %v4153 = vrot.slane %v4151, 4
        %v4154 = vor.u32 %v4153, %v4149
        %v4155 = vrot.slane %v4154, 4
        %v4157 = vshll.u32 %v4022, 16
        %v4159 = vrot.slane %v4157, 5
        %v4160 = vsel %vm1056, %v4155, %v4159
        %v4162 = vshrl.u32 %v4023, 16
        %v4164 = vrot.slane %v4162, 4
        %v4165 = vshll.u32 %v4023, 16
        %v4167 = vrot.slane %v4165, 5
        %v4168 = vor.u32 %v4164, %v4167
        %v4169 = vrot.slane %v4168, 4
        %v4171 = vshll.u32 %v4024, 16
        %v4173 = vrot.slane %v4171, 5
        %v4174 = vsel %vm1056, %v4169, %v4173
        %v4175 = vshrl.u32 %v4024, 16
        %v4177 = vrot.slane %v4175, 4
        %v4178 = vor.u32 %v4177, %v4173
        %v4179 = vrot.slane %v4178, 4
        %v4181 = vshll.u32 %v4025, 16
        %v4183 = vrot.slane %v4181, 5
        %v4184 = vsel %vm1056, %v4179, %v4183
        %v4186 = vshrl.u32 %v4026, 16
        %v4188 = vrot.slane %v4186, 4
        %v4189 = vshll.u32 %v4026, 16
        %v4191 = vrot.slane %v4189, 5
        %v4192 = vor.u32 %v4188, %v4191
        %v4193 = vrot.slane %v4192, 4
        %v4195 = vshll.u32 %v4027, 16
        %v4197 = vrot.slane %v4195, 5
        %v4198 = vsel %vm1056, %v4193, %v4197
        %v4199 = vshrl.u32 %v4027, 16
        %v4201 = vrot.slane %v4199, 4
        %v4202 = vor.u32 %v4201, %v4197
        %v4203 = vrot.slane %v4202, 4
        %v4205 = vshll.u32 %v4028, 16
        %v4207 = vrot.slane %v4205, 5
        %v4208 = vsel %vm1056, %v4203, %v4207
        %v4210 = vshrl.u32 %v4029, 16
        %v4212 = vrot.slane %v4210, 4
        %v4213 = vshll.u32 %v4029, 16
        %v4215 = vrot.slane %v4213, 5
        %v4216 = vor.u32 %v4212, %v4215
        %v4217 = vrot.slane %v4216, 4
        %v4219 = vshll.u32 %v4030, 16
        %v4221 = vrot.slane %v4219, 5
        %v4222 = vsel %vm1056, %v4217, %v4221
        %v4223 = vshrl.u32 %v4030, 16
        %v4225 = vrot.slane %v4223, 4
        %v4226 = vor.u32 %v4225, %v4221
        %v4227 = vrot.slane %v4226, 4
        %v4229 = vshll.u32 %v4031, 16
        %v4231 = vrot.slane %v4229, 5
        %v4232 = vsel %vm1056, %v4227, %v4231
        %v4234 = vshrl.u32 %v4032, 16
        %v4236 = vrot.slane %v4234, 4
        %v4237 = vshll.u32 %v4032, 16
        %v4239 = vrot.slane %v4237, 5
        %v4240 = vor.u32 %v4236, %v4239
        %v4241 = vrot.slane %v4240, 4
        %v4243 = vshll.u32 %v4033, 16
        %v4245 = vrot.slane %v4243, 5
        %v4246 = vsel %vm1056, %v4241, %v4245
        %v4247 = vshrl.u32 %v4033, 16
        %v4249 = vrot.slane %v4247, 4
        %v4250 = vor.u32 %v4249, %v4245
        %v4251 = vrot.slane %v4250, 4
        %v4253 = vshll.u32 %v4034, 16
        %v4255 = vrot.slane %v4253, 5
        %v4256 = vsel %vm1056, %v4251, %v4255
        %v4258 = vshrl.u32 %v4035, 16
        %v4260 = vrot.slane %v4258, 4
        %v4261 = vshll.u32 %v4035, 16
        %v4263 = vrot.slane %v4261, 5
        %v4264 = vor.u32 %v4260, %v4263
        %v4265 = vrot.slane %v4264, 4
        %v4267 = vshll.u32 %v4036, 16
        %v4269 = vrot.slane %v4267, 5
        %v4270 = vsel %vm1056, %v4265, %v4269
        %v4271 = vshrl.u32 %v4036, 16
        %v4273 = vrot.slane %v4271, 4
        %v4274 = vor.u32 %v4273, %v4269
        %v4275 = vrot.slane %v4274, 4
        %v4277 = vshll.u32 %v4037, 16
        %v4279 = vrot.slane %v4277, 5
        %v4280 = vsel %vm1056, %v4275, %v4279
        %v4282 = vshrl.u32 %v4038, 16
        %v4284 = vrot.slane %v4282, 4
        %v4285 = vshll.u32 %v4038, 16
        %v4287 = vrot.slane %v4285, 5
        %v4288 = vor.u32 %v4284, %v4287
        %v4289 = vrot.slane %v4288, 4
        %v4291 = vshll.u32 %v4039, 16
        %v4293 = vrot.slane %v4291, 5
        %v4294 = vsel %vm1056, %v4289, %v4293
        %v4295 = vshrl.u32 %v4039, 16
        %v4297 = vrot.slane %v4295, 4
        %v4298 = vor.u32 %v4297, %v4293
        %v4299 = vrot.slane %v4298, 4
        %v4301 = vshll.u32 %v4040, 16
        %v4303 = vrot.slane %v4301, 5
        %v4304 = vsel %vm1056, %v4299, %v4303
        %v4306 = vshrl.u32 %v4041, 16
        %v4308 = vrot.slane %v4306, 4
        %v4309 = vshll.u32 %v4041, 16
        %v4311 = vrot.slane %v4309, 5
        %v4312 = vor.u32 %v4308, %v4311
        %v4313 = vrot.slane %v4312, 4
        %v4315 = vshll.u32 %v4042, 16
        %v4317 = vrot.slane %v4315, 5
        %v4318 = vsel %vm1056, %v4313, %v4317
        %v4319 = vshrl.u32 %v4042, 16
        %v4321 = vrot.slane %v4319, 4
        %v4322 = vor.u32 %v4321, %v4317
        %v4323 = vrot.slane %v4322, 4
        %v4325 = vshll.u32 %v4043, 16
        %v4327 = vrot.slane %v4325, 5
        %v4328 = vsel %vm1056, %v4323, %v4327
        %v4330 = vshrl.u32 %v4044, 16
        %v4332 = vrot.slane %v4330, 4
        %v4333 = vshll.u32 %v4044, 16
        %v4335 = vrot.slane %v4333, 5
        %v4336 = vor.u32 %v4332, %v4335
        %v4337 = vrot.slane %v4336, 4
        %v4339 = vshll.u32 %v4045, 16
        %v4341 = vrot.slane %v4339, 5
        %v4342 = vsel %vm1056, %v4337, %v4341
        %v4343 = vshrl.u32 %v4045, 16
        %v4345 = vrot.slane %v4343, 4
        %v4346 = vor.u32 %v4345, %v4341
        %v4347 = vrot.slane %v4346, 4
        %v4349 = vshll.u32 %v4046, 16
        %v4351 = vrot.slane %v4349, 5
        %v4352 = vsel %vm1056, %v4347, %v4351
        %v4354 = vshrl.u32 %v4047, 16
        %v4356 = vrot.slane %v4354, 4
        %v4357 = vshll.u32 %v4047, 16
        %v4359 = vrot.slane %v4357, 5
        %v4360 = vor.u32 %v4356, %v4359
        %v4361 = vrot.slane %v4360, 4
        %v4363 = vshll.u32 %v4048, 16
        %v4365 = vrot.slane %v4363, 5
        %v4366 = vsel %vm1056, %v4361, %v4365
        %v4367 = vshrl.u32 %v4048, 16
        %v4369 = vrot.slane %v4367, 4
        %v4370 = vor.u32 %v4369, %v4365
        %v4371 = vrot.slane %v4370, 4
        %v4373 = vshll.u32 %v4049, 16
        %v4375 = vrot.slane %v4373, 5
        %v4376 = vsel %vm1056, %v4371, %v4375
        %v4378 = vshrl.u32 %v4050, 16
        %v4380 = vrot.slane %v4378, 4
        %v4381 = vshll.u32 %v4050, 16
        %v4383 = vrot.slane %v4381, 5
        %v4384 = vor.u32 %v4380, %v4383
        %v4385 = vrot.slane %v4384, 4
        %v4387 = vshll.u32 %v4051, 16
        %v4389 = vrot.slane %v4387, 5
        %v4390 = vsel %vm1056, %v4385, %v4389
        %v4391 = vshrl.u32 %v4051, 16
        %v4393 = vrot.slane %v4391, 4
        %v4394 = vor.u32 %v4393, %v4389
        %v4395 = vrot.slane %v4394, 4
        %v4397 = vshll.u32 %v4052, 16
        %v4399 = vrot.slane %v4397, 5
        %v4400 = vsel %vm1056, %v4395, %v4399
        %v4402 = vshrl.u32 %v4053, 16
        %v4404 = vrot.slane %v4402, 4
        %v4405 = vshll.u32 %v4053, 16
        %v4407 = vrot.slane %v4405, 5
        %v4408 = vor.u32 %v4404, %v4407
        %v4409 = vrot.slane %v4408, 4
        %v4411 = vshll.u32 %v4054, 16
        %v4413 = vrot.slane %v4411, 5
        %v4414 = vsel %vm1056, %v4409, %v4413
        %v4415 = vshrl.u32 %v4054, 16
        %v4417 = vrot.slane %v4415, 4
        %v4418 = vor.u32 %v4417, %v4413
        %v4419 = vrot.slane %v4418, 4
        %v4421 = vshll.u32 %v4055, 16
        %v4423 = vrot.slane %v4421, 5
        %v4424 = vsel %vm1056, %v4419, %v4423
        %v4426 = vshrl.u32 %v4056, 16
        %v4428 = vrot.slane %v4426, 4
        %v4429 = vshll.u32 %v4056, 16
        %v4431 = vrot.slane %v4429, 5
        %v4432 = vor.u32 %v4428, %v4431
        %v4433 = vrot.slane %v4432, 4
        %v4435 = vshll.u32 %v4057, 16
        %v4437 = vrot.slane %v4435, 5
        %v4438 = vsel %vm1056, %v4433, %v4437
        %v4439 = vshrl.u32 %v4057, 16
        %v4441 = vrot.slane %v4439, 4
        %v4442 = vor.u32 %v4441, %v4437
        %v4443 = vrot.slane %v4442, 4
        %v4445 = vshll.u32 %v4058, 16
        %v4447 = vrot.slane %v4445, 5
        %v4448 = vsel %vm1056, %v4443, %v4447
        %v4497 = vrot.slane %v4011, 5
        %v4498 = vrot.slane %v4497, 4
        %v4499 = vrot.slane %v4012, 5
        %v4500 = vsel %vm1491, %v4498, %v4499
        %v4501 = vrot.slane %v4499, 4
        %v4502 = vrot.slane %v4013, 5
        %v4503 = vsel %vm1491, %v4501, %v4502
        %v4504 = vrot.slane %v4014, 5
        %v4505 = vrot.slane %v4504, 4
        %v4506 = vrot.slane %v4015, 5
        %v4507 = vsel %vm1491, %v4505, %v4506
        %v4508 = vrot.slane %v4506, 4
        %v4509 = vrot.slane %v4016, 5
        %v4510 = vsel %vm1491, %v4508, %v4509
        %v4511 = vrot.slane %v4017, 5
        %v4512 = vrot.slane %v4511, 4
        %v4513 = vrot.slane %v4018, 5
        %v4514 = vsel %vm1491, %v4512, %v4513
        %v4515 = vrot.slane %v4513, 4
        %v4516 = vrot.slane %v4019, 5
        %v4517 = vsel %vm1491, %v4515, %v4516
        %v4518 = vrot.slane %v4020, 5
        %v4519 = vrot.slane %v4518, 4
        %v4520 = vrot.slane %v4021, 5
        %v4521 = vsel %vm1491, %v4519, %v4520
        %v4522 = vrot.slane %v4520, 4
        %v4523 = vrot.slane %v4022, 5
        %v4524 = vsel %vm1491, %v4522, %v4523
        %v4525 = vrot.slane %v4023, 5
        %v4526 = vrot.slane %v4525, 4
        %v4527 = vrot.slane %v4024, 5
        %v4528 = vsel %vm1491, %v4526, %v4527
        %v4529 = vrot.slane %v4527, 4
        %v4530 = vrot.slane %v4025, 5
        %v4531 = vsel %vm1491, %v4529, %v4530
        %v4532 = vrot.slane %v4026, 5
        %v4533 = vrot.slane %v4532, 4
        %v4534 = vrot.slane %v4027, 5
        %v4535 = vsel %vm1491, %v4533, %v4534
        %v4536 = vrot.slane %v4534, 4
        %v4537 = vrot.slane %v4028, 5
        %v4538 = vsel %vm1491, %v4536, %v4537
        %v4539 = vrot.slane %v4029, 5
        %v4540 = vrot.slane %v4539, 4
        %v4541 = vrot.slane %v4030, 5
        %v4542 = vsel %vm1491, %v4540, %v4541
        %v4543 = vrot.slane %v4541, 4
        %v4544 = vrot.slane %v4031, 5
        %v4545 = vsel %vm1491, %v4543, %v4544
        %v4546 = vrot.slane %v4032, 5
        %v4547 = vrot.slane %v4546, 4
        %v4548 = vrot.slane %v4033, 5
        %v4549 = vsel %vm1491, %v4547, %v4548
        %v4550 = vrot.slane %v4548, 4
        %v4551 = vrot.slane %v4034, 5
        %v4552 = vsel %vm1491, %v4550, %v4551
        %v4553 = vrot.slane %v4035, 5
        %v4554 = vrot.slane %v4553, 4
        %v4555 = vrot.slane %v4036, 5
        %v4556 = vsel %vm1491, %v4554, %v4555
        %v4557 = vrot.slane %v4555, 4
        %v4558 = vrot.slane %v4037, 5
        %v4559 = vsel %vm1491, %v4557, %v4558
        %v4560 = vrot.slane %v4038, 5
        %v4561 = vrot.slane %v4560, 4
        %v4562 = vrot.slane %v4039, 5
        %v4563 = vsel %vm1491, %v4561, %v4562
        %v4564 = vrot.slane %v4562, 4
        %v4565 = vrot.slane %v4040, 5
        %v4566 = vsel %vm1491, %v4564, %v4565
        %v4567 = vrot.slane %v4041, 5
        %v4568 = vrot.slane %v4567, 4
        %v4569 = vrot.slane %v4042, 5
        %v4570 = vsel %vm1491, %v4568, %v4569
        %v4571 = vrot.slane %v4569, 4
        %v4572 = vrot.slane %v4043, 5
        %v4573 = vsel %vm1491, %v4571, %v4572
        %v4574 = vrot.slane %v4044, 5
        %v4575 = vrot.slane %v4574, 4
        %v4576 = vrot.slane %v4045, 5
        %v4577 = vsel %vm1491, %v4575, %v4576
        %v4578 = vrot.slane %v4576, 4
        %v4579 = vrot.slane %v4046, 5
        %v4580 = vsel %vm1491, %v4578, %v4579
        %v4581 = vrot.slane %v4047, 5
        %v4582 = vrot.slane %v4581, 4
        %v4583 = vrot.slane %v4048, 5
        %v4584 = vsel %vm1491, %v4582, %v4583
        %v4585 = vrot.slane %v4583, 4
        %v4586 = vrot.slane %v4049, 5
        %v4587 = vsel %vm1491, %v4585, %v4586
        %v4588 = vrot.slane %v4050, 5
        %v4589 = vrot.slane %v4588, 4
        %v4590 = vrot.slane %v4051, 5
        %v4591 = vsel %vm1491, %v4589, %v4590
        %v4592 = vrot.slane %v4590, 4
        %v4593 = vrot.slane %v4052, 5
        %v4594 = vsel %vm1491, %v4592, %v4593
        %v4595 = vrot.slane %v4053, 5
        %v4596 = vrot.slane %v4595, 4
        %v4597 = vrot.slane %v4054, 5
        %v4598 = vsel %vm1491, %v4596, %v4597
        %v4599 = vrot.slane %v4597, 4
        %v4600 = vrot.slane %v4055, 5
        %v4601 = vsel %vm1491, %v4599, %v4600
        %v4602 = vrot.slane %v4056, 5
        %v4603 = vrot.slane %v4602, 4
        %v4604 = vrot.slane %v4057, 5
        %v4605 = vsel %vm1491, %v4603, %v4604
        %v4606 = vrot.slane %v4604, 4
        %v4607 = vrot.slane %v4058, 5
        %v4608 = vsel %vm1491, %v4606, %v4607
        %v4610 = vshrl.u32 %v4059, 16
        %v4612 = vrot.slane %v4610, 4
        %v4613 = vshll.u32 %v4059, 16
        %v4615 = vrot.slane %v4613, 5
        %v4616 = vor.u32 %v4612, %v4615
        %v4617 = vrot.slane %v4616, 4
        %v4619 = vshll.u32 %v4060, 16
        %v4621 = vrot.slane %v4619, 5
        %v4622 = vsel %vm1056, %v4617, %v4621
        %v4623 = vshrl.u32 %v4060, 16
        %v4625 = vrot.slane %v4623, 4
        %v4626 = vor.u32 %v4625, %v4621
        %v4627 = vrot.slane %v4626, 4
        %v4629 = vshll.u32 %v4061, 16
        %v4631 = vrot.slane %v4629, 5
        %v4632 = vsel %vm1056, %v4627, %v4631
        %v4636 = vrot.slane %v4059, 5
        %v4637 = vrot.slane %v4636, 4
        %v4638 = vrot.slane %v4060, 5
        %v4639 = vsel %vm1491, %v4637, %v4638
        %v4640 = vrot.slane %v4638, 4
        %v4641 = vrot.slane %v4061, 5
        %v4642 = vsel %vm1491, %v4640, %v4641
        %v4644 = vshrl.u32 %v4062, 16
        %v4646 = vrot.slane %v4644, 4
        %v4647 = vshll.u32 %v4062, 16
        %v4649 = vrot.slane %v4647, 5
        %v4650 = vor.u32 %v4646, %v4649
        %v4651 = vrot.slane %v4650, 4
        %v4653 = vshll.u32 %v4063, 16
        %v4655 = vrot.slane %v4653, 5
        %v4656 = vsel %vm1056, %v4651, %v4655
        %v4657 = vshrl.u32 %v4063, 16
        %v4659 = vrot.slane %v4657, 4
        %v4660 = vor.u32 %v4659, %v4655
        %v4661 = vrot.slane %v4660, 4
        %v4663 = vshll.u32 %v4064, 16
        %v4665 = vrot.slane %v4663, 5
        %v4666 = vsel %vm1056, %v4661, %v4665
        %v4670 = vrot.slane %v4062, 5
        %v4671 = vrot.slane %v4670, 4
        %v4672 = vrot.slane %v4063, 5
        %v4673 = vsel %vm1491, %v4671, %v4672
        %v4674 = vrot.slane %v4672, 4
        %v4675 = vrot.slane %v4064, 5
        %v4676 = vsel %vm1491, %v4674, %v4675
        %v4677 = vunpack.c.l.b16 %v4011
        %v4678 = vunpack.c.l.b16 %v4012
        %v4679 = vunpack.c.l.b16 %v4014
        %v4680 = vunpack.c.l.b16 %v4015
        %v4681 = vunpack.c.l.b16 %v4017
        %v4682 = vunpack.c.l.b16 %v4018
        %v4683 = vunpack.c.l.b16 %v4020
        %v4684 = vunpack.c.l.b16 %v4021
        %v4685 = vunpack.c.l.b16 %v4023
        %v4686 = vunpack.c.l.b16 %v4024
        %v4687 = vunpack.c.l.b16 %v4026
        %v4688 = vunpack.c.l.b16 %v4027
        %v4689 = vunpack.c.l.b16 %v4029
        %v4690 = vunpack.c.l.b16 %v4030
        %v4691 = vunpack.c.l.b16 %v4032
        %v4692 = vunpack.c.l.b16 %v4033
        %v4693 = vunpack.c.l.b16 %v4035
        %v4694 = vunpack.c.l.b16 %v4036
        %v4695 = vunpack.c.l.b16 %v4038
        %v4696 = vunpack.c.l.b16 %v4039
        %v4697 = vunpack.c.l.b16 %v4041
        %v4698 = vunpack.c.l.b16 %v4042
        %v4699 = vunpack.c.l.b16 %v4044
        %v4700 = vunpack.c.l.b16 %v4045
        %v4701 = vunpack.c.l.b16 %v4047
        %v4702 = vunpack.c.l.b16 %v4048
        %v4703 = vunpack.c.l.b16 %v4050
        %v4704 = vunpack.c.l.b16 %v4051
        %v4705 = vunpack.c.l.b16 %v4053
        %v4706 = vunpack.c.l.b16 %v4054
        %v4707 = vunpack.c.l.b16 %v4056
        %v4708 = vunpack.c.l.b16 %v4057
        %v4709 = vpack.c.b16 %v4678, %v4677
        %v4710 = vpack.c.b16 %v4680, %v4679
        %v4711 = vpack.c.b16 %v4682, %v4681
        %v4712 = vpack.c.b16 %v4684, %v4683
        %v4713 = vpack.c.b16 %v4686, %v4685
        %v4714 = vpack.c.b16 %v4688, %v4687
        %v4715 = vpack.c.b16 %v4690, %v4689
        %v4716 = vpack.c.b16 %v4692, %v4691
        %v4717 = vpack.c.b16 %v4694, %v4693
        %v4718 = vpack.c.b16 %v4696, %v4695
        %v4719 = vpack.c.b16 %v4698, %v4697
        %v4720 = vpack.c.b16 %v4700, %v4699
        %v4721 = vpack.c.b16 %v4702, %v4701
        %v4722 = vpack.c.b16 %v4704, %v4703
        %v4723 = vpack.c.b16 %v4706, %v4705
        %v4724 = vpack.c.b16 %v4708, %v4707
        %v4741 = vunpack.c.l.b16 %v4078
        %v4742 = vunpack.c.l.b16 %v4088
        %v4743 = vunpack.c.l.b16 %v4102
        %v4744 = vunpack.c.l.b16 %v4112
        %v4745 = vunpack.c.l.b16 %v4126
        %v4746 = vunpack.c.l.b16 %v4136
        %v4747 = vunpack.c.l.b16 %v4150
        %v4748 = vunpack.c.l.b16 %v4160
        %v4749 = vunpack.c.l.b16 %v4174
        %v4750 = vunpack.c.l.b16 %v4184
        %v4751 = vunpack.c.l.b16 %v4198
        %v4752 = vunpack.c.l.b16 %v4208
        %v4753 = vunpack.c.l.b16 %v4222
        %v4754 = vunpack.c.l.b16 %v4232
        %v4755 = vunpack.c.l.b16 %v4246
        %v4756 = vunpack.c.l.b16 %v4256
        %v4757 = vunpack.c.l.b16 %v4270
        %v4758 = vunpack.c.l.b16 %v4280
        %v4759 = vunpack.c.l.b16 %v4294
        %v4760 = vunpack.c.l.b16 %v4304
        %v4761 = vunpack.c.l.b16 %v4318
        %v4762 = vunpack.c.l.b16 %v4328
        %v4763 = vunpack.c.l.b16 %v4342
        %v4764 = vunpack.c.l.b16 %v4352
        %v4765 = vunpack.c.l.b16 %v4366
        %v4766 = vunpack.c.l.b16 %v4376
        %v4767 = vunpack.c.l.b16 %v4390
        %v4768 = vunpack.c.l.b16 %v4400
        %v4769 = vunpack.c.l.b16 %v4414
        %v4770 = vunpack.c.l.b16 %v4424
        %v4771 = vunpack.c.l.b16 %v4438
        %v4772 = vunpack.c.l.b16 %v4448
        %v4773 = vpack.c.b16 %v4742, %v4741
        %v4774 = vpack.c.b16 %v4744, %v4743
        %v4775 = vpack.c.b16 %v4746, %v4745
        %v4776 = vpack.c.b16 %v4748, %v4747
        %v4777 = vpack.c.b16 %v4750, %v4749
        %v4778 = vpack.c.b16 %v4752, %v4751
        %v4779 = vpack.c.b16 %v4754, %v4753
        %v4780 = vpack.c.b16 %v4756, %v4755
        %v4781 = vpack.c.b16 %v4758, %v4757
        %v4782 = vpack.c.b16 %v4760, %v4759
        %v4783 = vpack.c.b16 %v4762, %v4761
        %v4784 = vpack.c.b16 %v4764, %v4763
        %v4785 = vpack.c.b16 %v4766, %v4765
        %v4786 = vpack.c.b16 %v4768, %v4767
        %v4787 = vpack.c.b16 %v4770, %v4769
        %v4788 = vpack.c.b16 %v4772, %v4771
        %v4805 = vunpack.c.l.b16 %v4500
        %v4806 = vunpack.c.l.b16 %v4503
        %v4807 = vunpack.c.l.b16 %v4507
        %v4808 = vunpack.c.l.b16 %v4510
        %v4809 = vunpack.c.l.b16 %v4514
        %v4810 = vunpack.c.l.b16 %v4517
        %v4811 = vunpack.c.l.b16 %v4521
        %v4812 = vunpack.c.l.b16 %v4524
        %v4813 = vunpack.c.l.b16 %v4528
        %v4814 = vunpack.c.l.b16 %v4531
        %v4815 = vunpack.c.l.b16 %v4535
        %v4816 = vunpack.c.l.b16 %v4538
        %v4817 = vunpack.c.l.b16 %v4542
        %v4818 = vunpack.c.l.b16 %v4545
        %v4819 = vunpack.c.l.b16 %v4549
        %v4820 = vunpack.c.l.b16 %v4552
        %v4821 = vunpack.c.l.b16 %v4556
        %v4822 = vunpack.c.l.b16 %v4559
        %v4823 = vunpack.c.l.b16 %v4563
        %v4824 = vunpack.c.l.b16 %v4566
        %v4825 = vunpack.c.l.b16 %v4570
        %v4826 = vunpack.c.l.b16 %v4573
        %v4827 = vunpack.c.l.b16 %v4577
        %v4828 = vunpack.c.l.b16 %v4580
        %v4829 = vunpack.c.l.b16 %v4584
        %v4830 = vunpack.c.l.b16 %v4587
        %v4831 = vunpack.c.l.b16 %v4591
        %v4832 = vunpack.c.l.b16 %v4594
        %v4833 = vunpack.c.l.b16 %v4598
        %v4834 = vunpack.c.l.b16 %v4601
        %v4835 = vunpack.c.l.b16 %v4605
        %v4836 = vunpack.c.l.b16 %v4608
        %v4837 = vpack.c.b16 %v4806, %v4805
        %v4838 = vpack.c.b16 %v4808, %v4807
        %v4839 = vpack.c.b16 %v4810, %v4809
        %v4840 = vpack.c.b16 %v4812, %v4811
        %v4841 = vpack.c.b16 %v4814, %v4813
        %v4842 = vpack.c.b16 %v4816, %v4815
        %v4843 = vpack.c.b16 %v4818, %v4817
        %v4844 = vpack.c.b16 %v4820, %v4819
        %v4845 = vpack.c.b16 %v4822, %v4821
        %v4846 = vpack.c.b16 %v4824, %v4823
        %v4847 = vpack.c.b16 %v4826, %v4825
        %v4848 = vpack.c.b16 %v4828, %v4827
        %v4849 = vpack.c.b16 %v4830, %v4829
        %v4850 = vpack.c.b16 %v4832, %v4831
        %v4851 = vpack.c.b16 %v4834, %v4833
        %v4852 = vpack.c.b16 %v4836, %v4835
        %v4869 = vunpack.c.l.b16 %v4059
        %v4870 = vunpack.c.l.b16 %v4060
        %v4871 = vpack.c.b16 %v4870, %v4869
        %v4873 = vunpack.c.l.b16 %v4622
        %v4874 = vunpack.c.l.b16 %v4632
        %v4875 = vpack.c.b16 %v4874, %v4873
        %v4877 = vunpack.c.l.b16 %v4639
        %v4878 = vunpack.c.l.b16 %v4642
        %v4879 = vpack.c.b16 %v4878, %v4877
        %v4881 = vunpack.c.l.b16 %v4062
        %v4882 = vunpack.c.l.b16 %v4063
        %v4883 = vpack.c.b16 %v4882, %v4881
        %v4885 = vunpack.c.l.b16 %v4656
        %v4886 = vunpack.c.l.b16 %v4666
        %v4887 = vpack.c.b16 %v4886, %v4885
        %v4889 = vunpack.c.l.b16 %v4673
        %v4890 = vunpack.c.l.b16 %v4676
        %v4891 = vpack.c.b16 %v4890, %v4889
        %v4893 = vld [vmem:[#allocation9] sm:$0xf]
        %v4894 = vld [vmem:[#allocation9 + $0x4] sm:$0xf]
        %v4895 = vld [vmem:[#allocation9 + $0x8] sm:$0xf]
        %v4896 = vld [vmem:[#allocation9 + $0xc] sm:$0xf]
        %v4897 = vld [vmem:[#allocation9 + $0x10] sm:$0xf]
        %v4898 = vld [vmem:[#allocation9 + $0x14] sm:$0xf]
        %v4899 = vld [vmem:[#allocation9 + $0x18] sm:$0xf]
        %v4900 = vld [vmem:[#allocation9 + $0x1c] sm:$0xf]
        %v4901 = vld [vmem:[#allocation9 + $0x20] sm:$0xf]
        %v4902 = vld [vmem:[#allocation9 + $0x24] sm:$0xf]
        %v4903 = vld [vmem:[#allocation9 + $0x28] sm:$0xf]
        %v4904 = vld [vmem:[#allocation9 + $0x2c] sm:$0xf]
        %v4905 = vld [vmem:[#allocation9 + $0x30] sm:$0xf]
        %v4906 = vld [vmem:[#allocation9 + $0x34] sm:$0xf]
        %v4907 = vld [vmem:[#allocation9 + $0x38] sm:$0xf]
        %v4908 = vld [vmem:[#allocation9 + $0x3c] sm:$0xf]
        %v4909 = vld [vmem:[#allocation9 + $0x40] sm:$0xf]
        %v4910 = vld [vmem:[#allocation9 + $0x44] sm:$0xf]
        %v4911 = vld [vmem:[#allocation9 + $0x48] sm:$0xf]
        %v4912 = vld [vmem:[#allocation9 + $0x4c] sm:$0xf]
        %v4913 = vld [vmem:[#allocation9 + $0x50] sm:$0xf]
        %v4914 = vld [vmem:[#allocation9 + $0x54] sm:$0xf]
        %v4915 = vld [vmem:[#allocation9 + $0x58] sm:$0xf]
        %v4916 = vld [vmem:[#allocation9 + $0x5c] sm:$0xf]
        %v4917 = vld [vmem:[#allocation9 + $0x60] sm:$0xf]
        %v4918 = vld [vmem:[#allocation9 + $0x64] sm:$0xf]
        %v4919 = vld [vmem:[#allocation9 + $0x68] sm:$0xf]
        %v4920 = vld [vmem:[#allocation9 + $0x6c] sm:$0xf]
        %v4921 = vld [vmem:[#allocation9 + $0x70] sm:$0xf]
        %v4922 = vld [vmem:[#allocation9 + $0x74] sm:$0xf]
        %v4923 = vld [vmem:[#allocation9 + $0x78] sm:$0xf]
        %v4924 = vld [vmem:[#allocation9 + $0x7c] sm:$0xf]
        %v4925 = vld [vmem:[#allocation9 + $0x80] sm:$0xf]
        %v4926 = vld [vmem:[#allocation9 + $0x84] sm:$0xf]
        %v4927 = vld [vmem:[#allocation9 + $0x88] sm:$0xf]
        %v4928 = vld [vmem:[#allocation9 + $0x8c] sm:$0xf]
        %v4929 = vld [vmem:[#allocation9 + $0x90] sm:$0xf]
        %v4930 = vld [vmem:[#allocation9 + $0x94] sm:$0xf]
        %v4931 = vld [vmem:[#allocation9 + $0x98] sm:$0xf]
        %v4932 = vld [vmem:[#allocation9 + $0x9c] sm:$0xf]
        %v4933 = vld [vmem:[#allocation9 + $0xa0] sm:$0xf]
        %v4934 = vld [vmem:[#allocation9 + $0xa4] sm:$0xf]
        %v4935 = vld [vmem:[#allocation9 + $0xa8] sm:$0xf]
        %v4936 = vld [vmem:[#allocation9 + $0xac] sm:$0xf]
        %v4937 = vld [vmem:[#allocation9 + $0xb0] sm:$0xf]
        %v4938 = vld [vmem:[#allocation9 + $0xb4] sm:$0xf]
        %v4939 = vld [vmem:[#allocation9 + $0xb8] sm:$0xf]
        %v4940 = vld [vmem:[#allocation9 + $0xbc] sm:$0xf]
        %v4941 = vld [vmem:[#allocation9 + $0xc0] sm:$0xf]
        %v4942 = vld [vmem:[#allocation9 + $0xc4] sm:$0xf]
        %v4943 = vld [vmem:[#allocation9 + $0xc8] sm:$0xf]
        %v4944 = vld [vmem:[#allocation9 + $0xcc] sm:$0xf]
        %v4945 = vld [vmem:[#allocation9 + $0xd0] sm:$0xf]
        %v4946 = vld [vmem:[#allocation9 + $0xd4] sm:$0xf]
        %v4947 = vld [vmem:[#allocation9 + $0xd8] sm:$0xf]
        %v4948 = vld [vmem:[#allocation9 + $0xdc] sm:$0xf]
        %v4949 = vld [vmem:[#allocation9 + $0xe0] sm:$0xf]
        %v4950 = vld [vmem:[#allocation9 + $0xe4] sm:$0xf]
        %v4951 = vld [vmem:[#allocation9 + $0xe8] sm:$0xf]
        %v4952 = vld [vmem:[#allocation9 + $0xec] sm:$0xf]
        %v4953 = vld [vmem:[#allocation9 + $0xf0] sm:$0xf]
        %v4954 = vld [vmem:[#allocation9 + $0xf4] sm:$0xf]
        %v4955 = vld [vmem:[#allocation9 + $0xf8] sm:$0xf]
        %v4956 = vld [vmem:[#allocation9 + $0xfc] sm:$0xf]
        %v4957 = vld [vmem:[#allocation9 + $0x100] sm:$0xf]
        %v4958 = vld [vmem:[#allocation9 + $0x104] sm:$0xf]
        %v4959 = vld [vmem:[#allocation9 + $0x108] sm:$0xf]
        %v4960 = vld [vmem:[#allocation9 + $0x10c] sm:$0xf]
        %v4961 = vld [vmem:[#allocation9 + $0x110] sm:$0xf]
        %v4962 = vld [vmem:[#allocation9 + $0x114] sm:$0xf]
        %v4963 = vld [vmem:[#allocation9 + $0x118] sm:$0xf]
        %v4964 = vld [vmem:[#allocation9 + $0x11c] sm:$0xf]
        %v4965 = vld [vmem:[#allocation9 + $0x120] sm:$0xf]
        %v4966 = vld [vmem:[#allocation9 + $0x124] sm:$0xf]
        %v4967 = vld [vmem:[#allocation9 + $0x128] sm:$0xf]
        %v4968 = vld [vmem:[#allocation9 + $0x12c] sm:$0xf]
        %v4969 = vld [vmem:[#allocation9 + $0x130] sm:$0xf]
        %v4970 = vld [vmem:[#allocation9 + $0x134] sm:$0xf]
        %v4971 = vld [vmem:[#allocation9 + $0x138] sm:$0xf]
        %v4972 = vld [vmem:[#allocation9 + $0x13c] sm:$0xf]
        %v4973 = vld [vmem:[#allocation9 + $0x140] sm:$0xf]
        %v4974 = vld [vmem:[#allocation9 + $0x144] sm:$0xf]
        %v4975 = vld [vmem:[#allocation9 + $0x148] sm:$0xf]
        %v4976 = vld [vmem:[#allocation9 + $0x14c] sm:$0xf]
        %v4977 = vld [vmem:[#allocation9 + $0x150] sm:$0xf]
        %v4978 = vld [vmem:[#allocation9 + $0x154] sm:$0xf]
        %v4979 = vld [vmem:[#allocation9 + $0x158] sm:$0xf]
        %v4980 = vld [vmem:[#allocation9 + $0x15c] sm:$0xf]
        %v4981 = vld [vmem:[#allocation9 + $0x160] sm:$0xf]
        %v4982 = vld [vmem:[#allocation9 + $0x164] sm:$0xf]
        %v4983 = vld [vmem:[#allocation9 + $0x168] sm:$0xf]
        %v4984 = vld [vmem:[#allocation9 + $0x16c] sm:$0xf]
        %v4985 = vld [vmem:[#allocation9 + $0x170] sm:$0xf]
        %v4986 = vld [vmem:[#allocation9 + $0x174] sm:$0xf]
        %v4987 = vld [vmem:[#allocation9 + $0x178] sm:$0xf]
        %v4988 = vld [vmem:[#allocation9 + $0x17c] sm:$0xf]
        %v4989 = vld [vmem:[#allocation9 + $0x180] sm:$0xf]
        %v4990 = vld [vmem:[#allocation9 + $0x184] sm:$0xf]
        %v4991 = vld [vmem:[#allocation9 + $0x188] sm:$0xf]
        %v4992 = vld [vmem:[#allocation9 + $0x18c] sm:$0xf]
        %v4993 = vld [vmem:[#allocation9 + $0x190] sm:$0xf]
        %v4994 = vld [vmem:[#allocation9 + $0x194] sm:$0xf]
        %v4995 = vld [vmem:[#allocation9 + $0x198] sm:$0xf]
        %v4996 = vld [vmem:[#allocation9 + $0x19c] sm:$0xf]
        %v4997 = vld [vmem:[#allocation9 + $0x1a0] sm:$0xf]
        %v4998 = vld [vmem:[#allocation9 + $0x1a4] sm:$0xf]
        %v4999 = vld [vmem:[#allocation9 + $0x1a8] sm:$0xf]
        %v5000 = vld [vmem:[#allocation9 + $0x1ac] sm:$0xf]
        %v5001 = vld [vmem:[#allocation9 + $0x1b0] sm:$0xf]
        %v5002 = vld [vmem:[#allocation9 + $0x1b4] sm:$0xf]
        %v5003 = vld [vmem:[#allocation9 + $0x1b8] sm:$0xf]
        %v5004 = vld [vmem:[#allocation9 + $0x1bc] sm:$0xf]
        %v5005 = vld [vmem:[#allocation9 + $0x1c0] sm:$0xf]
        %v5006 = vld [vmem:[#allocation9 + $0x1c4] sm:$0xf]
        %v5007 = vld [vmem:[#allocation9 + $0x1c8] sm:$0xf]
        %v5008 = vld [vmem:[#allocation9 + $0x1cc] sm:$0xf]
        %v5009 = vld [vmem:[#allocation9 + $0x1d0] sm:$0xf]
        %v5010 = vld [vmem:[#allocation9 + $0x1d4] sm:$0xf]
        %v5011 = vld [vmem:[#allocation9 + $0x1d8] sm:$0xf]
        %v5012 = vld [vmem:[#allocation9 + $0x1dc] sm:$0xf]
        %v5013 = vld [vmem:[#allocation9 + $0x1e0] sm:$0xf]
        %v5014 = vld [vmem:[#allocation9 + $0x1e4] sm:$0xf]
        %v5015 = vld [vmem:[#allocation9 + $0x1e8] sm:$0xf]
        %v5016 = vld [vmem:[#allocation9 + $0x1ec] sm:$0xf]
        %v5017 = vld [vmem:[#allocation9 + $0x1f0] sm:$0xf]
        %v5018 = vld [vmem:[#allocation9 + $0x1f4] sm:$0xf]
        %v5019 = vld [vmem:[#allocation9 + $0x1f8] sm:$0xf]
        %v5020 = vld [vmem:[#allocation9 + $0x1fc] sm:$0xf]
        %v5021 = vld [vmem:[#allocation9 + $0x200] sm:$0xf]
        %v5022 = vld [vmem:[#allocation9 + $0x204] sm:$0xf]
        %v5023 = vld [vmem:[#allocation9 + $0x208] sm:$0xf]
        %v5024 = vld [vmem:[#allocation9 + $0x20c] sm:$0xf]
        %v5025 = vld [vmem:[#allocation9 + $0x210] sm:$0xf]
        %v5026 = vld [vmem:[#allocation9 + $0x214] sm:$0xf]
        %v5027 = vld [vmem:[#allocation9 + $0x218] sm:$0xf]
        %v5028 = vld [vmem:[#allocation9 + $0x21c] sm:$0xf]
        %v5029 = vld [vmem:[#allocation9 + $0x220] sm:$0xf]
        %v5030 = vld [vmem:[#allocation9 + $0x224] sm:$0xf]
        %v5031 = vld [vmem:[#allocation9 + $0x228] sm:$0xf]
        %v5032 = vld [vmem:[#allocation9 + $0x22c] sm:$0xf]
        %v5033 = vld [vmem:[#allocation9 + $0x230] sm:$0xf]
        %v5034 = vld [vmem:[#allocation9 + $0x234] sm:$0xf]
        %v5035 = vld [vmem:[#allocation9 + $0x238] sm:$0xf]
        %v5036 = vld [vmem:[#allocation9 + $0x23c] sm:$0xf]
        %v5181 = vunpack.c.l.b16 %v4893
        %v5182 = vunpack.c.l.b16 %v4894
        %v5183 = vunpack.c.l.b16 %v4895
        %v5184 = vunpack.c.l.b16 %v4896
        %v5185 = vunpack.c.l.b16 %v4897
        %v5186 = vunpack.c.l.b16 %v4898
        %v5187 = vunpack.c.l.b16 %v4899
        %v5188 = vunpack.c.l.b16 %v4900
        %v5189 = vunpack.c.l.b16 %v4901
        %v5190 = vunpack.c.l.b16 %v4902
        %v5191 = vunpack.c.l.b16 %v4903
        %v5192 = vunpack.c.l.b16 %v4904
        %v5193 = vunpack.c.l.b16 %v4905
        %v5194 = vunpack.c.l.b16 %v4906
        %v5195 = vunpack.c.l.b16 %v4907
        %v5196 = vunpack.c.l.b16 %v4908
        %v5197 = vunpack.c.l.b16 %v4909
        %v5198 = vunpack.c.l.b16 %v4910
        %v5199 = vunpack.c.l.b16 %v4911
        %v5200 = vunpack.c.l.b16 %v4912
        %v5201 = vunpack.c.l.b16 %v4913
        %v5202 = vunpack.c.l.b16 %v4914
        %v5203 = vunpack.c.l.b16 %v4915
        %v5204 = vunpack.c.l.b16 %v4916
        %v5205 = vunpack.c.l.b16 %v4917
        %v5206 = vunpack.c.l.b16 %v4918
        %v5207 = vunpack.c.l.b16 %v4919
        %v5208 = vunpack.c.l.b16 %v4920
        %v5209 = vunpack.c.l.b16 %v4921
        %v5210 = vunpack.c.l.b16 %v4922
        %v5211 = vunpack.c.l.b16 %v4923
        %v5212 = vunpack.c.l.b16 %v4924
        %v5213 = vunpack.c.l.b16 %v4925
        %v5214 = vunpack.c.l.b16 %v4926
        %v5215 = vunpack.c.l.b16 %v4927
        %v5216 = vunpack.c.l.b16 %v4928
        %v5217 = vunpack.c.l.b16 %v4929
        %v5218 = vunpack.c.l.b16 %v4930
        %v5219 = vunpack.c.l.b16 %v4931
        %v5220 = vunpack.c.l.b16 %v4932
        %v5221 = vunpack.c.l.b16 %v4933
        %v5222 = vunpack.c.l.b16 %v4934
        %v5223 = vunpack.c.l.b16 %v4935
        %v5224 = vunpack.c.l.b16 %v4936
        %v5225 = vunpack.c.l.b16 %v4937
        %v5226 = vunpack.c.l.b16 %v4938
        %v5227 = vunpack.c.l.b16 %v4939
        %v5228 = vunpack.c.l.b16 %v4940
        %v5229 = vunpack.c.l.b16 %v4941
        %v5230 = vunpack.c.l.b16 %v4942
        %v5231 = vunpack.c.l.b16 %v4943
        %v5232 = vunpack.c.l.b16 %v4944
        %v5233 = vunpack.c.l.b16 %v4945
        %v5234 = vunpack.c.l.b16 %v4946
        %v5235 = vunpack.c.l.b16 %v4947
        %v5236 = vunpack.c.l.b16 %v4948
        %v5237 = vunpack.c.l.b16 %v4949
        %v5238 = vunpack.c.l.b16 %v4950
        %v5239 = vunpack.c.l.b16 %v4951
        %v5240 = vunpack.c.l.b16 %v4952
        %v5241 = vunpack.c.l.b16 %v4953
        %v5242 = vunpack.c.l.b16 %v4954
        %v5243 = vunpack.c.l.b16 %v4955
        %v5244 = vunpack.c.l.b16 %v4956
        %v5245 = vunpack.c.l.b16 %v4957
        %v5246 = vunpack.c.l.b16 %v4958
        %v5247 = vunpack.c.l.b16 %v4959
        %v5248 = vunpack.c.l.b16 %v4960
        %v5249 = vunpack.c.l.b16 %v4961
        %v5250 = vunpack.c.l.b16 %v4962
        %v5251 = vunpack.c.l.b16 %v4963
        %v5252 = vunpack.c.l.b16 %v4964
        %v5253 = vunpack.c.l.b16 %v4965
        %v5254 = vunpack.c.l.b16 %v4966
        %v5255 = vunpack.c.l.b16 %v4967
        %v5256 = vunpack.c.l.b16 %v4968
        %v5257 = vunpack.c.l.b16 %v4969
        %v5258 = vunpack.c.l.b16 %v4970
        %v5259 = vunpack.c.l.b16 %v4971
        %v5260 = vunpack.c.l.b16 %v4972
        %v5261 = vunpack.c.l.b16 %v4973
        %v5262 = vunpack.c.l.b16 %v4974
        %v5263 = vunpack.c.l.b16 %v4975
        %v5264 = vunpack.c.l.b16 %v4976
        %v5265 = vunpack.c.l.b16 %v4977
        %v5266 = vunpack.c.l.b16 %v4978
        %v5267 = vunpack.c.l.b16 %v4979
        %v5268 = vunpack.c.l.b16 %v4980
        %v5269 = vunpack.c.l.b16 %v4981
        %v5270 = vunpack.c.l.b16 %v4982
        %v5271 = vunpack.c.l.b16 %v4983
        %v5272 = vunpack.c.l.b16 %v4984
        %v5273 = vunpack.c.l.b16 %v4985
        %v5274 = vunpack.c.l.b16 %v4986
        %v5275 = vunpack.c.l.b16 %v4987
        %v5276 = vunpack.c.l.b16 %v4988
        %v5277 = vunpack.c.l.b16 %v4989
        %v5278 = vunpack.c.l.b16 %v4990
        %v5279 = vunpack.c.l.b16 %v4991
        %v5280 = vunpack.c.l.b16 %v4992
        %v5281 = vunpack.c.l.b16 %v4993
        %v5282 = vunpack.c.l.b16 %v4994
        %v5283 = vunpack.c.l.b16 %v4995
        %v5284 = vunpack.c.l.b16 %v4996
        %v5285 = vunpack.c.l.b16 %v4997
        %v5286 = vunpack.c.l.b16 %v4998
        %v5287 = vunpack.c.l.b16 %v4999
        %v5288 = vunpack.c.l.b16 %v5000
        %v5289 = vunpack.c.l.b16 %v5001
        %v5290 = vunpack.c.l.b16 %v5002
        %v5291 = vunpack.c.l.b16 %v5003
        %v5292 = vunpack.c.l.b16 %v5004
        %v5293 = vunpack.c.l.b16 %v5005
        %v5294 = vunpack.c.l.b16 %v5006
        %v5295 = vunpack.c.l.b16 %v5007
        %v5296 = vunpack.c.l.b16 %v5008
        %v5297 = vunpack.c.l.b16 %v5009
        %v5298 = vunpack.c.l.b16 %v5010
        %v5299 = vunpack.c.l.b16 %v5011
        %v5300 = vunpack.c.l.b16 %v5012
        %v5301 = vunpack.c.l.b16 %v5013
        %v5302 = vunpack.c.l.b16 %v5014
        %v5303 = vunpack.c.l.b16 %v5015
        %v5304 = vunpack.c.l.b16 %v5016
        %v5305 = vunpack.c.l.b16 %v5017
        %v5306 = vunpack.c.l.b16 %v5018
        %v5307 = vunpack.c.l.b16 %v5019
        %v5308 = vunpack.c.l.b16 %v5020
        %v5309 = vunpack.c.l.b16 %v5021
        %v5310 = vunpack.c.l.b16 %v5022
        %v5311 = vunpack.c.l.b16 %v5023
        %v5312 = vunpack.c.l.b16 %v5024
        %v5313 = vunpack.c.l.b16 %v5025
        %v5314 = vunpack.c.l.b16 %v5026
        %v5315 = vunpack.c.l.b16 %v5027
        %v5316 = vunpack.c.l.b16 %v5028
        %v5317 = vunpack.c.l.b16 %v5029
        %v5318 = vunpack.c.l.b16 %v5030
        %v5319 = vunpack.c.l.b16 %v5031
        %v5320 = vunpack.c.l.b16 %v5032
        %v5321 = vunpack.c.l.b16 %v5033
        %v5322 = vunpack.c.l.b16 %v5034
        %v5323 = vunpack.c.l.b16 %v5035
        %v5324 = vunpack.c.l.b16 %v5036
        %v5325 = vpack.c.b16 %v5182, %v5181
        %v5326 = vpack.c.b16 %v5184, %v5183
        %v5327 = vpack.c.b16 %v5186, %v5185
        %v5328 = vpack.c.b16 %v5188, %v5187
        %v5329 = vpack.c.b16 %v5190, %v5189
        %v5330 = vpack.c.b16 %v5192, %v5191
        %v5331 = vpack.c.b16 %v5194, %v5193
        %v5332 = vpack.c.b16 %v5196, %v5195
        %v5333 = vpack.c.b16 %v5198, %v5197
        %v5334 = vpack.c.b16 %v5200, %v5199
        %v5335 = vpack.c.b16 %v5202, %v5201
        %v5336 = vpack.c.b16 %v5204, %v5203
        %v5337 = vpack.c.b16 %v5206, %v5205
        %v5338 = vpack.c.b16 %v5208, %v5207
        %v5339 = vpack.c.b16 %v5210, %v5209
        %v5340 = vpack.c.b16 %v5212, %v5211
        %v5341 = vpack.c.b16 %v5214, %v5213
        %v5342 = vpack.c.b16 %v5216, %v5215
        %v5343 = vpack.c.b16 %v5218, %v5217
        %v5344 = vpack.c.b16 %v5220, %v5219
        %v5345 = vpack.c.b16 %v5222, %v5221
        %v5346 = vpack.c.b16 %v5224, %v5223
        %v5347 = vpack.c.b16 %v5226, %v5225
        %v5348 = vpack.c.b16 %v5228, %v5227
        %v5349 = vpack.c.b16 %v5230, %v5229
        %v5350 = vpack.c.b16 %v5232, %v5231
        %v5351 = vpack.c.b16 %v5234, %v5233
        %v5352 = vpack.c.b16 %v5236, %v5235
        %v5353 = vpack.c.b16 %v5238, %v5237
        %v5354 = vpack.c.b16 %v5240, %v5239
        %v5355 = vpack.c.b16 %v5242, %v5241
        %v5356 = vpack.c.b16 %v5244, %v5243
        %v5357 = vpack.c.b16 %v5246, %v5245
        %v5358 = vpack.c.b16 %v5248, %v5247
        %v5359 = vpack.c.b16 %v5250, %v5249
        %v5360 = vpack.c.b16 %v5252, %v5251
        %v5361 = vpack.c.b16 %v5254, %v5253
        %v5362 = vpack.c.b16 %v5256, %v5255
        %v5363 = vpack.c.b16 %v5258, %v5257
        %v5364 = vpack.c.b16 %v5260, %v5259
        %v5365 = vpack.c.b16 %v5262, %v5261
        %v5366 = vpack.c.b16 %v5264, %v5263
        %v5367 = vpack.c.b16 %v5266, %v5265
        %v5368 = vpack.c.b16 %v5268, %v5267
        %v5369 = vpack.c.b16 %v5270, %v5269
        %v5370 = vpack.c.b16 %v5272, %v5271
        %v5371 = vpack.c.b16 %v5274, %v5273
        %v5372 = vpack.c.b16 %v5276, %v5275
        %v5373 = vpack.c.b16 %v5278, %v5277
        %v5374 = vpack.c.b16 %v5280, %v5279
        %v5375 = vpack.c.b16 %v5282, %v5281
        %v5376 = vpack.c.b16 %v5284, %v5283
        %v5377 = vpack.c.b16 %v5286, %v5285
        %v5378 = vpack.c.b16 %v5288, %v5287
        %v5379 = vpack.c.b16 %v5290, %v5289
        %v5380 = vpack.c.b16 %v5292, %v5291
        %v5381 = vpack.c.b16 %v5294, %v5293
        %v5382 = vpack.c.b16 %v5296, %v5295
        %v5383 = vpack.c.b16 %v5298, %v5297
        %v5384 = vpack.c.b16 %v5300, %v5299
        %v5385 = vpack.c.b16 %v5302, %v5301
        %v5386 = vpack.c.b16 %v5304, %v5303
        %v5387 = vpack.c.b16 %v5306, %v5305
        %v5388 = vpack.c.b16 %v5308, %v5307
        %v5389 = vpack.c.b16 %v5310, %v5309
        %v5390 = vpack.c.b16 %v5312, %v5311
        %v5391 = vpack.c.b16 %v5314, %v5313
        %v5392 = vpack.c.b16 %v5316, %v5315
        %v5393 = vpack.c.b16 %v5318, %v5317
        %v5394 = vpack.c.b16 %v5320, %v5319
        %v5395 = vpack.c.b16 %v5322, %v5321
        %v5396 = vpack.c.b16 %v5324, %v5323
        %5469 = vmatprep.subr.bf16.mxu0 0
        %5470 = vmatpush1.bf16.msra.mxu0 %v5332
        %5471 = vmatprep.subr.bf16.mxu0 0
        %5472 = vmatpush1.bf16.msra.mxu0 %v5331
        %5473 = vmatprep.subr.bf16.mxu0 0
        %5474 = vmatpush1.bf16.msra.mxu0 %v5330
        %5475 = vmatprep.subr.bf16.mxu0 0
        %5476 = vmatpush1.bf16.msra.mxu0 %v5329
        %5477 = vmatprep.subr.bf16.mxu0 0
        %5478 = vmatpush1.bf16.msra.mxu0 %v5328
        %5479 = vmatprep.subr.bf16.mxu0 0
        %5480 = vmatpush1.bf16.msra.mxu0 %v5327
        %5481 = vmatprep.subr.bf16.mxu0 0
        %5482 = vmatpush1.bf16.msra.mxu0 %v5326
        %5483 = vmatprep.subr.bf16.mxu0 0
        %5484 = vmatpush1.bf16.msra.mxu0 %v5325
        %5485 = vmatprep.subr.bf16.mxu0 0
        %5486 = vmatpush2.bf16.msra.mxu0 %v5340
        %5487 = vmatprep.subr.bf16.mxu0 0
        %5488 = vmatpush2.bf16.msra.mxu0 %v5339
        %5489 = vmatprep.subr.bf16.mxu0 0
        %5490 = vmatpush2.bf16.msra.mxu0 %v5338
        %5491 = vmatprep.subr.bf16.mxu0 0
        %5492 = vmatpush2.bf16.msra.mxu0 %v5337
        %5493 = vmatprep.subr.bf16.mxu0 0
        %5494 = vmatpush2.bf16.msra.mxu0 %v5336
        %5495 = vmatprep.subr.bf16.mxu0 0
        %5496 = vmatpush2.bf16.msra.mxu0 %v5335
        %5497 = vmatprep.subr.bf16.mxu0 0
        %5498 = vmatpush2.bf16.msra.mxu0 %v5334
        %5499 = vmatprep.subr.bf16.mxu0 0
        %5500 = vmatpush2.bf16.msra.mxu0 %v5333
        %5501 = vmatprep.mubr.bf16.mxu0 %v4773
        %5502 = vmatmul.mubr.bf16.gmra.mxu0 %v4709
        %v5503 = vpop.f32.mrf.mxu0
        %v5504 = vadd.f32 0.0, %v5503
        %v5505 = vpop.f32.mrf.mxu0
        %v5506 = vpop.f32.mrf.mxu0
        %v5507 = vadd.f32 0.0, %v5506
        %v5508 = vpop.f32.mrf.mxu0
        %5509 = vmatprep.mubr.bf16.mxu0 %v4774
        %5510 = vmatmul.mubr.bf16.gmra.mxu0 %v4710
        %v5511 = vpop.f32.mrf.mxu0
        %v5512 = vadd.f32 0.0, %v5511
        %v5513 = vpop.f32.mrf.mxu0
        %v5514 = vpop.f32.mrf.mxu0
        %v5515 = vadd.f32 0.0, %v5514
        %v5516 = vpop.f32.mrf.mxu0
        %5517 = vmatprep.mubr.bf16.mxu0 %v4775
        %5518 = vmatmul.mubr.bf16.gmra.mxu0 %v4711
        %v5519 = vpop.f32.mrf.mxu0
        %v5520 = vadd.f32 0.0, %v5519
        %v5521 = vpop.f32.mrf.mxu0
        %v5522 = vpop.f32.mrf.mxu0
        %v5523 = vadd.f32 0.0, %v5522
        %v5524 = vpop.f32.mrf.mxu0
        %5525 = vmatprep.mubr.bf16.mxu0 %v4776
        %5526 = vmatmul.mubr.bf16.gmra.mxu0 %v4712
        %v5527 = vpop.f32.mrf.mxu0
        %v5528 = vadd.f32 0.0, %v5527
        %v5529 = vpop.f32.mrf.mxu0
        %v5530 = vpop.f32.mrf.mxu0
        %v5531 = vadd.f32 0.0, %v5530
        %v5532 = vpop.f32.mrf.mxu0
        %5533 = vmatprep.mubr.bf16.mxu0 %v4777
        %5534 = vmatmul.mubr.bf16.gmra.mxu0 %v4713
        %v5535 = vpop.f32.mrf.mxu0
        %v5536 = vadd.f32 0.0, %v5535
        %v5537 = vpop.f32.mrf.mxu0
        %v5538 = vpop.f32.mrf.mxu0
        %v5539 = vadd.f32 0.0, %v5538
        %v5540 = vpop.f32.mrf.mxu0
        %5541 = vmatprep.mubr.bf16.mxu0 %v4778
        %5542 = vmatmul.mubr.bf16.gmra.mxu0 %v4714
        %v5543 = vpop.f32.mrf.mxu0
        %v5544 = vadd.f32 0.0, %v5543
        %v5545 = vpop.f32.mrf.mxu0
        %v5546 = vpop.f32.mrf.mxu0
        %v5547 = vadd.f32 0.0, %v5546
        %v5548 = vpop.f32.mrf.mxu0
        %5549 = vmatprep.mubr.bf16.mxu0 %v4779
        %5550 = vmatmul.mubr.bf16.gmra.mxu0 %v4715
        %v5551 = vpop.f32.mrf.mxu0
        %v5552 = vadd.f32 0.0, %v5551
        %v5553 = vpop.f32.mrf.mxu0
        %v5554 = vpop.f32.mrf.mxu0
        %v5555 = vadd.f32 0.0, %v5554
        %v5556 = vpop.f32.mrf.mxu0
        %5557 = vmatprep.mubr.bf16.mxu0 %v4780
        %5558 = vmatmul.mubr.bf16.gmra.mxu0 %v4716
        %v5559 = vpop.f32.mrf.mxu0
        %v5560 = vadd.f32 0.0, %v5559
        %v5561 = vpop.f32.mrf.mxu0
        %v5562 = vpop.f32.mrf.mxu0
        %v5563 = vadd.f32 0.0, %v5562
        %v5564 = vpop.f32.mrf.mxu0
        %5565 = vmatprep.mubr.bf16.mxu0 %v4781
        %5566 = vmatmul.mubr.bf16.gmra.mxu0 %v4717
        %v5567 = vpop.f32.mrf.mxu0
        %v5568 = vadd.f32 0.0, %v5567
        %v5569 = vpop.f32.mrf.mxu0
        %v5570 = vpop.f32.mrf.mxu0
        %v5571 = vadd.f32 0.0, %v5570
        %v5572 = vpop.f32.mrf.mxu0
        %5573 = vmatprep.mubr.bf16.mxu0 %v4782
        %5574 = vmatmul.mubr.bf16.gmra.mxu0 %v4718
        %v5575 = vpop.f32.mrf.mxu0
        %v5576 = vadd.f32 0.0, %v5575
        %v5577 = vpop.f32.mrf.mxu0
        %v5578 = vpop.f32.mrf.mxu0
        %v5579 = vadd.f32 0.0, %v5578
        %v5580 = vpop.f32.mrf.mxu0
        %5581 = vmatprep.mubr.bf16.mxu0 %v4783
        %5582 = vmatmul.mubr.bf16.gmra.mxu0 %v4719
        %v5583 = vpop.f32.mrf.mxu0
        %v5584 = vadd.f32 0.0, %v5583
        %v5585 = vpop.f32.mrf.mxu0
        %v5586 = vpop.f32.mrf.mxu0
        %v5587 = vadd.f32 0.0, %v5586
        %v5588 = vpop.f32.mrf.mxu0
        %5589 = vmatprep.mubr.bf16.mxu0 %v4784
        %5590 = vmatmul.mubr.bf16.gmra.mxu0 %v4720
        %v5591 = vpop.f32.mrf.mxu0
        %v5592 = vadd.f32 0.0, %v5591
        %v5593 = vpop.f32.mrf.mxu0
        %v5594 = vpop.f32.mrf.mxu0
        %v5595 = vadd.f32 0.0, %v5594
        %v5596 = vpop.f32.mrf.mxu0
        %5597 = vmatprep.mubr.bf16.mxu0 %v4785
        %5598 = vmatmul.mubr.bf16.gmra.mxu0 %v4721
        %v5599 = vpop.f32.mrf.mxu0
        %v5600 = vadd.f32 0.0, %v5599
        %v5601 = vpop.f32.mrf.mxu0
        %v5602 = vpop.f32.mrf.mxu0
        %v5603 = vadd.f32 0.0, %v5602
        %v5604 = vpop.f32.mrf.mxu0
        %5605 = vmatprep.mubr.bf16.mxu0 %v4786
        %5606 = vmatmul.mubr.bf16.gmra.mxu0 %v4722
        %v5607 = vpop.f32.mrf.mxu0
        %v5608 = vadd.f32 0.0, %v5607
        %v5609 = vpop.f32.mrf.mxu0
        %v5610 = vpop.f32.mrf.mxu0
        %v5611 = vadd.f32 0.0, %v5610
        %v5612 = vpop.f32.mrf.mxu0
        %5613 = vmatprep.mubr.bf16.mxu0 %v4787
        %5614 = vmatmul.mubr.bf16.gmra.mxu0 %v4723
        %v5615 = vpop.f32.mrf.mxu0
        %v5616 = vadd.f32 0.0, %v5615
        %v5617 = vpop.f32.mrf.mxu0
        %v5618 = vpop.f32.mrf.mxu0
        %v5619 = vadd.f32 0.0, %v5618
        %v5620 = vpop.f32.mrf.mxu0
        %5621 = vmatprep.mubr.bf16.mxu0 %v4788
        %5622 = vmatmul.mubr.bf16.gmra.mxu0 %v4724
        %v5623 = vpop.f32.mrf.mxu0
        %v5624 = vadd.f32 0.0, %v5623
        %v5625 = vpop.f32.mrf.mxu0
        %v5626 = vpop.f32.mrf.mxu0
        %v5627 = vadd.f32 0.0, %v5626
        %v5628 = vpop.f32.mrf.mxu0
        %5629 = vdwg.mxu0
        %5630 = vmatprep.subr.bf16.mxu0 0
        %5631 = vmatpush1.bf16.msra.mxu0 %v5348
        %5632 = vmatprep.subr.bf16.mxu0 0
        %5633 = vmatpush1.bf16.msra.mxu0 %v5347
        %5634 = vmatprep.subr.bf16.mxu0 0
        %5635 = vmatpush1.bf16.msra.mxu0 %v5346
        %5636 = vmatprep.subr.bf16.mxu0 0
        %5637 = vmatpush1.bf16.msra.mxu0 %v5345
        %5638 = vmatprep.subr.bf16.mxu0 0
        %5639 = vmatpush1.bf16.msra.mxu0 %v5344
        %5640 = vmatprep.subr.bf16.mxu0 0
        %5641 = vmatpush1.bf16.msra.mxu0 %v5343
        %5642 = vmatprep.subr.bf16.mxu0 0
        %5643 = vmatpush1.bf16.msra.mxu0 %v5342
        %5644 = vmatprep.subr.bf16.mxu0 0
        %5645 = vmatpush1.bf16.msra.mxu0 %v5341
        %5646 = vmatprep.subr.bf16.mxu0 0
        %5647 = vmatpush2.bf16.msra.mxu0 %v5356
        %5648 = vmatprep.subr.bf16.mxu0 0
        %5649 = vmatpush2.bf16.msra.mxu0 %v5355
        %5650 = vmatprep.subr.bf16.mxu0 0
        %5651 = vmatpush2.bf16.msra.mxu0 %v5354
        %5652 = vmatprep.subr.bf16.mxu0 0
        %5653 = vmatpush2.bf16.msra.mxu0 %v5353
        %5654 = vmatprep.subr.bf16.mxu0 0
        %5655 = vmatpush2.bf16.msra.mxu0 %v5352
        %5656 = vmatprep.subr.bf16.mxu0 0
        %5657 = vmatpush2.bf16.msra.mxu0 %v5351
        %5658 = vmatprep.subr.bf16.mxu0 0
        %5659 = vmatpush2.bf16.msra.mxu0 %v5350
        %5660 = vmatprep.subr.bf16.mxu0 0
        %5661 = vmatpush2.bf16.msra.mxu0 %v5349
        %5662 = vmatprep.mubr.bf16.mxu0 %v4710
        %5663 = vmatmul.mubr.bf16.gmra.mxu0 %v4837
        %v5664 = vpop.f32.mrf.mxu0
        %v5665 = vadd.f32 %v5504, %v5664
        %v5666 = vpop.f32.mrf.mxu0
        %v5667 = vpop.f32.mrf.mxu0
        %v5668 = vadd.f32 %v5507, %v5667
        %v5669 = vpop.f32.mrf.mxu0
        %5670 = vmatprep.mubr.bf16.mxu0 %v4711
        %5671 = vmatmul.mubr.bf16.gmra.mxu0 %v4838
        %v5672 = vpop.f32.mrf.mxu0
        %v5673 = vadd.f32 %v5512, %v5672
        %v5674 = vpop.f32.mrf.mxu0
        %v5675 = vpop.f32.mrf.mxu0
        %v5676 = vadd.f32 %v5515, %v5675
        %v5677 = vpop.f32.mrf.mxu0
        %5678 = vmatprep.mubr.bf16.mxu0 %v4712
        %5679 = vmatmul.mubr.bf16.gmra.mxu0 %v4839
        %v5680 = vpop.f32.mrf.mxu0
        %v5681 = vadd.f32 %v5520, %v5680
        %v5682 = vpop.f32.mrf.mxu0
        %v5683 = vpop.f32.mrf.mxu0
        %v5684 = vadd.f32 %v5523, %v5683
        %v5685 = vpop.f32.mrf.mxu0
        %5686 = vmatprep.mubr.bf16.mxu0 %v4713
        %5687 = vmatmul.mubr.bf16.gmra.mxu0 %v4840
        %v5688 = vpop.f32.mrf.mxu0
        %v5689 = vadd.f32 %v5528, %v5688
        %v5690 = vpop.f32.mrf.mxu0
        %v5691 = vpop.f32.mrf.mxu0
        %v5692 = vadd.f32 %v5531, %v5691
        %v5693 = vpop.f32.mrf.mxu0
        %5694 = vmatprep.mubr.bf16.mxu0 %v4714
        %5695 = vmatmul.mubr.bf16.gmra.mxu0 %v4841
        %v5696 = vpop.f32.mrf.mxu0
        %v5697 = vadd.f32 %v5536, %v5696
        %v5698 = vpop.f32.mrf.mxu0
        %v5699 = vpop.f32.mrf.mxu0
        %v5700 = vadd.f32 %v5539, %v5699
        %v5701 = vpop.f32.mrf.mxu0
        %5702 = vmatprep.mubr.bf16.mxu0 %v4715
        %5703 = vmatmul.mubr.bf16.gmra.mxu0 %v4842
        %v5704 = vpop.f32.mrf.mxu0
        %v5705 = vadd.f32 %v5544, %v5704
        %v5706 = vpop.f32.mrf.mxu0
        %v5707 = vpop.f32.mrf.mxu0
        %v5708 = vadd.f32 %v5547, %v5707
        %v5709 = vpop.f32.mrf.mxu0
        %5710 = vmatprep.mubr.bf16.mxu0 %v4716
        %5711 = vmatmul.mubr.bf16.gmra.mxu0 %v4843
        %v5712 = vpop.f32.mrf.mxu0
        %v5713 = vadd.f32 %v5552, %v5712
        %v5714 = vpop.f32.mrf.mxu0
        %v5715 = vpop.f32.mrf.mxu0
        %v5716 = vadd.f32 %v5555, %v5715
        %v5717 = vpop.f32.mrf.mxu0
        %5718 = vmatprep.mubr.bf16.mxu0 %v4717
        %5719 = vmatmul.mubr.bf16.gmra.mxu0 %v4844
        %v5720 = vpop.f32.mrf.mxu0
        %v5721 = vadd.f32 %v5560, %v5720
        %v5722 = vpop.f32.mrf.mxu0
        %v5723 = vpop.f32.mrf.mxu0
        %v5724 = vadd.f32 %v5563, %v5723
        %v5725 = vpop.f32.mrf.mxu0
        %5726 = vmatprep.mubr.bf16.mxu0 %v4718
        %5727 = vmatmul.mubr.bf16.gmra.mxu0 %v4845
        %v5728 = vpop.f32.mrf.mxu0
        %v5729 = vadd.f32 %v5568, %v5728
        %v5730 = vpop.f32.mrf.mxu0
        %v5731 = vpop.f32.mrf.mxu0
        %v5732 = vadd.f32 %v5571, %v5731
        %v5733 = vpop.f32.mrf.mxu0
        %5734 = vmatprep.mubr.bf16.mxu0 %v4719
        %5735 = vmatmul.mubr.bf16.gmra.mxu0 %v4846
        %v5736 = vpop.f32.mrf.mxu0
        %v5737 = vadd.f32 %v5576, %v5736
        %v5738 = vpop.f32.mrf.mxu0
        %v5739 = vpop.f32.mrf.mxu0
        %v5740 = vadd.f32 %v5579, %v5739
        %v5741 = vpop.f32.mrf.mxu0
        %5742 = vmatprep.mubr.bf16.mxu0 %v4720
        %5743 = vmatmul.mubr.bf16.gmra.mxu0 %v4847
        %v5744 = vpop.f32.mrf.mxu0
        %v5745 = vadd.f32 %v5584, %v5744
        %v5746 = vpop.f32.mrf.mxu0
        %v5747 = vpop.f32.mrf.mxu0
        %v5748 = vadd.f32 %v5587, %v5747
        %v5749 = vpop.f32.mrf.mxu0
        %5750 = vmatprep.mubr.bf16.mxu0 %v4721
        %5751 = vmatmul.mubr.bf16.gmra.mxu0 %v4848
        %v5752 = vpop.f32.mrf.mxu0
        %v5753 = vadd.f32 %v5592, %v5752
        %v5754 = vpop.f32.mrf.mxu0
        %v5755 = vpop.f32.mrf.mxu0
        %v5756 = vadd.f32 %v5595, %v5755
        %v5757 = vpop.f32.mrf.mxu0
        %5758 = vmatprep.mubr.bf16.mxu0 %v4722
        %5759 = vmatmul.mubr.bf16.gmra.mxu0 %v4849
        %v5760 = vpop.f32.mrf.mxu0
        %v5761 = vadd.f32 %v5600, %v5760
        %v5762 = vpop.f32.mrf.mxu0
        %v5763 = vpop.f32.mrf.mxu0
        %v5764 = vadd.f32 %v5603, %v5763
        %v5765 = vpop.f32.mrf.mxu0
        %5766 = vmatprep.mubr.bf16.mxu0 %v4723
        %5767 = vmatmul.mubr.bf16.gmra.mxu0 %v4850
        %v5768 = vpop.f32.mrf.mxu0
        %v5769 = vadd.f32 %v5608, %v5768
        %v5770 = vpop.f32.mrf.mxu0
        %v5771 = vpop.f32.mrf.mxu0
        %v5772 = vadd.f32 %v5611, %v5771
        %v5773 = vpop.f32.mrf.mxu0
        %5774 = vmatprep.mubr.bf16.mxu0 %v4724
        %5775 = vmatmul.mubr.bf16.gmra.mxu0 %v4851
        %v5776 = vpop.f32.mrf.mxu0
        %v5777 = vadd.f32 %v5616, %v5776
        %v5778 = vpop.f32.mrf.mxu0
        %v5779 = vpop.f32.mrf.mxu0
        %v5780 = vadd.f32 %v5619, %v5779
        %v5781 = vpop.f32.mrf.mxu0
        %5782 = vmatprep.mubr.bf16.mxu0 %v4871
        %5783 = vmatmul.mubr.bf16.gmra.mxu0 %v4852
        %v5784 = vpop.f32.mrf.mxu0
        %v5785 = vadd.f32 %v5624, %v5784
        %v5786 = vpop.f32.mrf.mxu0
        %v5787 = vpop.f32.mrf.mxu0
        %v5788 = vadd.f32 %v5627, %v5787
        %v5789 = vpop.f32.mrf.mxu0
        %5790 = vdwg.mxu0
        %5791 = vmatprep.subr.bf16.mxu0 0
        %5792 = vmatpush1.bf16.msra.mxu0 %v5364
        %5793 = vmatprep.subr.bf16.mxu0 0
        %5794 = vmatpush1.bf16.msra.mxu0 %v5363
        %5795 = vmatprep.subr.bf16.mxu0 0
        %5796 = vmatpush1.bf16.msra.mxu0 %v5362
        %5797 = vmatprep.subr.bf16.mxu0 0
        %5798 = vmatpush1.bf16.msra.mxu0 %v5361
        %5799 = vmatprep.subr.bf16.mxu0 0
        %5800 = vmatpush1.bf16.msra.mxu0 %v5360
        %5801 = vmatprep.subr.bf16.mxu0 0
        %5802 = vmatpush1.bf16.msra.mxu0 %v5359
        %5803 = vmatprep.subr.bf16.mxu0 0
        %5804 = vmatpush1.bf16.msra.mxu0 %v5358
        %5805 = vmatprep.subr.bf16.mxu0 0
        %5806 = vmatpush1.bf16.msra.mxu0 %v5357
        %5807 = vmatprep.subr.bf16.mxu0 0
        %5808 = vmatpush2.bf16.msra.mxu0 %v5372
        %5809 = vmatprep.subr.bf16.mxu0 0
        %5810 = vmatpush2.bf16.msra.mxu0 %v5371
        %5811 = vmatprep.subr.bf16.mxu0 0
        %5812 = vmatpush2.bf16.msra.mxu0 %v5370
        %5813 = vmatprep.subr.bf16.mxu0 0
        %5814 = vmatpush2.bf16.msra.mxu0 %v5369
        %5815 = vmatprep.subr.bf16.mxu0 0
        %5816 = vmatpush2.bf16.msra.mxu0 %v5368
        %5817 = vmatprep.subr.bf16.mxu0 0
        %5818 = vmatpush2.bf16.msra.mxu0 %v5367
        %5819 = vmatprep.subr.bf16.mxu0 0
        %5820 = vmatpush2.bf16.msra.mxu0 %v5366
        %5821 = vmatprep.subr.bf16.mxu0 0
        %5822 = vmatpush2.bf16.msra.mxu0 %v5365
        %5823 = vmatprep.mubr.bf16.mxu0 %v4838
        %5824 = vmatmul.mubr.bf16.gmra.mxu0 %v4774
        %v5825 = vpop.f32.mrf.mxu0
        %v5826 = vadd.f32 %v5665, %v5825
        %v5827 = vpop.f32.mrf.mxu0
        %v5828 = vpop.f32.mrf.mxu0
        %v5829 = vadd.f32 %v5668, %v5828
        %v5830 = vpop.f32.mrf.mxu0
        %5831 = vmatprep.mubr.bf16.mxu0 %v4839
        %5832 = vmatmul.mubr.bf16.gmra.mxu0 %v4775
        %v5833 = vpop.f32.mrf.mxu0
        %v5834 = vadd.f32 %v5673, %v5833
        %v5835 = vpop.f32.mrf.mxu0
        %v5836 = vpop.f32.mrf.mxu0
        %v5837 = vadd.f32 %v5676, %v5836
        %v5838 = vpop.f32.mrf.mxu0
        %5839 = vmatprep.mubr.bf16.mxu0 %v4840
        %5840 = vmatmul.mubr.bf16.gmra.mxu0 %v4776
        %v5841 = vpop.f32.mrf.mxu0
        %v5842 = vadd.f32 %v5681, %v5841
        %v5843 = vpop.f32.mrf.mxu0
        %v5844 = vpop.f32.mrf.mxu0
        %v5845 = vadd.f32 %v5684, %v5844
        %v5846 = vpop.f32.mrf.mxu0
        %5847 = vmatprep.mubr.bf16.mxu0 %v4841
        %5848 = vmatmul.mubr.bf16.gmra.mxu0 %v4777
        %v5849 = vpop.f32.mrf.mxu0
        %v5850 = vadd.f32 %v5689, %v5849
        %v5851 = vpop.f32.mrf.mxu0
        %v5852 = vpop.f32.mrf.mxu0
        %v5853 = vadd.f32 %v5692, %v5852
        %v5854 = vpop.f32.mrf.mxu0
        %5855 = vmatprep.mubr.bf16.mxu0 %v4842
        %5856 = vmatmul.mubr.bf16.gmra.mxu0 %v4778
        %v5857 = vpop.f32.mrf.mxu0
        %v5858 = vadd.f32 %v5697, %v5857
        %v5859 = vpop.f32.mrf.mxu0
        %v5860 = vpop.f32.mrf.mxu0
        %v5861 = vadd.f32 %v5700, %v5860
        %v5862 = vpop.f32.mrf.mxu0
        %5863 = vmatprep.mubr.bf16.mxu0 %v4843
        %5864 = vmatmul.mubr.bf16.gmra.mxu0 %v4779
        %v5865 = vpop.f32.mrf.mxu0
        %v5866 = vadd.f32 %v5705, %v5865
        %v5867 = vpop.f32.mrf.mxu0
        %v5868 = vpop.f32.mrf.mxu0
        %v5869 = vadd.f32 %v5708, %v5868
        %v5870 = vpop.f32.mrf.mxu0
        %5871 = vmatprep.mubr.bf16.mxu0 %v4844
        %5872 = vmatmul.mubr.bf16.gmra.mxu0 %v4780
        %v5873 = vpop.f32.mrf.mxu0
        %v5874 = vadd.f32 %v5713, %v5873
        %v5875 = vpop.f32.mrf.mxu0
        %v5876 = vpop.f32.mrf.mxu0
        %v5877 = vadd.f32 %v5716, %v5876
        %v5878 = vpop.f32.mrf.mxu0
        %5879 = vmatprep.mubr.bf16.mxu0 %v4845
        %5880 = vmatmul.mubr.bf16.gmra.mxu0 %v4781
        %v5881 = vpop.f32.mrf.mxu0
        %v5882 = vadd.f32 %v5721, %v5881
        %v5883 = vpop.f32.mrf.mxu0
        %v5884 = vpop.f32.mrf.mxu0
        %v5885 = vadd.f32 %v5724, %v5884
        %v5886 = vpop.f32.mrf.mxu0
        %5887 = vmatprep.mubr.bf16.mxu0 %v4846
        %5888 = vmatmul.mubr.bf16.gmra.mxu0 %v4782
        %v5889 = vpop.f32.mrf.mxu0
        %v5890 = vadd.f32 %v5729, %v5889
        %v5891 = vpop.f32.mrf.mxu0
        %v5892 = vpop.f32.mrf.mxu0
        %v5893 = vadd.f32 %v5732, %v5892
        %v5894 = vpop.f32.mrf.mxu0
        %5895 = vmatprep.mubr.bf16.mxu0 %v4847
        %5896 = vmatmul.mubr.bf16.gmra.mxu0 %v4783
        %v5897 = vpop.f32.mrf.mxu0
        %v5898 = vadd.f32 %v5737, %v5897
        %v5899 = vpop.f32.mrf.mxu0
        %v5900 = vpop.f32.mrf.mxu0
        %v5901 = vadd.f32 %v5740, %v5900
        %v5902 = vpop.f32.mrf.mxu0
        %5903 = vmatprep.mubr.bf16.mxu0 %v4848
        %5904 = vmatmul.mubr.bf16.gmra.mxu0 %v4784
        %v5905 = vpop.f32.mrf.mxu0
        %v5906 = vadd.f32 %v5745, %v5905
        %v5907 = vpop.f32.mrf.mxu0
        %v5908 = vpop.f32.mrf.mxu0
        %v5909 = vadd.f32 %v5748, %v5908
        %v5910 = vpop.f32.mrf.mxu0
        %5911 = vmatprep.mubr.bf16.mxu0 %v4849
        %5912 = vmatmul.mubr.bf16.gmra.mxu0 %v4785
        %v5913 = vpop.f32.mrf.mxu0
        %v5914 = vadd.f32 %v5753, %v5913
        %v5915 = vpop.f32.mrf.mxu0
        %v5916 = vpop.f32.mrf.mxu0
        %v5917 = vadd.f32 %v5756, %v5916
        %v5918 = vpop.f32.mrf.mxu0
        %5919 = vmatprep.mubr.bf16.mxu0 %v4850
        %5920 = vmatmul.mubr.bf16.gmra.mxu0 %v4786
        %v5921 = vpop.f32.mrf.mxu0
        %v5922 = vadd.f32 %v5761, %v5921
        %v5923 = vpop.f32.mrf.mxu0
        %v5924 = vpop.f32.mrf.mxu0
        %v5925 = vadd.f32 %v5764, %v5924
        %v5926 = vpop.f32.mrf.mxu0
        %5927 = vmatprep.mubr.bf16.mxu0 %v4851
        %5928 = vmatmul.mubr.bf16.gmra.mxu0 %v4787
        %v5929 = vpop.f32.mrf.mxu0
        %v5930 = vadd.f32 %v5769, %v5929
        %v5931 = vpop.f32.mrf.mxu0
        %v5932 = vpop.f32.mrf.mxu0
        %v5933 = vadd.f32 %v5772, %v5932
        %v5934 = vpop.f32.mrf.mxu0
        %5935 = vmatprep.mubr.bf16.mxu0 %v4852
        %5936 = vmatmul.mubr.bf16.gmra.mxu0 %v4788
        %v5937 = vpop.f32.mrf.mxu0
        %v5938 = vadd.f32 %v5777, %v5937
        %v5939 = vpop.f32.mrf.mxu0
        %v5940 = vpop.f32.mrf.mxu0
        %v5941 = vadd.f32 %v5780, %v5940
        %v5942 = vpop.f32.mrf.mxu0
        %5943 = vmatprep.mubr.bf16.mxu0 %v4879
        %5944 = vmatmul.mubr.bf16.gmra.mxu0 %v4875
        %v5945 = vpop.f32.mrf.mxu0
        %v5946 = vadd.f32 %v5785, %v5945
        %v5947 = vpop.f32.mrf.mxu0
        %v5948 = vpop.f32.mrf.mxu0
        %v5949 = vadd.f32 %v5788, %v5948
        %v5950 = vpop.f32.mrf.mxu0
        %5951 = vdwg.mxu0
        %5952 = vmatprep.subr.bf16.mxu0 0
        %5953 = vmatpush1.bf16.msra.mxu0 %v5380
        %5954 = vmatprep.subr.bf16.mxu0 0
        %5955 = vmatpush1.bf16.msra.mxu0 %v5379
        %5956 = vmatprep.subr.bf16.mxu0 0
        %5957 = vmatpush1.bf16.msra.mxu0 %v5378
        %5958 = vmatprep.subr.bf16.mxu0 0
        %5959 = vmatpush1.bf16.msra.mxu0 %v5377
        %5960 = vmatprep.subr.bf16.mxu0 0
        %5961 = vmatpush1.bf16.msra.mxu0 %v5376
        %5962 = vmatprep.subr.bf16.mxu0 0
        %5963 = vmatpush1.bf16.msra.mxu0 %v5375
        %5964 = vmatprep.subr.bf16.mxu0 0
        %5965 = vmatpush1.bf16.msra.mxu0 %v5374
        %5966 = vmatprep.subr.bf16.mxu0 0
        %5967 = vmatpush1.bf16.msra.mxu0 %v5373
        %5968 = vmatprep.subr.bf16.mxu0 0
        %5969 = vmatpush2.bf16.msra.mxu0 %v5388
        %5970 = vmatprep.subr.bf16.mxu0 0
        %5971 = vmatpush2.bf16.msra.mxu0 %v5387
        %5972 = vmatprep.subr.bf16.mxu0 0
        %5973 = vmatpush2.bf16.msra.mxu0 %v5386
        %5974 = vmatprep.subr.bf16.mxu0 0
        %5975 = vmatpush2.bf16.msra.mxu0 %v5385
        %5976 = vmatprep.subr.bf16.mxu0 0
        %5977 = vmatpush2.bf16.msra.mxu0 %v5384
        %5978 = vmatprep.subr.bf16.mxu0 0
        %5979 = vmatpush2.bf16.msra.mxu0 %v5383
        %5980 = vmatprep.subr.bf16.mxu0 0
        %5981 = vmatpush2.bf16.msra.mxu0 %v5382
        %5982 = vmatprep.subr.bf16.mxu0 0
        %5983 = vmatpush2.bf16.msra.mxu0 %v5381
        %5984 = vmatprep.mubr.bf16.mxu0 %v4775
        %5985 = vmatmul.mubr.bf16.gmra.mxu0 %v4711
        %v5986 = vpop.f32.mrf.mxu0
        %v5987 = vadd.f32 %v5826, %v5986
        %v5988 = vpop.f32.mrf.mxu0
        %v5989 = vpop.f32.mrf.mxu0
        %v5990 = vadd.f32 %v5829, %v5989
        %v5991 = vpop.f32.mrf.mxu0
        %5992 = vmatprep.mubr.bf16.mxu0 %v4776
        %5993 = vmatmul.mubr.bf16.gmra.mxu0 %v4712
        %v5994 = vpop.f32.mrf.mxu0
        %v5995 = vadd.f32 %v5834, %v5994
        %v5996 = vpop.f32.mrf.mxu0
        %v5997 = vpop.f32.mrf.mxu0
        %v5998 = vadd.f32 %v5837, %v5997
        %v5999 = vpop.f32.mrf.mxu0
        %6000 = vmatprep.mubr.bf16.mxu0 %v4777
        %6001 = vmatmul.mubr.bf16.gmra.mxu0 %v4713
        %v6002 = vpop.f32.mrf.mxu0
        %v6003 = vadd.f32 %v5842, %v6002
        %v6004 = vpop.f32.mrf.mxu0
        %v6005 = vpop.f32.mrf.mxu0
        %v6006 = vadd.f32 %v5845, %v6005
        %v6007 = vpop.f32.mrf.mxu0
        %6008 = vmatprep.mubr.bf16.mxu0 %v4778
        %6009 = vmatmul.mubr.bf16.gmra.mxu0 %v4714
        %v6010 = vpop.f32.mrf.mxu0
        %v6011 = vadd.f32 %v5850, %v6010
        %v6012 = vpop.f32.mrf.mxu0
        %v6013 = vpop.f32.mrf.mxu0
        %v6014 = vadd.f32 %v5853, %v6013
        %v6015 = vpop.f32.mrf.mxu0
        %6016 = vmatprep.mubr.bf16.mxu0 %v4779
        %6017 = vmatmul.mubr.bf16.gmra.mxu0 %v4715
        %v6018 = vpop.f32.mrf.mxu0
        %v6019 = vadd.f32 %v5858, %v6018
        %v6020 = vpop.f32.mrf.mxu0
        %v6021 = vpop.f32.mrf.mxu0
        %v6022 = vadd.f32 %v5861, %v6021
        %v6023 = vpop.f32.mrf.mxu0
        %6024 = vmatprep.mubr.bf16.mxu0 %v4780
        %6025 = vmatmul.mubr.bf16.gmra.mxu0 %v4716
        %v6026 = vpop.f32.mrf.mxu0
        %v6027 = vadd.f32 %v5866, %v6026
        %v6028 = vpop.f32.mrf.mxu0
        %v6029 = vpop.f32.mrf.mxu0
        %v6030 = vadd.f32 %v5869, %v6029
        %v6031 = vpop.f32.mrf.mxu0
        %6032 = vmatprep.mubr.bf16.mxu0 %v4781
        %6033 = vmatmul.mubr.bf16.gmra.mxu0 %v4717
        %v6034 = vpop.f32.mrf.mxu0
        %v6035 = vadd.f32 %v5874, %v6034
        %v6036 = vpop.f32.mrf.mxu0
        %v6037 = vpop.f32.mrf.mxu0
        %v6038 = vadd.f32 %v5877, %v6037
        %v6039 = vpop.f32.mrf.mxu0
        %6040 = vmatprep.mubr.bf16.mxu0 %v4782
        %6041 = vmatmul.mubr.bf16.gmra.mxu0 %v4718
        %v6042 = vpop.f32.mrf.mxu0
        %v6043 = vadd.f32 %v5882, %v6042
        %v6044 = vpop.f32.mrf.mxu0
        %v6045 = vpop.f32.mrf.mxu0
        %v6046 = vadd.f32 %v5885, %v6045
        %v6047 = vpop.f32.mrf.mxu0
        %6048 = vmatprep.mubr.bf16.mxu0 %v4783
        %6049 = vmatmul.mubr.bf16.gmra.mxu0 %v4719
        %v6050 = vpop.f32.mrf.mxu0
        %v6051 = vadd.f32 %v5890, %v6050
        %v6052 = vpop.f32.mrf.mxu0
        %v6053 = vpop.f32.mrf.mxu0
        %v6054 = vadd.f32 %v5893, %v6053
        %v6055 = vpop.f32.mrf.mxu0
        %6056 = vmatprep.mubr.bf16.mxu0 %v4784
        %6057 = vmatmul.mubr.bf16.gmra.mxu0 %v4720
        %v6058 = vpop.f32.mrf.mxu0
        %v6059 = vadd.f32 %v5898, %v6058
        %v6060 = vpop.f32.mrf.mxu0
        %v6061 = vpop.f32.mrf.mxu0
        %v6062 = vadd.f32 %v5901, %v6061
        %v6063 = vpop.f32.mrf.mxu0
        %6064 = vmatprep.mubr.bf16.mxu0 %v4785
        %6065 = vmatmul.mubr.bf16.gmra.mxu0 %v4721
        %v6066 = vpop.f32.mrf.mxu0
        %v6067 = vadd.f32 %v5906, %v6066
        %v6068 = vpop.f32.mrf.mxu0
        %v6069 = vpop.f32.mrf.mxu0
        %v6070 = vadd.f32 %v5909, %v6069
        %v6071 = vpop.f32.mrf.mxu0
        %6072 = vmatprep.mubr.bf16.mxu0 %v4786
        %6073 = vmatmul.mubr.bf16.gmra.mxu0 %v4722
        %v6074 = vpop.f32.mrf.mxu0
        %v6075 = vadd.f32 %v5914, %v6074
        %v6076 = vpop.f32.mrf.mxu0
        %v6077 = vpop.f32.mrf.mxu0
        %v6078 = vadd.f32 %v5917, %v6077
        %v6079 = vpop.f32.mrf.mxu0
        %6080 = vmatprep.mubr.bf16.mxu0 %v4787
        %6081 = vmatmul.mubr.bf16.gmra.mxu0 %v4723
        %v6082 = vpop.f32.mrf.mxu0
        %v6083 = vadd.f32 %v5922, %v6082
        %v6084 = vpop.f32.mrf.mxu0
        %v6085 = vpop.f32.mrf.mxu0
        %v6086 = vadd.f32 %v5925, %v6085
        %v6087 = vpop.f32.mrf.mxu0
        %6088 = vmatprep.mubr.bf16.mxu0 %v4788
        %6089 = vmatmul.mubr.bf16.gmra.mxu0 %v4724
        %v6090 = vpop.f32.mrf.mxu0
        %v6091 = vadd.f32 %v5930, %v6090
        %v6092 = vpop.f32.mrf.mxu0
        %v6093 = vpop.f32.mrf.mxu0
        %v6094 = vadd.f32 %v5933, %v6093
        %v6095 = vpop.f32.mrf.mxu0
        %6096 = vmatprep.mubr.bf16.mxu0 %v4875
        %6097 = vmatmul.mubr.bf16.gmra.mxu0 %v4871
        %v6098 = vpop.f32.mrf.mxu0
        %v6099 = vadd.f32 %v5938, %v6098
        %v6100 = vpop.f32.mrf.mxu0
        %v6101 = vpop.f32.mrf.mxu0
        %v6102 = vadd.f32 %v5941, %v6101
        %v6103 = vpop.f32.mrf.mxu0
        %6104 = vmatprep.mubr.bf16.mxu0 %v4887
        %6105 = vmatmul.mubr.bf16.gmra.mxu0 %v4883
        %v6106 = vpop.f32.mrf.mxu0
        %v6107 = vadd.f32 %v5946, %v6106
        %v6108 = vpop.f32.mrf.mxu0
        %v6109 = vpop.f32.mrf.mxu0
        %v6110 = vadd.f32 %v5949, %v6109
        %v6111 = vpop.f32.mrf.mxu0
        %6112 = vdwg.mxu0
        %6113 = vmatprep.subr.bf16.mxu0 0
        %6114 = vmatpush1.bf16.msra.mxu0 %v5396
        %6115 = vmatprep.subr.bf16.mxu0 0
        %6116 = vmatpush1.bf16.msra.mxu0 %v5395
        %6117 = vmatprep.subr.bf16.mxu0 0
        %6118 = vmatpush1.bf16.msra.mxu0 %v5394
        %6119 = vmatprep.subr.bf16.mxu0 0
        %6120 = vmatpush1.bf16.msra.mxu0 %v5393
        %6121 = vmatprep.subr.bf16.mxu0 0
        %6122 = vmatpush1.bf16.msra.mxu0 %v5392
        %6123 = vmatprep.subr.bf16.mxu0 0
        %6124 = vmatpush1.bf16.msra.mxu0 %v5391
        %6125 = vmatprep.subr.bf16.mxu0 0
        %6126 = vmatpush1.bf16.msra.mxu0 %v5390
        %6127 = vmatprep.subr.bf16.mxu0 0
        %6128 = vmatpush1.bf16.msra.mxu0 %v5389
        %6129 = vmatprep.subr.bf16.mxu0 0
        %6130 = vmatpush2.bf16.msra.mxu0 0
        %6131 = vmatprep.subr.bf16.mxu0 0
        %6132 = vmatpush2.bf16.msra.mxu0 0
        %6133 = vmatprep.subr.bf16.mxu0 0
        %6134 = vmatpush2.bf16.msra.mxu0 0
        %6135 = vmatprep.subr.bf16.mxu0 0
        %6136 = vmatpush2.bf16.msra.mxu0 0
        %6137 = vmatprep.subr.bf16.mxu0 0
        %6138 = vmatpush2.bf16.msra.mxu0 0
        %6139 = vmatprep.subr.bf16.mxu0 0
        %6140 = vmatpush2.bf16.msra.mxu0 0
        %6141 = vmatprep.subr.bf16.mxu0 0
        %6142 = vmatpush2.bf16.msra.mxu0 0
        %6143 = vmatprep.subr.bf16.mxu0 0
        %6144 = vmatpush2.bf16.msra.mxu0 0
        %6145 = vmatprep.mubr.bf16.mxu0 0
        %6146 = vmatmul.mubr.bf16.gmra.mxu0 %v4839
        %v6147 = vpop.f32.mrf.mxu0
        %v6148 = vadd.f32 %v5987, %v6147
        %v6149 = vpop.f32.mrf.mxu0
        %v6150 = vpop.f32.mrf.mxu0
        %v6151 = vadd.f32 %v5990, %v6150
        %v6152 = vpop.f32.mrf.mxu0
        %6153 = vmatprep.mubr.bf16.mxu0 0
        %6154 = vmatmul.mubr.bf16.gmra.mxu0 %v4840
        %v6155 = vpop.f32.mrf.mxu0
        %v6156 = vadd.f32 %v5995, %v6155
        %v6157 = vpop.f32.mrf.mxu0
        %v6158 = vpop.f32.mrf.mxu0
        %v6159 = vadd.f32 %v5998, %v6158
        %v6160 = vpop.f32.mrf.mxu0
        %6161 = vmatprep.mubr.bf16.mxu0 0
        %6162 = vmatmul.mubr.bf16.gmra.mxu0 %v4841
        %v6163 = vpop.f32.mrf.mxu0
        %v6164 = vadd.f32 %v6003, %v6163
        %v6165 = vpop.f32.mrf.mxu0
        %v6166 = vpop.f32.mrf.mxu0
        %v6167 = vadd.f32 %v6006, %v6166
        %v6168 = vpop.f32.mrf.mxu0
        %6169 = vmatprep.mubr.bf16.mxu0 0
        %6170 = vmatmul.mubr.bf16.gmra.mxu0 %v4842
        %v6171 = vpop.f32.mrf.mxu0
        %v6172 = vadd.f32 %v6011, %v6171
        %v6173 = vpop.f32.mrf.mxu0
        %v6174 = vpop.f32.mrf.mxu0
        %v6175 = vadd.f32 %v6014, %v6174
        %v6176 = vpop.f32.mrf.mxu0
        %6177 = vmatprep.mubr.bf16.mxu0 0
        %6178 = vmatmul.mubr.bf16.gmra.mxu0 %v4843
        %v6179 = vpop.f32.mrf.mxu0
        %v6180 = vadd.f32 %v6019, %v6179
        %v6181 = vpop.f32.mrf.mxu0
        %v6182 = vpop.f32.mrf.mxu0
        %v6183 = vadd.f32 %v6022, %v6182
        %v6184 = vpop.f32.mrf.mxu0
        %6185 = vmatprep.mubr.bf16.mxu0 0
        %6186 = vmatmul.mubr.bf16.gmra.mxu0 %v4844
        %v6187 = vpop.f32.mrf.mxu0
        %v6188 = vadd.f32 %v6027, %v6187
        %v6189 = vpop.f32.mrf.mxu0
        %v6190 = vpop.f32.mrf.mxu0
        %v6191 = vadd.f32 %v6030, %v6190
        %v6192 = vpop.f32.mrf.mxu0
        %6193 = vmatprep.mubr.bf16.mxu0 0
        %6194 = vmatmul.mubr.bf16.gmra.mxu0 %v4845
        %v6195 = vpop.f32.mrf.mxu0
        %v6196 = vadd.f32 %v6035, %v6195
        %v6197 = vpop.f32.mrf.mxu0
        %v6198 = vpop.f32.mrf.mxu0
        %v6199 = vadd.f32 %v6038, %v6198
        %v6200 = vpop.f32.mrf.mxu0
        %6201 = vmatprep.mubr.bf16.mxu0 0
        %6202 = vmatmul.mubr.bf16.gmra.mxu0 %v4846
        %v6203 = vpop.f32.mrf.mxu0
        %v6204 = vadd.f32 %v6043, %v6203
        %v6205 = vpop.f32.mrf.mxu0
        %v6206 = vpop.f32.mrf.mxu0
        %v6207 = vadd.f32 %v6046, %v6206
        %v6208 = vpop.f32.mrf.mxu0
        %6209 = vmatprep.mubr.bf16.mxu0 0
        %6210 = vmatmul.mubr.bf16.gmra.mxu0 %v4847
        %v6211 = vpop.f32.mrf.mxu0
        %v6212 = vadd.f32 %v6051, %v6211
        %v6213 = vpop.f32.mrf.mxu0
        %v6214 = vpop.f32.mrf.mxu0
        %v6215 = vadd.f32 %v6054, %v6214
        %v6216 = vpop.f32.mrf.mxu0
        %6217 = vmatprep.mubr.bf16.mxu0 0
        %6218 = vmatmul.mubr.bf16.gmra.mxu0 %v4848
        %v6219 = vpop.f32.mrf.mxu0
        %v6220 = vadd.f32 %v6059, %v6219
        %v6221 = vpop.f32.mrf.mxu0
        %v6222 = vpop.f32.mrf.mxu0
        %v6223 = vadd.f32 %v6062, %v6222
        %v6224 = vpop.f32.mrf.mxu0
        %6225 = vmatprep.mubr.bf16.mxu0 0
        %6226 = vmatmul.mubr.bf16.gmra.mxu0 %v4849
        %v6227 = vpop.f32.mrf.mxu0
        %v6228 = vadd.f32 %v6067, %v6227
        %v6229 = vpop.f32.mrf.mxu0
        %v6230 = vpop.f32.mrf.mxu0
        %v6231 = vadd.f32 %v6070, %v6230
        %v6232 = vpop.f32.mrf.mxu0
        %6233 = vmatprep.mubr.bf16.mxu0 0
        %6234 = vmatmul.mubr.bf16.gmra.mxu0 %v4850
        %v6235 = vpop.f32.mrf.mxu0
        %v6236 = vadd.f32 %v6075, %v6235
        %v6237 = vpop.f32.mrf.mxu0
        %v6238 = vpop.f32.mrf.mxu0
        %v6239 = vadd.f32 %v6078, %v6238
        %v6240 = vpop.f32.mrf.mxu0
        %6241 = vmatprep.mubr.bf16.mxu0 0
        %6242 = vmatmul.mubr.bf16.gmra.mxu0 %v4851
        %v6243 = vpop.f32.mrf.mxu0
        %v6244 = vadd.f32 %v6083, %v6243
        %v6245 = vpop.f32.mrf.mxu0
        %v6246 = vpop.f32.mrf.mxu0
        %v6247 = vadd.f32 %v6086, %v6246
        %v6248 = vpop.f32.mrf.mxu0
        %6249 = vmatprep.mubr.bf16.mxu0 0
        %6250 = vmatmul.mubr.bf16.gmra.mxu0 %v4852
        %v6251 = vpop.f32.mrf.mxu0
        %v6252 = vadd.f32 %v6091, %v6251
        %v6253 = vpop.f32.mrf.mxu0
        %v6254 = vpop.f32.mrf.mxu0
        %v6255 = vadd.f32 %v6094, %v6254
        %v6256 = vpop.f32.mrf.mxu0
        %6257 = vmatprep.mubr.bf16.mxu0 0
        %6258 = vmatmul.mubr.bf16.gmra.mxu0 %v4879
        %v6259 = vpop.f32.mrf.mxu0
        %v6260 = vadd.f32 %v6099, %v6259
        %v6261 = vpop.f32.mrf.mxu0
        %v6262 = vpop.f32.mrf.mxu0
        %v6263 = vadd.f32 %v6102, %v6262
        %v6264 = vpop.f32.mrf.mxu0
        %6265 = vmatprep.mubr.bf16.mxu0 0
        %6266 = vmatmul.mubr.bf16.gmra.mxu0 %v4891
        %v6267 = vpop.f32.mrf.mxu0
        %v6268 = vadd.f32 %v6107, %v6267
        %v6269 = vpop.f32.mrf.mxu0
        %v6270 = vpop.f32.mrf.mxu0
        %v6271 = vadd.f32 %v6110, %v6270
        %v6272 = vpop.f32.mrf.mxu0
        %6273 = vdwg.mxu0
        %v6274 = vld [vmem:[%s5] sm:$0x1]
        %v6276 = vlaneseq
        %v6277 = vshrl.u32 %v6276, 7
        %v6278 = vsub.s32 0, %v6277
        %v6279 = vrot.slane %v6274, %v6278
        %v6281 = vmul.f32 %v6148, %v6279
        %v6282 = vmul.f32 %v6151, %v6279
        %v6283 = vmul.f32 %v6156, %v6279
        %v6284 = vmul.f32 %v6159, %v6279
        %v6285 = vmul.f32 %v6164, %v6279
        %v6286 = vmul.f32 %v6167, %v6279
        %v6287 = vmul.f32 %v6172, %v6279
        %v6288 = vmul.f32 %v6175, %v6279
        %v6289 = vmul.f32 %v6180, %v6279
        %v6290 = vmul.f32 %v6183, %v6279
        %v6291 = vmul.f32 %v6188, %v6279
        %v6292 = vmul.f32 %v6191, %v6279
        %v6293 = vmul.f32 %v6196, %v6279
        %v6294 = vmul.f32 %v6199, %v6279
        %v6295 = vmul.f32 %v6204, %v6279
        %v6296 = vmul.f32 %v6207, %v6279
        %v6297 = vmul.f32 %v6212, %v6279
        %v6298 = vmul.f32 %v6215, %v6279
        %v6299 = vmul.f32 %v6220, %v6279
        %v6300 = vmul.f32 %v6223, %v6279
        %v6301 = vmul.f32 %v6228, %v6279
        %v6302 = vmul.f32 %v6231, %v6279
        %v6303 = vmul.f32 %v6236, %v6279
        %v6304 = vmul.f32 %v6239, %v6279
        %v6305 = vmul.f32 %v6244, %v6279
        %v6306 = vmul.f32 %v6247, %v6279
        %v6307 = vmul.f32 %v6252, %v6279
        %v6308 = vmul.f32 %v6255, %v6279
        %v6309 = vmul.f32 %v6260, %v6279
        %v6310 = vmul.f32 %v6263, %v6279
        %v6311 = vmul.f32 %v6268, %v6279
        %v6312 = vmul.f32 %v6271, %v6279
        %v6313 = vld [vmem:[%s6] sm:$0x1]
        %v6315 = vlaneseq
        %v6316 = vshrl.u32 %v6315, 7
        %v6317 = vsub.s32 0, %v6316
        %v6318 = vrot.slane %v6313, %v6317
        %v6320 = vadd.f32 %v6281, %v6318
        %v6321 = vadd.f32 %v6282, %v6318
        %v6322 = vadd.f32 %v6283, %v6318
        %v6323 = vadd.f32 %v6284, %v6318
        %v6324 = vadd.f32 %v6285, %v6318
        %v6325 = vadd.f32 %v6286, %v6318
        %v6326 = vadd.f32 %v6287, %v6318
        %v6327 = vadd.f32 %v6288, %v6318
        %v6328 = vadd.f32 %v6289, %v6318
        %v6329 = vadd.f32 %v6290, %v6318
        %v6330 = vadd.f32 %v6291, %v6318
        %v6331 = vadd.f32 %v6292, %v6318
        %v6332 = vadd.f32 %v6293, %v6318
        %v6333 = vadd.f32 %v6294, %v6318
        %v6334 = vadd.f32 %v6295, %v6318
        %v6335 = vadd.f32 %v6296, %v6318
        %v6336 = vadd.f32 %v6297, %v6318
        %v6337 = vadd.f32 %v6298, %v6318
        %v6338 = vadd.f32 %v6299, %v6318
        %v6339 = vadd.f32 %v6300, %v6318
        %v6340 = vadd.f32 %v6301, %v6318
        %v6341 = vadd.f32 %v6302, %v6318
        %v6342 = vadd.f32 %v6303, %v6318
        %v6343 = vadd.f32 %v6304, %v6318
        %v6344 = vadd.f32 %v6305, %v6318
        %v6345 = vadd.f32 %v6306, %v6318
        %v6346 = vadd.f32 %v6307, %v6318
        %v6347 = vadd.f32 %v6308, %v6318
        %v6348 = vadd.f32 %v6309, %v6318
        %v6349 = vadd.f32 %v6310, %v6318
        %v6350 = vadd.f32 %v6311, %v6318
        %v6351 = vadd.f32 %v6312, %v6318
        %v6352 = vld [vmem:[%s373] sm:$0xf]
        %v6353 = vld [vmem:[%s373 + $0x4] sm:$0xf]
        %v6354 = vld [vmem:[%s373 + $0x8] sm:$0xf]
        %v6355 = vld [vmem:[%s373 + $0xc] sm:$0xf]
        %v6356 = vld [vmem:[%s373 + $0x10] sm:$0xf]
        %v6357 = vld [vmem:[%s373 + $0x14] sm:$0xf]
        %v6358 = vld [vmem:[%s373 + $0x18] sm:$0xf]
        %v6359 = vld [vmem:[%s373 + $0x1c] sm:$0xf]
        %v6360 = vld [vmem:[%s373 + $0x20] sm:$0xf]
        %v6361 = vld [vmem:[%s373 + $0x24] sm:$0xf]
        %v6362 = vld [vmem:[%s373 + $0x28] sm:$0xf]
        %v6363 = vld [vmem:[%s373 + $0x2c] sm:$0xf]
        %v6364 = vld [vmem:[%s373 + $0x30] sm:$0xf]
        %v6365 = vld [vmem:[%s373 + $0x34] sm:$0xf]
        %v6366 = vld [vmem:[%s373 + $0x38] sm:$0xf]
        %v6367 = vld [vmem:[%s373 + $0x3c] sm:$0xf]
        %v6368 = vld [vmem:[%s373 + $0x40] sm:$0xf]
        %v6369 = vld [vmem:[%s373 + $0x44] sm:$0xf]
        %v6370 = vld [vmem:[%s373 + $0x48] sm:$0xf]
        %v6371 = vld [vmem:[%s373 + $0x4c] sm:$0xf]
        %v6372 = vld [vmem:[%s373 + $0x50] sm:$0xf]
        %v6373 = vld [vmem:[%s373 + $0x54] sm:$0xf]
        %v6374 = vld [vmem:[%s373 + $0x58] sm:$0xf]
        %v6375 = vld [vmem:[%s373 + $0x5c] sm:$0xf]
        %v6376 = vld [vmem:[%s373 + $0x60] sm:$0xf]
        %v6377 = vld [vmem:[%s373 + $0x64] sm:$0xf]
        %v6378 = vld [vmem:[%s373 + $0x68] sm:$0xf]
        %v6379 = vld [vmem:[%s373 + $0x6c] sm:$0xf]
        %v6380 = vld [vmem:[%s373 + $0x70] sm:$0xf]
        %v6381 = vld [vmem:[%s373 + $0x74] sm:$0xf]
        %v6382 = vld [vmem:[%s373 + $0x78] sm:$0xf]
        %v6383 = vld [vmem:[%s373 + $0x7c] sm:$0xf]
        %v6384 = vld [vmem:[#allocation10] sm:$0xf]
        %v6385 = vld [vmem:[#allocation10 + $0x4] sm:$0xf]
        %v6386 = vld [vmem:[#allocation10 + $0x8] sm:$0xf]
        %v6387 = vld [vmem:[#allocation10 + $0xc] sm:$0xf]
        %v6388 = vld [vmem:[#allocation10 + $0x10] sm:$0xf]
        %v6389 = vld [vmem:[#allocation10 + $0x14] sm:$0xf]
        %v6390 = vld [vmem:[#allocation10 + $0x18] sm:$0xf]
        %v6391 = vld [vmem:[#allocation10 + $0x1c] sm:$0xf]
        %v6392 = vld [vmem:[#allocation10 + $0x20] sm:$0xf]
        %v6393 = vld [vmem:[#allocation10 + $0x24] sm:$0xf]
        %v6394 = vld [vmem:[#allocation10 + $0x28] sm:$0xf]
        %v6395 = vld [vmem:[#allocation10 + $0x2c] sm:$0xf]
        %v6396 = vld [vmem:[#allocation10 + $0x30] sm:$0xf]
        %v6397 = vld [vmem:[#allocation10 + $0x34] sm:$0xf]
        %v6398 = vld [vmem:[#allocation10 + $0x38] sm:$0xf]
        %v6399 = vld [vmem:[#allocation10 + $0x3c] sm:$0xf]
        %v6432 = vunpack.c.l.b16 %v6352
        %v6433 = vunpack.c.l.b16 %v6353
        %v6434 = vunpack.c.l.b16 %v6354
        %v6435 = vunpack.c.l.b16 %v6355
        %v6436 = vunpack.c.l.b16 %v6356
        %v6437 = vunpack.c.l.b16 %v6357
        %v6438 = vunpack.c.l.b16 %v6358
        %v6439 = vunpack.c.l.b16 %v6359
        %v6440 = vunpack.c.l.b16 %v6360
        %v6441 = vunpack.c.l.b16 %v6361
        %v6442 = vunpack.c.l.b16 %v6362
        %v6443 = vunpack.c.l.b16 %v6363
        %v6444 = vunpack.c.l.b16 %v6364
        %v6445 = vunpack.c.l.b16 %v6365
        %v6446 = vunpack.c.l.b16 %v6366
        %v6447 = vunpack.c.l.b16 %v6367
        %v6448 = vunpack.c.l.b16 %v6368
        %v6449 = vunpack.c.l.b16 %v6369
        %v6450 = vunpack.c.l.b16 %v6370
        %v6451 = vunpack.c.l.b16 %v6371
        %v6452 = vunpack.c.l.b16 %v6372
        %v6453 = vunpack.c.l.b16 %v6373
        %v6454 = vunpack.c.l.b16 %v6374
        %v6455 = vunpack.c.l.b16 %v6375
        %v6456 = vunpack.c.l.b16 %v6376
        %v6457 = vunpack.c.l.b16 %v6377
        %v6458 = vunpack.c.l.b16 %v6378
        %v6459 = vunpack.c.l.b16 %v6379
        %v6460 = vunpack.c.l.b16 %v6380
        %v6461 = vunpack.c.l.b16 %v6381
        %v6462 = vunpack.c.l.b16 %v6382
        %v6463 = vunpack.c.l.b16 %v6383
        %v6464 = vpack.c.b16 %v6433, %v6432
        %v6465 = vpack.c.b16 %v6435, %v6434
        %v6466 = vpack.c.b16 %v6437, %v6436
        %v6467 = vpack.c.b16 %v6439, %v6438
        %v6468 = vpack.c.b16 %v6441, %v6440
        %v6469 = vpack.c.b16 %v6443, %v6442
        %v6470 = vpack.c.b16 %v6445, %v6444
        %v6471 = vpack.c.b16 %v6447, %v6446
        %v6472 = vpack.c.b16 %v6449, %v6448
        %v6473 = vpack.c.b16 %v6451, %v6450
        %v6474 = vpack.c.b16 %v6453, %v6452
        %v6475 = vpack.c.b16 %v6455, %v6454
        %v6476 = vpack.c.b16 %v6457, %v6456
        %v6477 = vpack.c.b16 %v6459, %v6458
        %v6478 = vpack.c.b16 %v6461, %v6460
        %v6479 = vpack.c.b16 %v6463, %v6462
        %v6512 = vunpack.c.l.b16 %v6384
        %v6513 = vunpack.c.l.b16 %v6385
        %v6514 = vunpack.c.l.b16 %v6386
        %v6515 = vunpack.c.l.b16 %v6387
        %v6516 = vunpack.c.l.b16 %v6388
        %v6517 = vunpack.c.l.b16 %v6389
        %v6518 = vunpack.c.l.b16 %v6390
        %v6519 = vunpack.c.l.b16 %v6391
        %v6520 = vunpack.c.l.b16 %v6392
        %v6521 = vunpack.c.l.b16 %v6393
        %v6522 = vunpack.c.l.b16 %v6394
        %v6523 = vunpack.c.l.b16 %v6395
        %v6524 = vunpack.c.l.b16 %v6396
        %v6525 = vunpack.c.l.b16 %v6397
        %v6526 = vunpack.c.l.b16 %v6398
        %v6527 = vunpack.c.l.b16 %v6399
        %v6528 = vpack.c.b16 %v6513, %v6512
        %v6529 = vpack.c.b16 %v6515, %v6514
        %v6530 = vpack.c.b16 %v6517, %v6516
        %v6531 = vpack.c.b16 %v6519, %v6518
        %v6532 = vpack.c.b16 %v6521, %v6520
        %v6533 = vpack.c.b16 %v6523, %v6522
        %v6534 = vpack.c.b16 %v6525, %v6524
        %v6535 = vpack.c.b16 %v6527, %v6526
        %6544 = vmatprep.subr.bf16.mxu0 0
        %6545 = vmatpush1.bf16.msra.mxu0 %v6535
        %6546 = vmatprep.subr.bf16.mxu0 0
        %6547 = vmatpush1.bf16.msra.mxu0 %v6534
        %6548 = vmatprep.subr.bf16.mxu0 0
        %6549 = vmatpush1.bf16.msra.mxu0 %v6533
        %6550 = vmatprep.subr.bf16.mxu0 0
        %6551 = vmatpush1.bf16.msra.mxu0 %v6532
        %6552 = vmatprep.subr.bf16.mxu0 0
        %6553 = vmatpush1.bf16.msra.mxu0 %v6531
        %6554 = vmatprep.subr.bf16.mxu0 0
        %6555 = vmatpush1.bf16.msra.mxu0 %v6530
        %6556 = vmatprep.subr.bf16.mxu0 0
        %6557 = vmatpush1.bf16.msra.mxu0 %v6529
        %6558 = vmatprep.subr.bf16.mxu0 0
        %6559 = vmatpush1.bf16.msra.mxu0 %v6528
        %6560 = vmatprep.subr.bf16.mxu0 0
        %6561 = vmatpush2.bf16.msra.mxu0 0
        %6562 = vmatprep.subr.bf16.mxu0 0
        %6563 = vmatpush2.bf16.msra.mxu0 0
        %6564 = vmatprep.subr.bf16.mxu0 0
        %6565 = vmatpush2.bf16.msra.mxu0 0
        %6566 = vmatprep.subr.bf16.mxu0 0
        %6567 = vmatpush2.bf16.msra.mxu0 0
        %6568 = vmatprep.subr.bf16.mxu0 0
        %6569 = vmatpush2.bf16.msra.mxu0 0
        %6570 = vmatprep.subr.bf16.mxu0 0
        %6571 = vmatpush2.bf16.msra.mxu0 0
        %6572 = vmatprep.subr.bf16.mxu0 0
        %6573 = vmatpush2.bf16.msra.mxu0 0
        %6574 = vmatprep.subr.bf16.mxu0 0
        %6575 = vmatpush2.bf16.msra.mxu0 0
        %6576 = vmatprep.mubr.bf16.mxu0 0
        %6577 = vmatmul.mubr.bf16.gmra.mxu0 %v6464
        %v6578 = vpop.f32.mrf.mxu0
        %v6579 = vadd.f32 0.0, %v6578
        %v6580 = vpop.f32.mrf.mxu0
        %v6581 = vpop.f32.mrf.mxu0
        %v6582 = vadd.f32 0.0, %v6581
        %v6583 = vpop.f32.mrf.mxu0
        %6584 = vmatprep.mubr.bf16.mxu0 0
        %6585 = vmatmul.mubr.bf16.gmra.mxu0 %v6465
        %v6586 = vpop.f32.mrf.mxu0
        %v6587 = vadd.f32 0.0, %v6586
        %v6588 = vpop.f32.mrf.mxu0
        %v6589 = vpop.f32.mrf.mxu0
        %v6590 = vadd.f32 0.0, %v6589
        %v6591 = vpop.f32.mrf.mxu0
        %6592 = vmatprep.mubr.bf16.mxu0 0
        %6593 = vmatmul.mubr.bf16.gmra.mxu0 %v6466
        %v6594 = vpop.f32.mrf.mxu0
        %v6595 = vadd.f32 0.0, %v6594
        %v6596 = vpop.f32.mrf.mxu0
        %v6597 = vpop.f32.mrf.mxu0
        %v6598 = vadd.f32 0.0, %v6597
        %v6599 = vpop.f32.mrf.mxu0
        %6600 = vmatprep.mubr.bf16.mxu0 0
        %6601 = vmatmul.mubr.bf16.gmra.mxu0 %v6467
        %v6602 = vpop.f32.mrf.mxu0
        %v6603 = vadd.f32 0.0, %v6602
        %v6604 = vpop.f32.mrf.mxu0
        %v6605 = vpop.f32.mrf.mxu0
        %v6606 = vadd.f32 0.0, %v6605
        %v6607 = vpop.f32.mrf.mxu0
        %6608 = vmatprep.mubr.bf16.mxu0 0
        %6609 = vmatmul.mubr.bf16.gmra.mxu0 %v6468
        %v6610 = vpop.f32.mrf.mxu0
        %v6611 = vadd.f32 0.0, %v6610
        %v6612 = vpop.f32.mrf.mxu0
        %v6613 = vpop.f32.mrf.mxu0
        %v6614 = vadd.f32 0.0, %v6613
        %v6615 = vpop.f32.mrf.mxu0
        %6616 = vmatprep.mubr.bf16.mxu0 0
        %6617 = vmatmul.mubr.bf16.gmra.mxu0 %v6469
        %v6618 = vpop.f32.mrf.mxu0
        %v6619 = vadd.f32 0.0, %v6618
        %v6620 = vpop.f32.mrf.mxu0
        %v6621 = vpop.f32.mrf.mxu0
        %v6622 = vadd.f32 0.0, %v6621
        %v6623 = vpop.f32.mrf.mxu0
        %6624 = vmatprep.mubr.bf16.mxu0 0
        %6625 = vmatmul.mubr.bf16.gmra.mxu0 %v6470
        %v6626 = vpop.f32.mrf.mxu0
        %v6627 = vadd.f32 0.0, %v6626
        %v6628 = vpop.f32.mrf.mxu0
        %v6629 = vpop.f32.mrf.mxu0
        %v6630 = vadd.f32 0.0, %v6629
        %v6631 = vpop.f32.mrf.mxu0
        %6632 = vmatprep.mubr.bf16.mxu0 0
        %6633 = vmatmul.mubr.bf16.gmra.mxu0 %v6471
        %v6634 = vpop.f32.mrf.mxu0
        %v6635 = vadd.f32 0.0, %v6634
        %v6636 = vpop.f32.mrf.mxu0
        %v6637 = vpop.f32.mrf.mxu0
        %v6638 = vadd.f32 0.0, %v6637
        %v6639 = vpop.f32.mrf.mxu0
        %6640 = vmatprep.mubr.bf16.mxu0 0
        %6641 = vmatmul.mubr.bf16.gmra.mxu0 %v6472
        %v6642 = vpop.f32.mrf.mxu0
        %v6643 = vadd.f32 0.0, %v6642
        %v6644 = vpop.f32.mrf.mxu0
        %v6645 = vpop.f32.mrf.mxu0
        %v6646 = vadd.f32 0.0, %v6645
        %v6647 = vpop.f32.mrf.mxu0
        %6648 = vmatprep.mubr.bf16.mxu0 0
        %6649 = vmatmul.mubr.bf16.gmra.mxu0 %v6473
        %v6650 = vpop.f32.mrf.mxu0
        %v6651 = vadd.f32 0.0, %v6650
        %v6652 = vpop.f32.mrf.mxu0
        %v6653 = vpop.f32.mrf.mxu0
        %v6654 = vadd.f32 0.0, %v6653
        %v6655 = vpop.f32.mrf.mxu0
        %6656 = vmatprep.mubr.bf16.mxu0 0
        %6657 = vmatmul.mubr.bf16.gmra.mxu0 %v6474
        %v6658 = vpop.f32.mrf.mxu0
        %v6659 = vadd.f32 0.0, %v6658
        %v6660 = vpop.f32.mrf.mxu0
        %v6661 = vpop.f32.mrf.mxu0
        %v6662 = vadd.f32 0.0, %v6661
        %v6663 = vpop.f32.mrf.mxu0
        %6664 = vmatprep.mubr.bf16.mxu0 0
        %6665 = vmatmul.mubr.bf16.gmra.mxu0 %v6475
        %v6666 = vpop.f32.mrf.mxu0
        %v6667 = vadd.f32 0.0, %v6666
        %v6668 = vpop.f32.mrf.mxu0
        %v6669 = vpop.f32.mrf.mxu0
        %v6670 = vadd.f32 0.0, %v6669
        %v6671 = vpop.f32.mrf.mxu0
        %6672 = vmatprep.mubr.bf16.mxu0 0
        %6673 = vmatmul.mubr.bf16.gmra.mxu0 %v6476
        %v6674 = vpop.f32.mrf.mxu0
        %v6675 = vadd.f32 0.0, %v6674
        %v6676 = vpop.f32.mrf.mxu0
        %v6677 = vpop.f32.mrf.mxu0
        %v6678 = vadd.f32 0.0, %v6677
        %v6679 = vpop.f32.mrf.mxu0
        %6680 = vmatprep.mubr.bf16.mxu0 0
        %6681 = vmatmul.mubr.bf16.gmra.mxu0 %v6477
        %v6682 = vpop.f32.mrf.mxu0
        %v6683 = vadd.f32 0.0, %v6682
        %v6684 = vpop.f32.mrf.mxu0
        %v6685 = vpop.f32.mrf.mxu0
        %v6686 = vadd.f32 0.0, %v6685
        %v6687 = vpop.f32.mrf.mxu0
        %6688 = vmatprep.mubr.bf16.mxu0 0
        %6689 = vmatmul.mubr.bf16.gmra.mxu0 %v6478
        %v6690 = vpop.f32.mrf.mxu0
        %v6691 = vadd.f32 0.0, %v6690
        %v6692 = vpop.f32.mrf.mxu0
        %v6693 = vpop.f32.mrf.mxu0
        %v6694 = vadd.f32 0.0, %v6693
        %v6695 = vpop.f32.mrf.mxu0
        %6696 = vmatprep.mubr.bf16.mxu0 0
        %6697 = vmatmul.mubr.bf16.gmra.mxu0 %v6479
        %v6698 = vpop.f32.mrf.mxu0
        %v6699 = vadd.f32 0.0, %v6698
        %v6700 = vpop.f32.mrf.mxu0
        %v6701 = vpop.f32.mrf.mxu0
        %v6702 = vadd.f32 0.0, %v6701
        %v6703 = vpop.f32.mrf.mxu0
        %6704 = vdwg.mxu0
        %v6705 = vld [vmem:[%s8] sm:$0x1]
        %v6707 = vlaneseq
        %v6708 = vshrl.u32 %v6707, 7
        %v6709 = vsub.s32 0, %v6708
        %v6710 = vrot.slane %v6705, %v6709
        %v6712 = vmul.f32 %v6579, %v6710
        %v6713 = vmul.f32 %v6582, %v6710
        %v6714 = vmul.f32 %v6587, %v6710
        %v6715 = vmul.f32 %v6590, %v6710
        %v6716 = vmul.f32 %v6595, %v6710
        %v6717 = vmul.f32 %v6598, %v6710
        %v6718 = vmul.f32 %v6603, %v6710
        %v6719 = vmul.f32 %v6606, %v6710
        %v6720 = vmul.f32 %v6611, %v6710
        %v6721 = vmul.f32 %v6614, %v6710
        %v6722 = vmul.f32 %v6619, %v6710
        %v6723 = vmul.f32 %v6622, %v6710
        %v6724 = vmul.f32 %v6627, %v6710
        %v6725 = vmul.f32 %v6630, %v6710
        %v6726 = vmul.f32 %v6635, %v6710
        %v6727 = vmul.f32 %v6638, %v6710
        %v6728 = vmul.f32 %v6643, %v6710
        %v6729 = vmul.f32 %v6646, %v6710
        %v6730 = vmul.f32 %v6651, %v6710
        %v6731 = vmul.f32 %v6654, %v6710
        %v6732 = vmul.f32 %v6659, %v6710
        %v6733 = vmul.f32 %v6662, %v6710
        %v6734 = vmul.f32 %v6667, %v6710
        %v6735 = vmul.f32 %v6670, %v6710
        %v6736 = vmul.f32 %v6675, %v6710
        %v6737 = vmul.f32 %v6678, %v6710
        %v6738 = vmul.f32 %v6683, %v6710
        %v6739 = vmul.f32 %v6686, %v6710
        %v6740 = vmul.f32 %v6691, %v6710
        %v6741 = vmul.f32 %v6694, %v6710
        %v6742 = vmul.f32 %v6699, %v6710
        %v6743 = vmul.f32 %v6702, %v6710
        %v6744 = vld [vmem:[%s9] sm:$0x1]
        %v6746 = vlaneseq
        %v6747 = vshrl.u32 %v6746, 7
        %v6748 = vsub.s32 0, %v6747
        %v6749 = vrot.slane %v6744, %v6748
        %v6751 = vadd.f32 %v6712, %v6749
        %v6752 = vadd.f32 %v6713, %v6749
        %v6753 = vadd.f32 %v6714, %v6749
        %v6754 = vadd.f32 %v6715, %v6749
        %v6755 = vadd.f32 %v6716, %v6749
        %v6756 = vadd.f32 %v6717, %v6749
        %v6757 = vadd.f32 %v6718, %v6749
        %v6758 = vadd.f32 %v6719, %v6749
        %v6759 = vadd.f32 %v6720, %v6749
        %v6760 = vadd.f32 %v6721, %v6749
        %v6761 = vadd.f32 %v6722, %v6749
        %v6762 = vadd.f32 %v6723, %v6749
        %v6763 = vadd.f32 %v6724, %v6749
        %v6764 = vadd.f32 %v6725, %v6749
        %v6765 = vadd.f32 %v6726, %v6749
        %v6766 = vadd.f32 %v6727, %v6749
        %v6767 = vadd.f32 %v6728, %v6749
        %v6768 = vadd.f32 %v6729, %v6749
        %v6769 = vadd.f32 %v6730, %v6749
        %v6770 = vadd.f32 %v6731, %v6749
        %v6771 = vadd.f32 %v6732, %v6749
        %v6772 = vadd.f32 %v6733, %v6749
        %v6773 = vadd.f32 %v6734, %v6749
        %v6774 = vadd.f32 %v6735, %v6749
        %v6775 = vadd.f32 %v6736, %v6749
        %v6776 = vadd.f32 %v6737, %v6749
        %v6777 = vadd.f32 %v6738, %v6749
        %v6778 = vadd.f32 %v6739, %v6749
        %v6779 = vadd.f32 %v6740, %v6749
        %v6780 = vadd.f32 %v6741, %v6749
        %v6781 = vadd.f32 %v6742, %v6749
        %v6782 = vadd.f32 %v6743, %v6749
        %v6783 = vadd.f32 %v6320, %v6751
        %v6784 = vadd.f32 %v6321, %v6752
        %v6785 = vadd.f32 %v6322, %v6753
        %v6786 = vadd.f32 %v6323, %v6754
        %v6787 = vadd.f32 %v6324, %v6755
        %v6788 = vadd.f32 %v6325, %v6756
        %v6789 = vadd.f32 %v6326, %v6757
        %v6790 = vadd.f32 %v6327, %v6758
        %v6791 = vadd.f32 %v6328, %v6759
        %v6792 = vadd.f32 %v6329, %v6760
        %v6793 = vadd.f32 %v6330, %v6761
        %v6794 = vadd.f32 %v6331, %v6762
        %v6795 = vadd.f32 %v6332, %v6763
        %v6796 = vadd.f32 %v6333, %v6764
        %v6797 = vadd.f32 %v6334, %v6765
        %v6798 = vadd.f32 %v6335, %v6766
        %v6799 = vadd.f32 %v6336, %v6767
        %v6800 = vadd.f32 %v6337, %v6768
        %v6801 = vadd.f32 %v6338, %v6769
        %v6802 = vadd.f32 %v6339, %v6770
        %v6803 = vadd.f32 %v6340, %v6771
        %v6804 = vadd.f32 %v6341, %v6772
        %v6805 = vadd.f32 %v6342, %v6773
        %v6806 = vadd.f32 %v6343, %v6774
        %v6807 = vadd.f32 %v6344, %v6775
        %v6808 = vadd.f32 %v6345, %v6776
        %v6809 = vadd.f32 %v6346, %v6777
        %v6810 = vadd.f32 %v6347, %v6778
        %v6811 = vadd.f32 %v6348, %v6779
        %v6812 = vadd.f32 %v6349, %v6780
        %v6813 = vadd.f32 %v6350, %v6781
        %v6814 = vadd.f32 %v6351, %v6782
        %v6815 = vmax.f32 %v6783, 0.0
        %v6816 = vmax.f32 %v6784, 0.0
        %v6817 = vmax.f32 %v6785, 0.0
        %v6818 = vmax.f32 %v6786, 0.0
        %v6819 = vmax.f32 %v6787, 0.0
        %v6820 = vmax.f32 %v6788, 0.0
        %v6821 = vmax.f32 %v6789, 0.0
        %v6822 = vmax.f32 %v6790, 0.0
        %v6823 = vmax.f32 %v6791, 0.0
        %v6824 = vmax.f32 %v6792, 0.0
        %v6825 = vmax.f32 %v6793, 0.0
        %v6826 = vmax.f32 %v6794, 0.0
        %v6827 = vmax.f32 %v6795, 0.0
        %v6828 = vmax.f32 %v6796, 0.0
        %v6829 = vmax.f32 %v6797, 0.0
        %v6830 = vmax.f32 %v6798, 0.0
        %v6831 = vmax.f32 %v6799, 0.0
        %v6832 = vmax.f32 %v6800, 0.0
        %v6833 = vmax.f32 %v6801, 0.0
        %v6834 = vmax.f32 %v6802, 0.0
        %v6835 = vmax.f32 %v6803, 0.0
        %v6836 = vmax.f32 %v6804, 0.0
        %v6837 = vmax.f32 %v6805, 0.0
        %v6838 = vmax.f32 %v6806, 0.0
        %v6839 = vmax.f32 %v6807, 0.0
        %v6840 = vmax.f32 %v6808, 0.0
        %v6841 = vmax.f32 %v6809, 0.0
        %v6842 = vmax.f32 %v6810, 0.0
        %v6843 = vmax.f32 %v6811, 0.0
        %v6844 = vmax.f32 %v6812, 0.0
        %v6845 = vmax.f32 %v6813, 0.0
        %v6846 = vmax.f32 %v6814, 0.0
        %6847 = vst [vmem:[%s421] sm:$0xff] %v6815
        %6848 = vst [vmem:[%s421 + $0x8] sm:$0xff] %v6816
        %6849 = vst [vmem:[%s421 + $0x10] sm:$0xff] %v6817
        %6850 = vst [vmem:[%s421 + $0x18] sm:$0xff] %v6818
        %6851 = vst [vmem:[%s421 + $0x20] sm:$0xff] %v6819
        %6852 = vst [vmem:[%s421 + $0x28] sm:$0xff] %v6820
        %6853 = vst [vmem:[%s421 + $0x30] sm:$0xff] %v6821
        %6854 = vst [vmem:[%s421 + $0x38] sm:$0xff] %v6822
        %6855 = vst [vmem:[%s421 + $0x40] sm:$0xff] %v6823
        %6856 = vst [vmem:[%s421 + $0x48] sm:$0xff] %v6824
        %6857 = vst [vmem:[%s421 + $0x50] sm:$0xff] %v6825
        %6858 = vst [vmem:[%s421 + $0x58] sm:$0xff] %v6826
        %6859 = vst [vmem:[%s421 + $0x60] sm:$0xff] %v6827
        %6860 = vst [vmem:[%s421 + $0x68] sm:$0xff] %v6828
        %6861 = vst [vmem:[%s421 + $0x70] sm:$0xff] %v6829
        %6862 = vst [vmem:[%s421 + $0x78] sm:$0xff] %v6830
        %6863 = vst [vmem:[%s421 + $0x80] sm:$0xff] %v6831
        %6864 = vst [vmem:[%s421 + $0x88] sm:$0xff] %v6832
        %6865 = vst [vmem:[%s421 + $0x90] sm:$0xff] %v6833
        %6866 = vst [vmem:[%s421 + $0x98] sm:$0xff] %v6834
        %6867 = vst [vmem:[%s421 + $0xa0] sm:$0xff] %v6835
        %6868 = vst [vmem:[%s421 + $0xa8] sm:$0xff] %v6836
        %6869 = vst [vmem:[%s421 + $0xb0] sm:$0xff] %v6837
        %6870 = vst [vmem:[%s421 + $0xb8] sm:$0xff] %v6838
        %6871 = vst [vmem:[%s421 + $0xc0] sm:$0xff] %v6839
        %6872 = vst [vmem:[%s421 + $0xc8] sm:$0xff] %v6840
        %6873 = vst [vmem:[%s421 + $0xd0] sm:$0xff] %v6841
        %6874 = vst [vmem:[%s421 + $0xd8] sm:$0xff] %v6842
        %6875 = vst [vmem:[%s421 + $0xe0] sm:$0xff] %v6843
        %6876 = vst [vmem:[%s421 + $0xe8] sm:$0xff] %v6844
        %6877 = vst [vmem:[%s421 + $0xf0] sm:$0xff] %v6845
        %6878 = vst [vmem:[%s421 + $0xf8] sm:$0xff] %v6846
        %s6879 = sand.u32 %s252, 1
        %s6880 = scalar_lea.sflag [#allocation6], %s6879
        %s6881 = sand.u32 %s252, 1
        %s6882 = smul.addr %s6881, 256
        %s6883 = scalar_lea.vmem [#allocation12], %s6882
        // Predicated region
        $region77: #{tpu_custom_call.1} parent=59 // pred_check
          %p6884 = pneg %p262
        $region78: #{tpu_custom_call.1} parent=59 // pred_check_branch
          %6886 = sbr.rel (%p6884) target = $region80
        $region79: #{tpu_custom_call.1} parent=59 // pred_region
          %s6888 = ssub.s32 4096, 4096
          %6889 = vsyncadd %s6880, %s6888
          %s6890 = smul.addr %s29, 32
          %s6891 = smul.addr %s6890, 128
          %s6892 = scalar_lea.hbm %s10, %s6891
          %s6893 = sshll.u32 %s6883, 4
          %s6894 = int_to_ptr.vmem [resolvable:$true] %s6893
          %6899 = dma.vmem_to_hbm [thread:$0]  %s6894, 4096, %s6892, %s6880, 128, 128, 8
        $region80: #{tpu_custom_call.1} parent=59 // pred_fallthru
          _
      $region60: #{tpu_custom_call.1} parent=5 // pred_fallthru
        _
      %p6900 = scmp.le.s32.totalorder 2, %s24
      // Predicated region
      $region81: #{tpu_custom_call.1} parent=5 // pred_check
        %p6901 = pneg %p6900
      $region82: #{tpu_custom_call.1} parent=5 // pred_check_branch
        %6903 = sbr.rel (%p6901) target = $region84
      $region83: #{tpu_custom_call.1} parent=5 // pred_region
        %s6904 = ssub.s32 %s24, 2
        // Predicated region
        $region85: #{tpu_custom_call.1} parent=83 // pred_check
          %p6905 = pneg %p268
        $region86: #{tpu_custom_call.1} parent=83 // pred_check_branch
          %6907 = sbr.rel (%p6905) target = $region88
        $region87: #{tpu_custom_call.1} parent=83 // pred_region
          %s6908 = sand.u32 %s253, 1
          %s6909 = scalar_lea.sflag [#allocation6], %s6908
          %s6910 = sand.u32 %s253, 1
          %s6911 = smul.addr %s6910, 256
          %s6912 = scalar_lea.vmem [#allocation12], %s6911
          %6913 = dma.done %s6909, 4096
        $region88: #{tpu_custom_call.1} parent=83 // pred_fallthru
          _
      $region84: #{tpu_custom_call.1} parent=5 // pred_fallthru
        _
    $region6: #{tpu_custom_call.1} parent=1 // loop_footer
      %s28 = sadd.s32 1, %s24
    $region7: #{tpu_custom_call.1} parent=1 // loop_footer_branch
      %23 = sbr.rel target = $region3
    $region8: #{tpu_custom_call.1} parent=1 // loop_exit
      _
    %6914 = vsyncpa [#allocation5], 1
    %s6915 = scalar_lea.sflag [#allocation5], 1
    %6916 = vsyncpa %s6915, 1
    %6917 = vsyncpa [#allocation8], 1
    %6918 = vsyncpa [#allocation11], 1
    %6919 = vsyncpa [#allocation6], 1
    %s6920 = scalar_lea.sflag [#allocation6], 1
    %6921 = vsyncpa %s6920, 1

</llo_original>
